<compile_context>
chip_gen: v6e
topology: v6e:2x2x1
jax: 0.10.0
libtpu: 0.0.40
codegen_flags: <defaults>
</compile_context>

<pallas_src>
import functools

import jax
import jax.numpy as jnp
from jax import lax
from jax.experimental import pallas as pl
from jax.experimental.pallas import tpu as pltpu


# ----------------------------- Pallas kernel ------------------------------- #
def _encoder_kernel(x_ref, wih0_ref, wih_ref, whh_ref, b_ref, h0_ref, c0_ref,
                    hN_ref, cN_ref, yf_ref, yb_ref, *, H, T, B, L):
    """Fused bidirectional multi-layer LSTM; emits only the final (h, c)."""

    def cell(xp_rows, h, c, whh):
        # Recurrence body: one small MXU matmul + elementwise gates.
        gates = xp_rows + jnp.dot(h, whh, preferred_element_type=jnp.float32)
        sg = jax.nn.sigmoid(gates)                 # one EUP pass over all 4H lanes
        i = sg[:, 0 * H:1 * H]
        f = sg[:, 1 * H:2 * H]
        o = sg[:, 3 * H:4 * H]
        g = jnp.tanh(gates[:, 2 * H:3 * H])
        c_new = f * c + i * g
        h_new = o * jnp.tanh(c_new)
        return h_new, c_new

    x_rows = x_ref[...]                            # (T*B, 1) time-major input

    for l in range(L):
        idx_f, idx_b = 2 * l, 2 * l + 1
        b_f = b_ref[idx_f]                         # (1, 4H) combined bias
        b_b = b_ref[idx_b]

        # ---- hoisted input projection (off the serial path) ----
        if l == 0:
            # d_in == 1: outer product via VPU broadcast-multiply.
            xp_f = x_rows * wih0_ref[0] + b_f      # (T*B, 4H)
            xp_b = x_rows * wih0_ref[1] + b_b
        else:
            a_f = yf_ref[...]                      # (T*B, H) prev-layer fwd hidden
            a_b = yb_ref[...]                      # (T*B, H) prev-layer bwd hidden
            w_f = wih_ref[2 * (l - 1)]             # (2H, 4H)
            w_b = wih_ref[2 * (l - 1) + 1]
            xp_f = (jnp.dot(a_f, w_f[0:H, :], preferred_element_type=jnp.float32)
                    + jnp.dot(a_b, w_f[H:2 * H, :], preferred_element_type=jnp.float32)
                    + b_f)
            xp_b = (jnp.dot(a_f, w_b[0:H, :], preferred_element_type=jnp.float32)
                    + jnp.dot(a_b, w_b[H:2 * H, :], preferred_element_type=jnp.float32)
                    + b_b)

        whh_f = whh_ref[idx_f]                     # (H, 4H), hoisted out of loop
        whh_b = whh_ref[idx_b]
        h_f, c_f = h0_ref[idx_f], c0_ref[idx_f]
        h_b, c_b = h0_ref[idx_b], c0_ref[idx_b]

        last = (l == L - 1)
        # Fully unrolled time loop; fwd and bwd recurrences interleaved for ILP.
        for t in range(T):
            tb = T - 1 - t                         # bwd direction walks in reverse
            h_f, c_f = cell(xp_f[t * B:(t + 1) * B, :], h_f, c_f, whh_f)
            h_b, c_b = cell(xp_b[tb * B:(tb + 1) * B, :], h_b, c_b, whh_b)
            if not last:                           # last layer: y never consumed
                yf_ref[t * B:(t + 1) * B, :] = h_f
                yb_ref[tb * B:(tb + 1) * B, :] = h_b

        hN_ref[idx_f] = h_f
        cN_ref[idx_f] = c_f
        hN_ref[idx_b] = h_b
        cN_ref[idx_b] = c_b


# ------------------------------- JAX wrapper -------------------------------- #
def encoder_forward(x, packed, h0, c0, *, hidden_dim, num_layers):
    """Mirrors Encoder.forward: returns (h_n, c_n), each (2*num_layers, B, H)."""
    wih0, wih_rest, whh, b = packed
    B, T = x.shape
    H = hidden_dim
    # Time-major flattened input rows: row t*B + b  ==  x[b, t].
    x_rows = jnp.transpose(x.astype(jnp.float32)).reshape(T * B, 1)

    kern = functools.partial(_encoder_kernel, H=H, T=T, B=B, L=num_layers)
    vmem = pl.BlockSpec(memory_space=pltpu.MemorySpace.VMEM)
    h_n, c_n = pl.pallas_call(
        kern,
        out_shape=(jax.ShapeDtypeStruct((2 * num_layers, B, H), jnp.float32),
                   jax.ShapeDtypeStruct((2 * num_layers, B, H), jnp.float32)),
        in_specs=[vmem] * 7,
        out_specs=(vmem, vmem),
        scratch_shapes=[pltpu.VMEM((T * B, H), jnp.float32),   # fwd hidden of layer l
                        pltpu.VMEM((T * B, H), jnp.float32)],  # bwd hidden of layer l
    )(x_rows, wih0, wih_rest, whh, b, h0, c0)
    return h_n, c_n


# -------------------------- Parameter initialisation ------------------------ #
def init_lstm_params(key, hidden_dim, num_layers):
    """PyTorch-style init U(-1/sqrt(H), 1/sqrt(H)); packed for the fused kernel."""
    H = hidden_dim
    k = 1.0 / float(H) ** 0.5
    wih_list, whh_list, b_list = [], [], []
    for l in range(num_layers):
        d_in = 1 if l == 0 else 2 * H
        for _ in range(2):                          # both directions
            key, k1, k2, k3, k4 = jax.random.split(key, 5)
            wih = jax.random.uniform(k1, (d_in, 4 * H), jnp.float32, -k, k)
            whh = jax.random.uniform(k2, (H, 4 * H), jnp.float32, -k, k)
            bih = jax.random.uniform(k3, (4 * H,), jnp.float32, -k, k)
            bhh = jax.random.uniform(k4, (4 * H,), jnp.float32, -k, k)
            wih_list.append(wih)
            whh_list.append(whh)
            b_list.append(bih + bhh)

    wih0 = jnp.stack(wih_list[0:2])                 # (2, 1, 4H)  layer-0 rows
    if num_layers > 1:
        wih_rest = jnp.stack(wih_list[2:])          # (2(L-1), 2H, 4H)
    else:
        wih_rest = jnp.zeros((1, 2 * H, 4 * H), jnp.float32)   # dummy, never read
    whh = jnp.stack(whh_list)                       # (2L, H, 4H)
    b = jnp.stack(b_list)[:, None, :]               # (2L, 1, 4H)
    return (wih0, wih_rest, whh, b), (wih_list, whh_list, b_list)


# ----------------------------- Pure-JAX reference --------------------------- #
def encoder_forward_ref(x, wih_list, whh_list, b_list, h0, c0, hidden_dim, num_layers):
    H = hidden_dim
    layer_in = x.astype(jnp.float32)[..., None]
    h_fin, c_fin = [], []
    for l in range(num_layers):
        outs = []
        for d in range(2):
            idx = 2 * l + d
            wih, whh, b = wih_list[idx], whh_list[idx], b_list[idx]
            seq = layer_in if d == 0 else layer_in[:, ::-1, :]

            def step(carry, x_t, wih=wih, whh=whh, b=b):
                h, c = carry
                g_all = x_t @ wih + h @ whh + b[None, :]
                i = jax.nn.sigmoid(g_all[:, :H])
                f = jax.nn.sigmoid(g_all[:, H:2 * H])
                g = jnp.tanh(g_all[:, 2 * H:3 * H])
                o = jax.nn.sigmoid(g_all[:, 3 * H:])
                c = f * c + i * g
                h = o * jnp.tanh(c)
                return (h, c), h

            (hT, cT), ys = lax.scan(step, (h0[idx], c0[idx]),
                                    jnp.transpose(seq, (1, 0, 2)))
            y = jnp.transpose(ys, (1, 0, 2))
            if d == 1:
                y = y[:, ::-1, :]
            outs.append(y)
            h_fin.append(hT)
            c_fin.append(cT)
        layer_in = jnp.concatenate(outs, -1)
    return jnp.stack(h_fin, 0), jnp.stack(c_fin, 0)


# ---------------------------------- Main ------------------------------------ #
if __name__ == "__main__":
    B, T = 2, 8                      # batch, sequence length
    HIDDEN = 32                      # hidden_dim -> 4H = 128 (one lane tile)
    LAYERS = 2                       # opts.lstm_layer
    VOCAB = 46
    EMBED = 16                       # embedding_dim (module param; unused in forward)

    key = jax.random.PRNGKey(0)
    key, kx, kh, kc, kp, ke = jax.random.split(key, 6)

    # Embedding table exists in __init__ but is never used by forward().
    embedding = jax.random.normal(ke, (VOCAB, EMBED), jnp.float32)
    embedding = embedding.at[0].set(0.0)   # padding_idx = phones.index('_') == 0

    x = jax.random.randint(kx, (B, T), 0, VOCAB, dtype=jnp.int32)   # phone ids
    # torch.randn(h0/c0) in forward -> deterministic normal here.
    h0 = jax.random.normal(kh, (2 * LAYERS, B, HIDDEN), jnp.float32)
    c0 = jax.random.normal(kc, (2 * LAYERS, B, HIDDEN), jnp.float32)

    packed, (wih_list, whh_list, b_list) = init_lstm_params(kp, HIDDEN, LAYERS)

    fwd = jax.jit(functools.partial(encoder_forward,
                                    hidden_dim=HIDDEN, num_layers=LAYERS))
    h_n, c_n = fwd(x, packed, h0, c0)
    jax.block_until_ready((h_n, c_n))

    h_ref, c_ref = encoder_forward_ref(x, wih_list, whh_list, b_list,
                                       h0, c0, HIDDEN, LAYERS)
    assert h_n.shape == (2 * LAYERS, B, HIDDEN) and c_n.shape == (2 * LAYERS, B, HIDDEN)
    assert jnp.allclose(h_n, h_ref, atol=1e-4, rtol=1e-4)
    assert jnp.allclose(c_n, c_ref, atol=1e-4, rtol=1e-4)

    print("KERNEL_OK")
</pallas_src>

<mosaic_0001>
module attributes {stable_mosaic.version = 11 : i64} {
  func.func @_encoder_kernel(%arg0: memref<16x1xf32, #tpu.memory_space<vmem>>, %arg1: memref<2x1x128xf32, #tpu.memory_space<vmem>>, %arg2: memref<2x64x128xf32, #tpu.memory_space<vmem>>, %arg3: memref<4x32x128xf32, #tpu.memory_space<vmem>>, %arg4: memref<4x1x128xf32, #tpu.memory_space<vmem>>, %arg5: memref<4x2x32xf32, #tpu.memory_space<vmem>>, %arg6: memref<4x2x32xf32, #tpu.memory_space<vmem>>, %arg7: memref<4x2x32xf32, #tpu.memory_space<vmem>>, %arg8: memref<4x2x32xf32, #tpu.memory_space<vmem>>, %arg9: memref<16x32xf32, #tpu.memory_space<vmem>>, %arg10: memref<16x32xf32, #tpu.memory_space<vmem>>) attributes {dimension_semantics = [], scalar_prefetch = 0 : i64, scratch_operands = 2 : i64, tpu.core_type = #tpu.core_type<tc>} {
    %c0 = arith.constant 0 : index
    %c0_0 = arith.constant 0 : index
    %0 = vector.load %arg0[%c0, %c0_0] : memref<16x1xf32, #tpu.memory_space<vmem>>, vector<16x1xf32>
    %c0_1 = arith.constant 0 : index
    %c0_2 = arith.constant 0 : index
    %c0_3 = arith.constant 0 : index
    %1 = vector.load %arg4[%c0_1, %c0_2, %c0_3] : memref<4x1x128xf32, #tpu.memory_space<vmem>>, vector<1x1x128xf32>
    %2 = vector.shape_cast %1 : vector<1x1x128xf32> to vector<1x128xf32>
    %c1 = arith.constant 1 : index
    %c0_4 = arith.constant 0 : index
    %c0_5 = arith.constant 0 : index
    %3 = vector.load %arg4[%c1, %c0_4, %c0_5] : memref<4x1x128xf32, #tpu.memory_space<vmem>>, vector<1x1x128xf32>
    %4 = vector.shape_cast %3 : vector<1x1x128xf32> to vector<1x128xf32>
    %c0_6 = arith.constant 0 : index
    %c0_7 = arith.constant 0 : index
    %c0_8 = arith.constant 0 : index
    %5 = vector.load %arg1[%c0_6, %c0_7, %c0_8] : memref<2x1x128xf32, #tpu.memory_space<vmem>>, vector<1x1x128xf32>
    %6 = vector.shape_cast %5 : vector<1x1x128xf32> to vector<1x128xf32>
    %7 = vector.broadcast %0 : vector<16x1xf32> to vector<16x128xf32>
    %8 = vector.broadcast %6 : vector<1x128xf32> to vector<16x128xf32>
    %9 = arith.mulf %7, %8 : vector<16x128xf32>
    %10 = vector.broadcast %2 : vector<1x128xf32> to vector<16x128xf32>
    %11 = arith.addf %9, %10 : vector<16x128xf32>
    %c1_9 = arith.constant 1 : index
    %c0_10 = arith.constant 0 : index
    %c0_11 = arith.constant 0 : index
    %12 = vector.load %arg1[%c1_9, %c0_10, %c0_11] : memref<2x1x128xf32, #tpu.memory_space<vmem>>, vector<1x1x128xf32>
    %13 = vector.shape_cast %12 : vector<1x1x128xf32> to vector<1x128xf32>
    %14 = vector.broadcast %0 : vector<16x1xf32> to vector<16x128xf32>
    %15 = vector.broadcast %13 : vector<1x128xf32> to vector<16x128xf32>
    %16 = arith.mulf %14, %15 : vector<16x128xf32>
    %17 = vector.broadcast %4 : vector<1x128xf32> to vector<16x128xf32>
    %18 = arith.addf %16, %17 : vector<16x128xf32>
    %c0_12 = arith.constant 0 : index
    %c0_13 = arith.constant 0 : index
    %c0_14 = arith.constant 0 : index
    %19 = vector.load %arg3[%c0_12, %c0_13, %c0_14] : memref<4x32x128xf32, #tpu.memory_space<vmem>>, vector<1x32x128xf32>
    %20 = vector.shape_cast %19 : vector<1x32x128xf32> to vector<32x128xf32>
    %c1_15 = arith.constant 1 : index
    %c0_16 = arith.constant 0 : index
    %c0_17 = arith.constant 0 : index
    %21 = vector.load %arg3[%c1_15, %c0_16, %c0_17] : memref<4x32x128xf32, #tpu.memory_space<vmem>>, vector<1x32x128xf32>
    %22 = vector.shape_cast %21 : vector<1x32x128xf32> to vector<32x128xf32>
    %c0_18 = arith.constant 0 : index
    %c0_19 = arith.constant 0 : index
    %c0_20 = arith.constant 0 : index
    %23 = vector.load %arg5[%c0_18, %c0_19, %c0_20] : memref<4x2x32xf32, #tpu.memory_space<vmem>>, vector<1x2x32xf32>
    %24 = vector.shape_cast %23 : vector<1x2x32xf32> to vector<2x32xf32>
    %c0_21 = arith.constant 0 : index
    %c0_22 = arith.constant 0 : index
    %c0_23 = arith.constant 0 : index
    %25 = vector.load %arg6[%c0_21, %c0_22, %c0_23] : memref<4x2x32xf32, #tpu.memory_space<vmem>>, vector<1x2x32xf32>
    %26 = vector.shape_cast %25 : vector<1x2x32xf32> to vector<2x32xf32>
    %c1_24 = arith.constant 1 : index
    %c0_25 = arith.constant 0 : index
    %c0_26 = arith.constant 0 : index
    %27 = vector.load %arg5[%c1_24, %c0_25, %c0_26] : memref<4x2x32xf32, #tpu.memory_space<vmem>>, vector<1x2x32xf32>
    %28 = vector.shape_cast %27 : vector<1x2x32xf32> to vector<2x32xf32>
    %c1_27 = arith.constant 1 : index
    %c0_28 = arith.constant 0 : index
    %c0_29 = arith.constant 0 : index
    %29 = vector.load %arg6[%c1_27, %c0_28, %c0_29] : memref<4x2x32xf32, #tpu.memory_space<vmem>>, vector<1x2x32xf32>
    %30 = vector.shape_cast %29 : vector<1x2x32xf32> to vector<2x32xf32>
    %31 = vector.extract_strided_slice %11 {offsets = [0, 0], sizes = [2, 128], strides = [1, 1]} : vector<16x128xf32> to vector<2x128xf32>
    %cst = arith.constant dense<0.000000e+00> : vector<2x128xf32>
    %32 = tpu.matmul %24, %20, %cst {dimension_numbers = #tpu.dot_dimension_numbers<[1], [0], [0], [1], [0, 0, 1, 1], [], []>} : vector<2x32xf32>, vector<32x128xf32>, vector<2x128xf32> -> vector<2x128xf32>
    %33 = arith.addf %31, %32 : vector<2x128xf32>
    %34 = arith.negf %33 : vector<2x128xf32>
    %35 = math.exp %34 : vector<2x128xf32>
    %cst_30 = arith.constant 1.000000e+00 : f32
    %36 = vector.broadcast %cst_30 : f32 to vector<2x128xf32>
    %37 = arith.addf %36, %35 : vector<2x128xf32>
    %38 = arith.divf %36, %37 : vector<2x128xf32>
    %39 = vector.extract_strided_slice %38 {offsets = [0, 0], sizes = [2, 32], strides = [1, 1]} : vector<2x128xf32> to vector<2x32xf32>
    %40 = vector.extract_strided_slice %38 {offsets = [0, 32], sizes = [2, 32], strides = [1, 1]} : vector<2x128xf32> to vector<2x32xf32>
    %41 = vector.extract_strided_slice %38 {offsets = [0, 96], sizes = [2, 32], strides = [1, 1]} : vector<2x128xf32> to vector<2x32xf32>
    %42 = vector.extract_strided_slice %33 {offsets = [0, 64], sizes = [2, 32], strides = [1, 1]} : vector<2x128xf32> to vector<2x32xf32>
    %43 = math.tanh %42 : vector<2x32xf32>
    %44 = arith.mulf %40, %26 : vector<2x32xf32>
    %45 = arith.mulf %39, %43 : vector<2x32xf32>
    %46 = arith.addf %44, %45 : vector<2x32xf32>
    %47 = math.tanh %46 : vector<2x32xf32>
    %48 = arith.mulf %41, %47 : vector<2x32xf32>
    %49 = vector.extract_strided_slice %18 {offsets = [14, 0], sizes = [2, 128], strides = [1, 1]} : vector<16x128xf32> to vector<2x128xf32>
    %cst_31 = arith.constant dense<0.000000e+00> : vector<2x128xf32>
    %50 = tpu.matmul %28, %22, %cst_31 {dimension_numbers = #tpu.dot_dimension_numbers<[1], [0], [0], [1], [0, 0, 1, 1], [], []>} : vector<2x32xf32>, vector<32x128xf32>, vector<2x128xf32> -> vector<2x128xf32>
    %51 = arith.addf %49, %50 : vector<2x128xf32>
    %52 = arith.negf %51 : vector<2x128xf32>
    %53 = math.exp %52 : vector<2x128xf32>
    %cst_32 = arith.constant 1.000000e+00 : f32
    %54 = vector.broadcast %cst_32 : f32 to vector<2x128xf32>
    %55 = arith.addf %54, %53 : vector<2x128xf32>
    %56 = arith.divf %54, %55 : vector<2x128xf32>
    %57 = vector.extract_strided_slice %56 {offsets = [0, 0], sizes = [2, 32], strides = [1, 1]} : vector<2x128xf32> to vector<2x32xf32>
    %58 = vector.extract_strided_slice %56 {offsets = [0, 32], sizes = [2, 32], strides = [1, 1]} : vector<2x128xf32> to vector<2x32xf32>
    %59 = vector.extract_strided_slice %56 {offsets = [0, 96], sizes = [2, 32], strides = [1, 1]} : vector<2x128xf32> to vector<2x32xf32>
    %60 = vector.extract_strided_slice %51 {offsets = [0, 64], sizes = [2, 32], strides = [1, 1]} : vector<2x128xf32> to vector<2x32xf32>
    %61 = math.tanh %60 : vector<2x32xf32>
    %62 = arith.mulf %58, %30 : vector<2x32xf32>
    %63 = arith.mulf %57, %61 : vector<2x32xf32>
    %64 = arith.addf %62, %63 : vector<2x32xf32>
    %65 = math.tanh %64 : vector<2x32xf32>
    %66 = arith.mulf %59, %65 : vector<2x32xf32>
    %c0_33 = arith.constant 0 : index
    %c0_34 = arith.constant 0 : index
    %67 = vector.load %arg9[%c0_33, %c0_34] : memref<16x32xf32, #tpu.memory_space<vmem>>, vector<2x32xf32>
    tpu.vector_store %arg9[%c0_33, %c0_34], %48 {strides = array<i32>} : memref<16x32xf32, #tpu.memory_space<vmem>>, vector<2x32xf32>,
    %c14 = arith.constant 14 : index
    %c0_35 = arith.constant 0 : index
    %68 = vector.load %arg10[%c14, %c0_35] : memref<16x32xf32, #tpu.memory_space<vmem>>, vector<2x32xf32>
    tpu.vector_store %arg10[%c14, %c0_35], %66 {strides = array<i32>} : memref<16x32xf32, #tpu.memory_space<vmem>>, vector<2x32xf32>,
    %69 = vector.extract_strided_slice %11 {offsets = [2, 0], sizes = [2, 128], strides = [1, 1]} : vector<16x128xf32> to vector<2x128xf32>
    %cst_36 = arith.constant dense<0.000000e+00> : vector<2x128xf32>
    %70 = tpu.matmul %48, %20, %cst_36 {dimension_numbers = #tpu.dot_dimension_numbers<[1], [0], [0], [1], [0, 0, 1, 1], [], []>} : vector<2x32xf32>, vector<32x128xf32>, vector<2x128xf32> -> vector<2x128xf32>
    %71 = arith.addf %69, %70 : vector<2x128xf32>
    %72 = arith.negf %71 : vector<2x128xf32>
    %73 = math.exp %72 : vector<2x128xf32>
    %cst_37 = arith.constant 1.000000e+00 : f32
    %74 = vector.broadcast %cst_37 : f32 to vector<2x128xf32>
    %75 = arith.addf %74, %73 : vector<2x128xf32>
    %76 = arith.divf %74, %75 : vector<2x128xf32>
    %77 = vector.extract_strided_slice %76 {offsets = [0, 0], sizes = [2, 32], strides = [1, 1]} : vector<2x128xf32> to vector<2x32xf32>
    %78 = vector.extract_strided_slice %76 {offsets = [0, 32], sizes = [2, 32], strides = [1, 1]} : vector<2x128xf32> to vector<2x32xf32>
    %79 = vector.extract_strided_slice %76 {offsets = [0, 96], sizes = [2, 32], strides = [1, 1]} : vector<2x128xf32> to vector<2x32xf32>
    %80 = vector.extract_strided_slice %71 {offsets = [0, 64], sizes = [2, 32], strides = [1, 1]} : vector<2x128xf32> to vector<2x32xf32>
    %81 = math.tanh %80 : vector<2x32xf32>
    %82 = arith.mulf %78, %46 : vector<2x32xf32>
    %83 = arith.mulf %77, %81 : vector<2x32xf32>
    %84 = arith.addf %82, %83 : vector<2x32xf32>
    %85 = math.tanh %84 : vector<2x32xf32>
    %86 = arith.mulf %79, %85 : vector<2x32xf32>
    %87 = vector.extract_strided_slice %18 {offsets = [12, 0], sizes = [2, 128], strides = [1, 1]} : vector<16x128xf32> to vector<2x128xf32>
    %cst_38 = arith.constant dense<0.000000e+00> : vector<2x128xf32>
    %88 = tpu.matmul %66, %22, %cst_38 {dimension_numbers = #tpu.dot_dimension_numbers<[1], [0], [0], [1], [0, 0, 1, 1], [], []>} : vector<2x32xf32>, vector<32x128xf32>, vector<2x128xf32> -> vector<2x128xf32>
    %89 = arith.addf %87, %88 : vector<2x128xf32>
    %90 = arith.negf %89 : vector<2x128xf32>
    %91 = math.exp %90 : vector<2x128xf32>
    %cst_39 = arith.constant 1.000000e+00 : f32
    %92 = vector.broadcast %cst_39 : f32 to vector<2x128xf32>
    %93 = arith.addf %92, %91 : vector<2x128xf32>
    %94 = arith.divf %92, %93 : vector<2x128xf32>
    %95 = vector.extract_strided_slice %94 {offsets = [0, 0], sizes = [2, 32], strides = [1, 1]} : vector<2x128xf32> to vector<2x32xf32>
    %96 = vector.extract_strided_slice %94 {offsets = [0, 32], sizes = [2, 32], strides = [1, 1]} : vector<2x128xf32> to vector<2x32xf32>
    %97 = vector.extract_strided_slice %94 {offsets = [0, 96], sizes = [2, 32], strides = [1, 1]} : vector<2x128xf32> to vector<2x32xf32>
    %98 = vector.extract_strided_slice %89 {offsets = [0, 64], sizes = [2, 32], strides = [1, 1]} : vector<2x128xf32> to vector<2x32xf32>
    %99 = math.tanh %98 : vector<2x32xf32>
    %100 = arith.mulf %96, %64 : vector<2x32xf32>
    %101 = arith.mulf %95, %99 : vector<2x32xf32>
    %102 = arith.addf %100, %101 : vector<2x32xf32>
    %103 = math.tanh %102 : vector<2x32xf32>
    %104 = arith.mulf %97, %103 : vector<2x32xf32>
    %c2 = arith.constant 2 : index
    %c0_40 = arith.constant 0 : index
    %105 = vector.load %arg9[%c2, %c0_40] : memref<16x32xf32, #tpu.memory_space<vmem>>, vector<2x32xf32>
    tpu.vector_store %arg9[%c2, %c0_40], %86 {strides = array<i32>} : memref<16x32xf32, #tpu.memory_space<vmem>>, vector<2x32xf32>,
    %c12 = arith.constant 12 : index
    %c0_41 = arith.constant 0 : index
    %106 = vector.load %arg10[%c12, %c0_41] : memref<16x32xf32, #tpu.memory_space<vmem>>, vector<2x32xf32>
    tpu.vector_store %arg10[%c12, %c0_41], %104 {strides = array<i32>} : memref<16x32xf32, #tpu.memory_space<vmem>>, vector<2x32xf32>,
    %107 = vector.extract_strided_slice %11 {offsets = [4, 0], sizes = [2, 128], strides = [1, 1]} : vector<16x128xf32> to vector<2x128xf32>
    %cst_42 = arith.constant dense<0.000000e+00> : vector<2x128xf32>
    %108 = tpu.matmul %86, %20, %cst_42 {dimension_numbers = #tpu.dot_dimension_numbers<[1], [0], [0], [1], [0, 0, 1, 1], [], []>} : vector<2x32xf32>, vector<32x128xf32>, vector<2x128xf32> -> vector<2x128xf32>
    %109 = arith.addf %107, %108 : vector<2x128xf32>
    %110 = arith.negf %109 : vector<2x128xf32>
    %111 = math.exp %110 : vector<2x128xf32>
    %cst_43 = arith.constant 1.000000e+00 : f32
    %112 = vector.broadcast %cst_43 : f32 to vector<2x128xf32>
    %113 = arith.addf %112, %111 : vector<2x128xf32>
    %114 = arith.divf %112, %113 : vector<2x128xf32>
    %115 = vector.extract_strided_slice %114 {offsets = [0, 0], sizes = [2, 32], strides = [1, 1]} : vector<2x128xf32> to vector<2x32xf32>
    %116 = vector.extract_strided_slice %114 {offsets = [0, 32], sizes = [2, 32], strides = [1, 1]} : vector<2x128xf32> to vector<2x32xf32>
    %117 = vector.extract_strided_slice %114 {offsets = [0, 96], sizes = [2, 32], strides = [1, 1]} : vector<2x128xf32> to vector<2x32xf32>
    %118 = vector.extract_strided_slice %109 {offsets = [0, 64], sizes = [2, 32], strides = [1, 1]} : vector<2x128xf32> to vector<2x32xf32>
    %119 = math.tanh %118 : vector<2x32xf32>
    %120 = arith.mulf %116, %84 : vector<2x32xf32>
    %121 = arith.mulf %115, %119 : vector<2x32xf32>
    %122 = arith.addf %120, %121 : vector<2x32xf32>
    %123 = math.tanh %122 : vector<2x32xf32>
    %124 = arith.mulf %117, %123 : vector<2x32xf32>
    %125 = vector.extract_strided_slice %18 {offsets = [10, 0], sizes = [2, 128], strides = [1, 1]} : vector<16x128xf32> to vector<2x128xf32>
    %cst_44 = arith.constant dense<0.000000e+00> : vector<2x128xf32>
    %126 = tpu.matmul %104, %22, %cst_44 {dimension_numbers = #tpu.dot_dimension_numbers<[1], [0], [0], [1], [0, 0, 1, 1], [], []>} : vector<2x32xf32>, vector<32x128xf32>, vector<2x128xf32> -> vector<2x128xf32>
    %127 = arith.addf %125, %126 : vector<2x128xf32>
    %128 = arith.negf %127 : vector<2x128xf32>
    %129 = math.exp %128 : vector<2x128xf32>
    %cst_45 = arith.constant 1.000000e+00 : f32
    %130 = vector.broadcast %cst_45 : f32 to vector<2x128xf32>
    %131 = arith.addf %130, %129 : vector<2x128xf32>
    %132 = arith.divf %130, %131 : vector<2x128xf32>
    %133 = vector.extract_strided_slice %132 {offsets = [0, 0], sizes = [2, 32], strides = [1, 1]} : vector<2x128xf32> to vector<2x32xf32>
    %134 = vector.extract_strided_slice %132 {offsets = [0, 32], sizes = [2, 32], strides = [1, 1]} : vector<2x128xf32> to vector<2x32xf32>
    %135 = vector.extract_strided_slice %132 {offsets = [0, 96], sizes = [2, 32], strides = [1, 1]} : vector<2x128xf32> to vector<2x32xf32>
    %136 = vector.extract_strided_slice %127 {offsets = [0, 64], sizes = [2, 32], strides = [1, 1]} : vector<2x128xf32> to vector<2x32xf32>
    %137 = math.tanh %136 : vector<2x32xf32>
    %138 = arith.mulf %134, %102 : vector<2x32xf32>
    %139 = arith.mulf %133, %137 : vector<2x32xf32>
    %140 = arith.addf %138, %139 : vector<2x32xf32>
    %141 = math.tanh %140 : vector<2x32xf32>
    %142 = arith.mulf %135, %141 : vector<2x32xf32>
    %c4 = arith.constant 4 : index
    %c0_46 = arith.constant 0 : index
    %143 = vector.load %arg9[%c4, %c0_46] : memref<16x32xf32, #tpu.memory_space<vmem>>, vector<2x32xf32>
    tpu.vector_store %arg9[%c4, %c0_46], %124 {strides = array<i32>} : memref<16x32xf32, #tpu.memory_space<vmem>>, vector<2x32xf32>,
    %c10 = arith.constant 10 : index
    %c0_47 = arith.constant 0 : index
    %144 = vector.load %arg10[%c10, %c0_47] : memref<16x32xf32, #tpu.memory_space<vmem>>, vector<2x32xf32>
    tpu.vector_store %arg10[%c10, %c0_47], %142 {strides = array<i32>} : memref<16x32xf32, #tpu.memory_space<vmem>>, vector<2x32xf32>,
    %145 = vector.extract_strided_slice %11 {offsets = [6, 0], sizes = [2, 128], strides = [1, 1]} : vector<16x128xf32> to vector<2x128xf32>
    %cst_48 = arith.constant dense<0.000000e+00> : vector<2x128xf32>
    %146 = tpu.matmul %124, %20, %cst_48 {dimension_numbers = #tpu.dot_dimension_numbers<[1], [0], [0], [1], [0, 0, 1, 1], [], []>} : vector<2x32xf32>, vector<32x128xf32>, vector<2x128xf32> -> vector<2x128xf32>
    %147 = arith.addf %145, %146 : vector<2x128xf32>
    %148 = arith.negf %147 : vector<2x128xf32>
    %149 = math.exp %148 : vector<2x128xf32>
    %cst_49 = arith.constant 1.000000e+00 : f32
    %150 = vector.broadcast %cst_49 : f32 to vector<2x128xf32>
    %151 = arith.addf %150, %149 : vector<2x128xf32>
    %152 = arith.divf %150, %151 : vector<2x128xf32>
    %153 = vector.extract_strided_slice %152 {offsets = [0, 0], sizes = [2, 32], strides = [1, 1]} : vector<2x128xf32> to vector<2x32xf32>
    %154 = vector.extract_strided_slice %152 {offsets = [0, 32], sizes = [2, 32], strides = [1, 1]} : vector<2x128xf32> to vector<2x32xf32>
    %155 = vector.extract_strided_slice %152 {offsets = [0, 96], sizes = [2, 32], strides = [1, 1]} : vector<2x128xf32> to vector<2x32xf32>
    %156 = vector.extract_strided_slice %147 {offsets = [0, 64], sizes = [2, 32], strides = [1, 1]} : vector<2x128xf32> to vector<2x32xf32>
    %157 = math.tanh %156 : vector<2x32xf32>
    %158 = arith.mulf %154, %122 : vector<2x32xf32>
    %159 = arith.mulf %153, %157 : vector<2x32xf32>
    %160 = arith.addf %158, %159 : vector<2x32xf32>
    %161 = math.tanh %160 : vector<2x32xf32>
    %162 = arith.mulf %155, %161 : vector<2x32xf32>
    %163 = vector.extract_strided_slice %18 {offsets = [8, 0], sizes = [2, 128], strides = [1, 1]} : vector<16x128xf32> to vector<2x128xf32>
    %cst_50 = arith.constant dense<0.000000e+00> : vector<2x128xf32>
    %164 = tpu.matmul %142, %22, %cst_50 {dimension_numbers = #tpu.dot_dimension_numbers<[1], [0], [0], [1], [0, 0, 1, 1], [], []>} : vector<2x32xf32>, vector<32x128xf32>, vector<2x128xf32> -> vector<2x128xf32>
    %165 = arith.addf %163, %164 : vector<2x128xf32>
    %166 = arith.negf %165 : vector<2x128xf32>
    %167 = math.exp %166 : vector<2x128xf32>
    %cst_51 = arith.constant 1.000000e+00 : f32
    %168 = vector.broadcast %cst_51 : f32 to vector<2x128xf32>
    %169 = arith.addf %168, %167 : vector<2x128xf32>
    %170 = arith.divf %168, %169 : vector<2x128xf32>
    %171 = vector.extract_strided_slice %170 {offsets = [0, 0], sizes = [2, 32], strides = [1, 1]} : vector<2x128xf32> to vector<2x32xf32>
    %172 = vector.extract_strided_slice %170 {offsets = [0, 32], sizes = [2, 32], strides = [1, 1]} : vector<2x128xf32> to vector<2x32xf32>
    %173 = vector.extract_strided_slice %170 {offsets = [0, 96], sizes = [2, 32], strides = [1, 1]} : vector<2x128xf32> to vector<2x32xf32>
    %174 = vector.extract_strided_slice %165 {offsets = [0, 64], sizes = [2, 32], strides = [1, 1]} : vector<2x128xf32> to vector<2x32xf32>
    %175 = math.tanh %174 : vector<2x32xf32>
    %176 = arith.mulf %172, %140 : vector<2x32xf32>
    %177 = arith.mulf %171, %175 : vector<2x32xf32>
    %178 = arith.addf %176, %177 : vector<2x32xf32>
    %179 = math.tanh %178 : vector<2x32xf32>
    %180 = arith.mulf %173, %179 : vector<2x32xf32>
    %c6 = arith.constant 6 : index
    %c0_52 = arith.constant 0 : index
    %181 = vector.load %arg9[%c6, %c0_52] : memref<16x32xf32, #tpu.memory_space<vmem>>, vector<2x32xf32>
    tpu.vector_store %arg9[%c6, %c0_52], %162 {strides = array<i32>} : memref<16x32xf32, #tpu.memory_space<vmem>>, vector<2x32xf32>,
    %c8 = arith.constant 8 : index
    %c0_53 = arith.constant 0 : index
    %182 = vector.load %arg10[%c8, %c0_53] : memref<16x32xf32, #tpu.memory_space<vmem>>, vector<2x32xf32>
    tpu.vector_store %arg10[%c8, %c0_53], %180 {strides = array<i32>} : memref<16x32xf32, #tpu.memory_space<vmem>>, vector<2x32xf32>,
    %183 = vector.extract_strided_slice %11 {offsets = [8, 0], sizes = [2, 128], strides = [1, 1]} : vector<16x128xf32> to vector<2x128xf32>
    %cst_54 = arith.constant dense<0.000000e+00> : vector<2x128xf32>
    %184 = tpu.matmul %162, %20, %cst_54 {dimension_numbers = #tpu.dot_dimension_numbers<[1], [0], [0], [1], [0, 0, 1, 1], [], []>} : vector<2x32xf32>, vector<32x128xf32>, vector<2x128xf32> -> vector<2x128xf32>
    %185 = arith.addf %183, %184 : vector<2x128xf32>
    %186 = arith.negf %185 : vector<2x128xf32>
    %187 = math.exp %186 : vector<2x128xf32>
    %cst_55 = arith.constant 1.000000e+00 : f32
    %188 = vector.broadcast %cst_55 : f32 to vector<2x128xf32>
    %189 = arith.addf %188, %187 : vector<2x128xf32>
    %190 = arith.divf %188, %189 : vector<2x128xf32>
    %191 = vector.extract_strided_slice %190 {offsets = [0, 0], sizes = [2, 32], strides = [1, 1]} : vector<2x128xf32> to vector<2x32xf32>
    %192 = vector.extract_strided_slice %190 {offsets = [0, 32], sizes = [2, 32], strides = [1, 1]} : vector<2x128xf32> to vector<2x32xf32>
    %193 = vector.extract_strided_slice %190 {offsets = [0, 96], sizes = [2, 32], strides = [1, 1]} : vector<2x128xf32> to vector<2x32xf32>
    %194 = vector.extract_strided_slice %185 {offsets = [0, 64], sizes = [2, 32], strides = [1, 1]} : vector<2x128xf32> to vector<2x32xf32>
    %195 = math.tanh %194 : vector<2x32xf32>
    %196 = arith.mulf %192, %160 : vector<2x32xf32>
    %197 = arith.mulf %191, %195 : vector<2x32xf32>
    %198 = arith.addf %196, %197 : vector<2x32xf32>
    %199 = math.tanh %198 : vector<2x32xf32>
    %200 = arith.mulf %193, %199 : vector<2x32xf32>
    %201 = vector.extract_strided_slice %18 {offsets = [6, 0], sizes = [2, 128], strides = [1, 1]} : vector<16x128xf32> to vector<2x128xf32>
    %cst_56 = arith.constant dense<0.000000e+00> : vector<2x128xf32>
    %202 = tpu.matmul %180, %22, %cst_56 {dimension_numbers = #tpu.dot_dimension_numbers<[1], [0], [0], [1], [0, 0, 1, 1], [], []>} : vector<2x32xf32>, vector<32x128xf32>, vector<2x128xf32> -> vector<2x128xf32>
    %203 = arith.addf %201, %202 : vector<2x128xf32>
    %204 = arith.negf %203 : vector<2x128xf32>
    %205 = math.exp %204 : vector<2x128xf32>
    %cst_57 = arith.constant 1.000000e+00 : f32
    %206 = vector.broadcast %cst_57 : f32 to vector<2x128xf32>
    %207 = arith.addf %206, %205 : vector<2x128xf32>
    %208 = arith.divf %206, %207 : vector<2x128xf32>
    %209 = vector.extract_strided_slice %208 {offsets = [0, 0], sizes = [2, 32], strides = [1, 1]} : vector<2x128xf32> to vector<2x32xf32>
    %210 = vector.extract_strided_slice %208 {offsets = [0, 32], sizes = [2, 32], strides = [1, 1]} : vector<2x128xf32> to vector<2x32xf32>
    %211 = vector.extract_strided_slice %208 {offsets = [0, 96], sizes = [2, 32], strides = [1, 1]} : vector<2x128xf32> to vector<2x32xf32>
    %212 = vector.extract_strided_slice %203 {offsets = [0, 64], sizes = [2, 32], strides = [1, 1]} : vector<2x128xf32> to vector<2x32xf32>
    %213 = math.tanh %212 : vector<2x32xf32>
    %214 = arith.mulf %210, %178 : vector<2x32xf32>
    %215 = arith.mulf %209, %213 : vector<2x32xf32>
    %216 = arith.addf %214, %215 : vector<2x32xf32>
    %217 = math.tanh %216 : vector<2x32xf32>
    %218 = arith.mulf %211, %217 : vector<2x32xf32>
    %c8_58 = arith.constant 8 : index
    %c0_59 = arith.constant 0 : index
    %219 = vector.load %arg9[%c8_58, %c0_59] : memref<16x32xf32, #tpu.memory_space<vmem>>, vector<2x32xf32>
    tpu.vector_store %arg9[%c8_58, %c0_59], %200 {strides = array<i32>} : memref<16x32xf32, #tpu.memory_space<vmem>>, vector<2x32xf32>,
    %c6_60 = arith.constant 6 : index
    %c0_61 = arith.constant 0 : index
    %220 = vector.load %arg10[%c6_60, %c0_61] : memref<16x32xf32, #tpu.memory_space<vmem>>, vector<2x32xf32>
    tpu.vector_store %arg10[%c6_60, %c0_61], %218 {strides = array<i32>} : memref<16x32xf32, #tpu.memory_space<vmem>>, vector<2x32xf32>,
    %221 = vector.extract_strided_slice %11 {offsets = [10, 0], sizes = [2, 128], strides = [1, 1]} : vector<16x128xf32> to vector<2x128xf32>
    %cst_62 = arith.constant dense<0.000000e+00> : vector<2x128xf32>
    %222 = tpu.matmul %200, %20, %cst_62 {dimension_numbers = #tpu.dot_dimension_numbers<[1], [0], [0], [1], [0, 0, 1, 1], [], []>} : vector<2x32xf32>, vector<32x128xf32>, vector<2x128xf32> -> vector<2x128xf32>
    %223 = arith.addf %221, %222 : vector<2x128xf32>
    %224 = arith.negf %223 : vector<2x128xf32>
    %225 = math.exp %224 : vector<2x128xf32>
    %cst_63 = arith.constant 1.000000e+00 : f32
    %226 = vector.broadcast %cst_63 : f32 to vector<2x128xf32>
    %227 = arith.addf %226, %225 : vector<2x128xf32>
    %228 = arith.divf %226, %227 : vector<2x128xf32>
    %229 = vector.extract_strided_slice %228 {offsets = [0, 0], sizes = [2, 32], strides = [1, 1]} : vector<2x128xf32> to vector<2x32xf32>
    %230 = vector.extract_strided_slice %228 {offsets = [0, 32], sizes = [2, 32], strides = [1, 1]} : vector<2x128xf32> to vector<2x32xf32>
    %231 = vector.extract_strided_slice %228 {offsets = [0, 96], sizes = [2, 32], strides = [1, 1]} : vector<2x128xf32> to vector<2x32xf32>
    %232 = vector.extract_strided_slice %223 {offsets = [0, 64], sizes = [2, 32], strides = [1, 1]} : vector<2x128xf32> to vector<2x32xf32>
    %233 = math.tanh %232 : vector<2x32xf32>
    %234 = arith.mulf %230, %198 : vector<2x32xf32>
    %235 = arith.mulf %229, %233 : vector<2x32xf32>
    %236 = arith.addf %234, %235 : vector<2x32xf32>
    %237 = math.tanh %236 : vector<2x32xf32>
    %238 = arith.mulf %231, %237 : vector<2x32xf32>
    %239 = vector.extract_strided_slice %18 {offsets = [4, 0], sizes = [2, 128], strides = [1, 1]} : vector<16x128xf32> to vector<2x128xf32>
    %cst_64 = arith.constant dense<0.000000e+00> : vector<2x128xf32>
    %240 = tpu.matmul %218, %22, %cst_64 {dimension_numbers = #tpu.dot_dimension_numbers<[1], [0], [0], [1], [0, 0, 1, 1], [], []>} : vector<2x32xf32>, vector<32x128xf32>, vector<2x128xf32> -> vector<2x128xf32>
    %241 = arith.addf %239, %240 : vector<2x128xf32>
    %242 = arith.negf %241 : vector<2x128xf32>
    %243 = math.exp %242 : vector<2x128xf32>
    %cst_65 = arith.constant 1.000000e+00 : f32
    %244 = vector.broadcast %cst_65 : f32 to vector<2x128xf32>
    %245 = arith.addf %244, %243 : vector<2x128xf32>
    %246 = arith.divf %244, %245 : vector<2x128xf32>
    %247 = vector.extract_strided_slice %246 {offsets = [0, 0], sizes = [2, 32], strides = [1, 1]} : vector<2x128xf32> to vector<2x32xf32>
    %248 = vector.extract_strided_slice %246 {offsets = [0, 32], sizes = [2, 32], strides = [1, 1]} : vector<2x128xf32> to vector<2x32xf32>
    %249 = vector.extract_strided_slice %246 {offsets = [0, 96], sizes = [2, 32], strides = [1, 1]} : vector<2x128xf32> to vector<2x32xf32>
    %250 = vector.extract_strided_slice %241 {offsets = [0, 64], sizes = [2, 32], strides = [1, 1]} : vector<2x128xf32> to vector<2x32xf32>
    %251 = math.tanh %250 : vector<2x32xf32>
    %252 = arith.mulf %248, %216 : vector<2x32xf32>
    %253 = arith.mulf %247, %251 : vector<2x32xf32>
    %254 = arith.addf %252, %253 : vector<2x32xf32>
    %255 = math.tanh %254 : vector<2x32xf32>
    %256 = arith.mulf %249, %255 : vector<2x32xf32>
    %c10_66 = arith.constant 10 : index
    %c0_67 = arith.constant 0 : index
    %257 = vector.load %arg9[%c10_66, %c0_67] : memref<16x32xf32, #tpu.memory_space<vmem>>, vector<2x32xf32>
    tpu.vector_store %arg9[%c10_66, %c0_67], %238 {strides = array<i32>} : memref<16x32xf32, #tpu.memory_space<vmem>>, vector<2x32xf32>,
    %c4_68 = arith.constant 4 : index
    %c0_69 = arith.constant 0 : index
    %258 = vector.load %arg10[%c4_68, %c0_69] : memref<16x32xf32, #tpu.memory_space<vmem>>, vector<2x32xf32>
    tpu.vector_store %arg10[%c4_68, %c0_69], %256 {strides = array<i32>} : memref<16x32xf32, #tpu.memory_space<vmem>>, vector<2x32xf32>,
    %259 = vector.extract_strided_slice %11 {offsets = [12, 0], sizes = [2, 128], strides = [1, 1]} : vector<16x128xf32> to vector<2x128xf32>
    %cst_70 = arith.constant dense<0.000000e+00> : vector<2x128xf32>
    %260 = tpu.matmul %238, %20, %cst_70 {dimension_numbers = #tpu.dot_dimension_numbers<[1], [0], [0], [1], [0, 0, 1, 1], [], []>} : vector<2x32xf32>, vector<32x128xf32>, vector<2x128xf32> -> vector<2x128xf32>
    %261 = arith.addf %259, %260 : vector<2x128xf32>
    %262 = arith.negf %261 : vector<2x128xf32>
    %263 = math.exp %262 : vector<2x128xf32>
    %cst_71 = arith.constant 1.000000e+00 : f32
    %264 = vector.broadcast %cst_71 : f32 to vector<2x128xf32>
    %265 = arith.addf %264, %263 : vector<2x128xf32>
    %266 = arith.divf %264, %265 : vector<2x128xf32>
    %267 = vector.extract_strided_slice %266 {offsets = [0, 0], sizes = [2, 32], strides = [1, 1]} : vector<2x128xf32> to vector<2x32xf32>
    %268 = vector.extract_strided_slice %266 {offsets = [0, 32], sizes = [2, 32], strides = [1, 1]} : vector<2x128xf32> to vector<2x32xf32>
    %269 = vector.extract_strided_slice %266 {offsets = [0, 96], sizes = [2, 32], strides = [1, 1]} : vector<2x128xf32> to vector<2x32xf32>
    %270 = vector.extract_strided_slice %261 {offsets = [0, 64], sizes = [2, 32], strides = [1, 1]} : vector<2x128xf32> to vector<2x32xf32>
    %271 = math.tanh %270 : vector<2x32xf32>
    %272 = arith.mulf %268, %236 : vector<2x32xf32>
    %273 = arith.mulf %267, %271 : vector<2x32xf32>
    %274 = arith.addf %272, %273 : vector<2x32xf32>
    %275 = math.tanh %274 : vector<2x32xf32>
    %276 = arith.mulf %269, %275 : vector<2x32xf32>
    %277 = vector.extract_strided_slice %18 {offsets = [2, 0], sizes = [2, 128], strides = [1, 1]} : vector<16x128xf32> to vector<2x128xf32>
    %cst_72 = arith.constant dense<0.000000e+00> : vector<2x128xf32>
    %278 = tpu.matmul %256, %22, %cst_72 {dimension_numbers = #tpu.dot_dimension_numbers<[1], [0], [0], [1], [0, 0, 1, 1], [], []>} : vector<2x32xf32>, vector<32x128xf32>, vector<2x128xf32> -> vector<2x128xf32>
    %279 = arith.addf %277, %278 : vector<2x128xf32>
    %280 = arith.negf %279 : vector<2x128xf32>
    %281 = math.exp %280 : vector<2x128xf32>
    %cst_73 = arith.constant 1.000000e+00 : f32
    %282 = vector.broadcast %cst_73 : f32 to vector<2x128xf32>
    %283 = arith.addf %282, %281 : vector<2x128xf32>
    %284 = arith.divf %282, %283 : vector<2x128xf32>
    %285 = vector.extract_strided_slice %284 {offsets = [0, 0], sizes = [2, 32], strides = [1, 1]} : vector<2x128xf32> to vector<2x32xf32>
    %286 = vector.extract_strided_slice %284 {offsets = [0, 32], sizes = [2, 32], strides = [1, 1]} : vector<2x128xf32> to vector<2x32xf32>
    %287 = vector.extract_strided_slice %284 {offsets = [0, 96], sizes = [2, 32], strides = [1, 1]} : vector<2x128xf32> to vector<2x32xf32>
    %288 = vector.extract_strided_slice %279 {offsets = [0, 64], sizes = [2, 32], strides = [1, 1]} : vector<2x128xf32> to vector<2x32xf32>
    %289 = math.tanh %288 : vector<2x32xf32>
    %290 = arith.mulf %286, %254 : vector<2x32xf32>
    %291 = arith.mulf %285, %289 : vector<2x32xf32>
    %292 = arith.addf %290, %291 : vector<2x32xf32>
    %293 = math.tanh %292 : vector<2x32xf32>
    %294 = arith.mulf %287, %293 : vector<2x32xf32>
    %c12_74 = arith.constant 12 : index
    %c0_75 = arith.constant 0 : index
    %295 = vector.load %arg9[%c12_74, %c0_75] : memref<16x32xf32, #tpu.memory_space<vmem>>, vector<2x32xf32>
    tpu.vector_store %arg9[%c12_74, %c0_75], %276 {strides = array<i32>} : memref<16x32xf32, #tpu.memory_space<vmem>>, vector<2x32xf32>,
    %c2_76 = arith.constant 2 : index
    %c0_77 = arith.constant 0 : index
    %296 = vector.load %arg10[%c2_76, %c0_77] : memref<16x32xf32, #tpu.memory_space<vmem>>, vector<2x32xf32>
    tpu.vector_store %arg10[%c2_76, %c0_77], %294 {strides = array<i32>} : memref<16x32xf32, #tpu.memory_space<vmem>>, vector<2x32xf32>,
    %297 = vector.extract_strided_slice %11 {offsets = [14, 0], sizes = [2, 128], strides = [1, 1]} : vector<16x128xf32> to vector<2x128xf32>
    %cst_78 = arith.constant dense<0.000000e+00> : vector<2x128xf32>
    %298 = tpu.matmul %276, %20, %cst_78 {dimension_numbers = #tpu.dot_dimension_numbers<[1], [0], [0], [1], [0, 0, 1, 1], [], []>} : vector<2x32xf32>, vector<32x128xf32>, vector<2x128xf32> -> vector<2x128xf32>
    %299 = arith.addf %297, %298 : vector<2x128xf32>
    %300 = arith.negf %299 : vector<2x128xf32>
    %301 = math.exp %300 : vector<2x128xf32>
    %cst_79 = arith.constant 1.000000e+00 : f32
    %302 = vector.broadcast %cst_79 : f32 to vector<2x128xf32>
    %303 = arith.addf %302, %301 : vector<2x128xf32>
    %304 = arith.divf %302, %303 : vector<2x128xf32>
    %305 = vector.extract_strided_slice %304 {offsets = [0, 0], sizes = [2, 32], strides = [1, 1]} : vector<2x128xf32> to vector<2x32xf32>
    %306 = vector.extract_strided_slice %304 {offsets = [0, 32], sizes = [2, 32], strides = [1, 1]} : vector<2x128xf32> to vector<2x32xf32>
    %307 = vector.extract_strided_slice %304 {offsets = [0, 96], sizes = [2, 32], strides = [1, 1]} : vector<2x128xf32> to vector<2x32xf32>
    %308 = vector.extract_strided_slice %299 {offsets = [0, 64], sizes = [2, 32], strides = [1, 1]} : vector<2x128xf32> to vector<2x32xf32>
    %309 = math.tanh %308 : vector<2x32xf32>
    %310 = arith.mulf %306, %274 : vector<2x32xf32>
    %311 = arith.mulf %305, %309 : vector<2x32xf32>
    %312 = arith.addf %310, %311 : vector<2x32xf32>
    %313 = math.tanh %312 : vector<2x32xf32>
    %314 = arith.mulf %307, %313 : vector<2x32xf32>
    %315 = vector.extract_strided_slice %18 {offsets = [0, 0], sizes = [2, 128], strides = [1, 1]} : vector<16x128xf32> to vector<2x128xf32>
    %cst_80 = arith.constant dense<0.000000e+00> : vector<2x128xf32>
    %316 = tpu.matmul %294, %22, %cst_80 {dimension_numbers = #tpu.dot_dimension_numbers<[1], [0], [0], [1], [0, 0, 1, 1], [], []>} : vector<2x32xf32>, vector<32x128xf32>, vector<2x128xf32> -> vector<2x128xf32>
    %317 = arith.addf %315, %316 : vector<2x128xf32>
    %318 = arith.negf %317 : vector<2x128xf32>
    %319 = math.exp %318 : vector<2x128xf32>
    %cst_81 = arith.constant 1.000000e+00 : f32
    %320 = vector.broadcast %cst_81 : f32 to vector<2x128xf32>
    %321 = arith.addf %320, %319 : vector<2x128xf32>
    %322 = arith.divf %320, %321 : vector<2x128xf32>
    %323 = vector.extract_strided_slice %322 {offsets = [0, 0], sizes = [2, 32], strides = [1, 1]} : vector<2x128xf32> to vector<2x32xf32>
    %324 = vector.extract_strided_slice %322 {offsets = [0, 32], sizes = [2, 32], strides = [1, 1]} : vector<2x128xf32> to vector<2x32xf32>
    %325 = vector.extract_strided_slice %322 {offsets = [0, 96], sizes = [2, 32], strides = [1, 1]} : vector<2x128xf32> to vector<2x32xf32>
    %326 = vector.extract_strided_slice %317 {offsets = [0, 64], sizes = [2, 32], strides = [1, 1]} : vector<2x128xf32> to vector<2x32xf32>
    %327 = math.tanh %326 : vector<2x32xf32>
    %328 = arith.mulf %324, %292 : vector<2x32xf32>
    %329 = arith.mulf %323, %327 : vector<2x32xf32>
    %330 = arith.addf %328, %329 : vector<2x32xf32>
    %331 = math.tanh %330 : vector<2x32xf32>
    %332 = arith.mulf %325, %331 : vector<2x32xf32>
    %c14_82 = arith.constant 14 : index
    %c0_83 = arith.constant 0 : index
    %333 = vector.load %arg9[%c14_82, %c0_83] : memref<16x32xf32, #tpu.memory_space<vmem>>, vector<2x32xf32>
    tpu.vector_store %arg9[%c14_82, %c0_83], %314 {strides = array<i32>} : memref<16x32xf32, #tpu.memory_space<vmem>>, vector<2x32xf32>,
    %c0_84 = arith.constant 0 : index
    %c0_85 = arith.constant 0 : index
    %334 = vector.load %arg10[%c0_84, %c0_85] : memref<16x32xf32, #tpu.memory_space<vmem>>, vector<2x32xf32>
    tpu.vector_store %arg10[%c0_84, %c0_85], %332 {strides = array<i32>} : memref<16x32xf32, #tpu.memory_space<vmem>>, vector<2x32xf32>,
    %c0_86 = arith.constant 0 : index
    %c0_87 = arith.constant 0 : index
    %c0_88 = arith.constant 0 : index
    %335 = vector.load %arg7[%c0_86, %c0_87, %c0_88] : memref<4x2x32xf32, #tpu.memory_space<vmem>>, vector<1x2x32xf32>
    %336 = vector.shape_cast %335 : vector<1x2x32xf32> to vector<2x32xf32>
    %337 = vector.shape_cast %314 : vector<2x32xf32> to vector<1x2x32xf32>
    tpu.vector_store %arg7[%c0_86, %c0_87, %c0_88], %337 {strides = array<i32>} : memref<4x2x32xf32, #tpu.memory_space<vmem>>, vector<1x2x32xf32>,
    %c0_89 = arith.constant 0 : index
    %c0_90 = arith.constant 0 : index
    %c0_91 = arith.constant 0 : index
    %338 = vector.load %arg8[%c0_89, %c0_90, %c0_91] : memref<4x2x32xf32, #tpu.memory_space<vmem>>, vector<1x2x32xf32>
    %339 = vector.shape_cast %338 : vector<1x2x32xf32> to vector<2x32xf32>
    %340 = vector.shape_cast %312 : vector<2x32xf32> to vector<1x2x32xf32>
    tpu.vector_store %arg8[%c0_89, %c0_90, %c0_91], %340 {strides = array<i32>} : memref<4x2x32xf32, #tpu.memory_space<vmem>>, vector<1x2x32xf32>,
    %c1_92 = arith.constant 1 : index
    %c0_93 = arith.constant 0 : index
    %c0_94 = arith.constant 0 : index
    %341 = vector.load %arg7[%c1_92, %c0_93, %c0_94] : memref<4x2x32xf32, #tpu.memory_space<vmem>>, vector<1x2x32xf32>
    %342 = vector.shape_cast %341 : vector<1x2x32xf32> to vector<2x32xf32>
    %343 = vector.shape_cast %332 : vector<2x32xf32> to vector<1x2x32xf32>
    tpu.vector_store %arg7[%c1_92, %c0_93, %c0_94], %343 {strides = array<i32>} : memref<4x2x32xf32, #tpu.memory_space<vmem>>, vector<1x2x32xf32>,
    %c1_95 = arith.constant 1 : index
    %c0_96 = arith.constant 0 : index
    %c0_97 = arith.constant 0 : index
    %344 = vector.load %arg8[%c1_95, %c0_96, %c0_97] : memref<4x2x32xf32, #tpu.memory_space<vmem>>, vector<1x2x32xf32>
    %345 = vector.shape_cast %344 : vector<1x2x32xf32> to vector<2x32xf32>
    %346 = vector.shape_cast %330 : vector<2x32xf32> to vector<1x2x32xf32>
    tpu.vector_store %arg8[%c1_95, %c0_96, %c0_97], %346 {strides = array<i32>} : memref<4x2x32xf32, #tpu.memory_space<vmem>>, vector<1x2x32xf32>,
    %c2_98 = arith.constant 2 : index
    %c0_99 = arith.constant 0 : index
    %c0_100 = arith.constant 0 : index
    %347 = vector.load %arg4[%c2_98, %c0_99, %c0_100] : memref<4x1x128xf32, #tpu.memory_space<vmem>>, vector<1x1x128xf32>
    %348 = vector.shape_cast %347 : vector<1x1x128xf32> to vector<1x128xf32>
    %c3 = arith.constant 3 : index
    %c0_101 = arith.constant 0 : index
    %c0_102 = arith.constant 0 : index
    %349 = vector.load %arg4[%c3, %c0_101, %c0_102] : memref<4x1x128xf32, #tpu.memory_space<vmem>>, vector<1x1x128xf32>
    %350 = vector.shape_cast %349 : vector<1x1x128xf32> to vector<1x128xf32>
    %c0_103 = arith.constant 0 : index
    %c0_104 = arith.constant 0 : index
    %351 = vector.load %arg9[%c0_103, %c0_104] : memref<16x32xf32, #tpu.memory_space<vmem>>, vector<16x32xf32>
    %c0_105 = arith.constant 0 : index
    %c0_106 = arith.constant 0 : index
    %352 = vector.load %arg10[%c0_105, %c0_106] : memref<16x32xf32, #tpu.memory_space<vmem>>, vector<16x32xf32>
    %c0_107 = arith.constant 0 : index
    %c0_108 = arith.constant 0 : index
    %c0_109 = arith.constant 0 : index
    %353 = vector.load %arg2[%c0_107, %c0_108, %c0_109] : memref<2x64x128xf32, #tpu.memory_space<vmem>>, vector<1x64x128xf32>
    %354 = vector.shape_cast %353 : vector<1x64x128xf32> to vector<64x128xf32>
    %c1_110 = arith.constant 1 : index
    %c0_111 = arith.constant 0 : index
    %c0_112 = arith.constant 0 : index
    %355 = vector.load %arg2[%c1_110, %c0_111, %c0_112] : memref<2x64x128xf32, #tpu.memory_space<vmem>>, vector<1x64x128xf32>
    %356 = vector.shape_cast %355 : vector<1x64x128xf32> to vector<64x128xf32>
    %357 = vector.extract_strided_slice %354 {offsets = [0, 0], sizes = [32, 128], strides = [1, 1]} : vector<64x128xf32> to vector<32x128xf32>
    %cst_113 = arith.constant dense<0.000000e+00> : vector<16x128xf32>
    %358 = tpu.matmul %351, %357, %cst_113 {dimension_numbers = #tpu.dot_dimension_numbers<[1], [0], [0], [1], [0, 0, 1, 1], [], []>} : vector<16x32xf32>, vector<32x128xf32>, vector<16x128xf32> -> vector<16x128xf32>
    %359 = vector.extract_strided_slice %354 {offsets = [32, 0], sizes = [32, 128], strides = [1, 1]} : vector<64x128xf32> to vector<32x128xf32>
    %cst_114 = arith.constant dense<0.000000e+00> : vector<16x128xf32>
    %360 = tpu.matmul %352, %359, %cst_114 {dimension_numbers = #tpu.dot_dimension_numbers<[1], [0], [0], [1], [0, 0, 1, 1], [], []>} : vector<16x32xf32>, vector<32x128xf32>, vector<16x128xf32> -> vector<16x128xf32>
    %361 = arith.addf %358, %360 : vector<16x128xf32>
    %362 = vector.broadcast %348 : vector<1x128xf32> to vector<16x128xf32>
    %363 = arith.addf %361, %362 : vector<16x128xf32>
    %364 = vector.extract_strided_slice %356 {offsets = [0, 0], sizes = [32, 128], strides = [1, 1]} : vector<64x128xf32> to vector<32x128xf32>
    %cst_115 = arith.constant dense<0.000000e+00> : vector<16x128xf32>
    %365 = tpu.matmul %351, %364, %cst_115 {dimension_numbers = #tpu.dot_dimension_numbers<[1], [0], [0], [1], [0, 0, 1, 1], [], []>} : vector<16x32xf32>, vector<32x128xf32>, vector<16x128xf32> -> vector<16x128xf32>
    %366 = vector.extract_strided_slice %356 {offsets = [32, 0], sizes = [32, 128], strides = [1, 1]} : vector<64x128xf32> to vector<32x128xf32>
    %cst_116 = arith.constant dense<0.000000e+00> : vector<16x128xf32>
    %367 = tpu.matmul %352, %366, %cst_116 {dimension_numbers = #tpu.dot_dimension_numbers<[1], [0], [0], [1], [0, 0, 1, 1], [], []>} : vector<16x32xf32>, vector<32x128xf32>, vector<16x128xf32> -> vector<16x128xf32>
    %368 = arith.addf %365, %367 : vector<16x128xf32>
    %369 = vector.broadcast %350 : vector<1x128xf32> to vector<16x128xf32>
    %370 = arith.addf %368, %369 : vector<16x128xf32>
    %c2_117 = arith.constant 2 : index
    %c0_118 = arith.constant 0 : index
    %c0_119 = arith.constant 0 : index
    %371 = vector.load %arg3[%c2_117, %c0_118, %c0_119] : memref<4x32x128xf32, #tpu.memory_space<vmem>>, vector<1x32x128xf32>
    %372 = vector.shape_cast %371 : vector<1x32x128xf32> to vector<32x128xf32>
    %c3_120 = arith.constant 3 : index
    %c0_121 = arith.constant 0 : index
    %c0_122 = arith.constant 0 : index
    %373 = vector.load %arg3[%c3_120, %c0_121, %c0_122] : memref<4x32x128xf32, #tpu.memory_space<vmem>>, vector<1x32x128xf32>
    %374 = vector.shape_cast %373 : vector<1x32x128xf32> to vector<32x128xf32>
    %c2_123 = arith.constant 2 : index
    %c0_124 = arith.constant 0 : index
    %c0_125 = arith.constant 0 : index
    %375 = vector.load %arg5[%c2_123, %c0_124, %c0_125] : memref<4x2x32xf32, #tpu.memory_space<vmem>>, vector<1x2x32xf32>
    %376 = vector.shape_cast %375 : vector<1x2x32xf32> to vector<2x32xf32>
    %c2_126 = arith.constant 2 : index
    %c0_127 = arith.constant 0 : index
    %c0_128 = arith.constant 0 : index
    %377 = vector.load %arg6[%c2_126, %c0_127, %c0_128] : memref<4x2x32xf32, #tpu.memory_space<vmem>>, vector<1x2x32xf32>
    %378 = vector.shape_cast %377 : vector<1x2x32xf32> to vector<2x32xf32>
    %c3_129 = arith.constant 3 : index
    %c0_130 = arith.constant 0 : index
    %c0_131 = arith.constant 0 : index
    %379 = vector.load %arg5[%c3_129, %c0_130, %c0_131] : memref<4x2x32xf32, #tpu.memory_space<vmem>>, vector<1x2x32xf32>
    %380 = vector.shape_cast %379 : vector<1x2x32xf32> to vector<2x32xf32>
    %c3_132 = arith.constant 3 : index
    %c0_133 = arith.constant 0 : index
    %c0_134 = arith.constant 0 : index
    %381 = vector.load %arg6[%c3_132, %c0_133, %c0_134] : memref<4x2x32xf32, #tpu.memory_space<vmem>>, vector<1x2x32xf32>
    %382 = vector.shape_cast %381 : vector<1x2x32xf32> to vector<2x32xf32>
    %383 = vector.extract_strided_slice %363 {offsets = [0, 0], sizes = [2, 128], strides = [1, 1]} : vector<16x128xf32> to vector<2x128xf32>
    %cst_135 = arith.constant dense<0.000000e+00> : vector<2x128xf32>
    %384 = tpu.matmul %376, %372, %cst_135 {dimension_numbers = #tpu.dot_dimension_numbers<[1], [0], [0], [1], [0, 0, 1, 1], [], []>} : vector<2x32xf32>, vector<32x128xf32>, vector<2x128xf32> -> vector<2x128xf32>
    %385 = arith.addf %383, %384 : vector<2x128xf32>
    %386 = arith.negf %385 : vector<2x128xf32>
    %387 = math.exp %386 : vector<2x128xf32>
    %cst_136 = arith.constant 1.000000e+00 : f32
    %388 = vector.broadcast %cst_136 : f32 to vector<2x128xf32>
    %389 = arith.addf %388, %387 : vector<2x128xf32>
    %390 = arith.divf %388, %389 : vector<2x128xf32>
    %391 = vector.extract_strided_slice %390 {offsets = [0, 0], sizes = [2, 32], strides = [1, 1]} : vector<2x128xf32> to vector<2x32xf32>
    %392 = vector.extract_strided_slice %390 {offsets = [0, 32], sizes = [2, 32], strides = [1, 1]} : vector<2x128xf32> to vector<2x32xf32>
    %393 = vector.extract_strided_slice %390 {offsets = [0, 96], sizes = [2, 32], strides = [1, 1]} : vector<2x128xf32> to vector<2x32xf32>
    %394 = vector.extract_strided_slice %385 {offsets = [0, 64], sizes = [2, 32], strides = [1, 1]} : vector<2x128xf32> to vector<2x32xf32>
    %395 = math.tanh %394 : vector<2x32xf32>
    %396 = arith.mulf %392, %378 : vector<2x32xf32>
    %397 = arith.mulf %391, %395 : vector<2x32xf32>
    %398 = arith.addf %396, %397 : vector<2x32xf32>
    %399 = math.tanh %398 : vector<2x32xf32>
    %400 = arith.mulf %393, %399 : vector<2x32xf32>
    %401 = vector.extract_strided_slice %370 {offsets = [14, 0], sizes = [2, 128], strides = [1, 1]} : vector<16x128xf32> to vector<2x128xf32>
    %cst_137 = arith.constant dense<0.000000e+00> : vector<2x128xf32>
    %402 = tpu.matmul %380, %374, %cst_137 {dimension_numbers = #tpu.dot_dimension_numbers<[1], [0], [0], [1], [0, 0, 1, 1], [], []>} : vector<2x32xf32>, vector<32x128xf32>, vector<2x128xf32> -> vector<2x128xf32>
    %403 = arith.addf %401, %402 : vector<2x128xf32>
    %404 = arith.negf %403 : vector<2x128xf32>
    %405 = math.exp %404 : vector<2x128xf32>
    %cst_138 = arith.constant 1.000000e+00 : f32
    %406 = vector.broadcast %cst_138 : f32 to vector<2x128xf32>
    %407 = arith.addf %406, %405 : vector<2x128xf32>
    %408 = arith.divf %406, %407 : vector<2x128xf32>
    %409 = vector.extract_strided_slice %408 {offsets = [0, 0], sizes = [2, 32], strides = [1, 1]} : vector<2x128xf32> to vector<2x32xf32>
    %410 = vector.extract_strided_slice %408 {offsets = [0, 32], sizes = [2, 32], strides = [1, 1]} : vector<2x128xf32> to vector<2x32xf32>
    %411 = vector.extract_strided_slice %408 {offsets = [0, 96], sizes = [2, 32], strides = [1, 1]} : vector<2x128xf32> to vector<2x32xf32>
    %412 = vector.extract_strided_slice %403 {offsets = [0, 64], sizes = [2, 32], strides = [1, 1]} : vector<2x128xf32> to vector<2x32xf32>
    %413 = math.tanh %412 : vector<2x32xf32>
    %414 = arith.mulf %410, %382 : vector<2x32xf32>
    %415 = arith.mulf %409, %413 : vector<2x32xf32>
    %416 = arith.addf %414, %415 : vector<2x32xf32>
    %417 = math.tanh %416 : vector<2x32xf32>
    %418 = arith.mulf %411, %417 : vector<2x32xf32>
    %419 = vector.extract_strided_slice %363 {offsets = [2, 0], sizes = [2, 128], strides = [1, 1]} : vector<16x128xf32> to vector<2x128xf32>
    %cst_139 = arith.constant dense<0.000000e+00> : vector<2x128xf32>
    %420 = tpu.matmul %400, %372, %cst_139 {dimension_numbers = #tpu.dot_dimension_numbers<[1], [0], [0], [1], [0, 0, 1, 1], [], []>} : vector<2x32xf32>, vector<32x128xf32>, vector<2x128xf32> -> vector<2x128xf32>
    %421 = arith.addf %419, %420 : vector<2x128xf32>
    %422 = arith.negf %421 : vector<2x128xf32>
    %423 = math.exp %422 : vector<2x128xf32>
    %cst_140 = arith.constant 1.000000e+00 : f32
    %424 = vector.broadcast %cst_140 : f32 to vector<2x128xf32>
    %425 = arith.addf %424, %423 : vector<2x128xf32>
    %426 = arith.divf %424, %425 : vector<2x128xf32>
    %427 = vector.extract_strided_slice %426 {offsets = [0, 0], sizes = [2, 32], strides = [1, 1]} : vector<2x128xf32> to vector<2x32xf32>
    %428 = vector.extract_strided_slice %426 {offsets = [0, 32], sizes = [2, 32], strides = [1, 1]} : vector<2x128xf32> to vector<2x32xf32>
    %429 = vector.extract_strided_slice %426 {offsets = [0, 96], sizes = [2, 32], strides = [1, 1]} : vector<2x128xf32> to vector<2x32xf32>
    %430 = vector.extract_strided_slice %421 {offsets = [0, 64], sizes = [2, 32], strides = [1, 1]} : vector<2x128xf32> to vector<2x32xf32>
    %431 = math.tanh %430 : vector<2x32xf32>
    %432 = arith.mulf %428, %398 : vector<2x32xf32>
    %433 = arith.mulf %427, %431 : vector<2x32xf32>
    %434 = arith.addf %432, %433 : vector<2x32xf32>
    %435 = math.tanh %434 : vector<2x32xf32>
    %436 = arith.mulf %429, %435 : vector<2x32xf32>
    %437 = vector.extract_strided_slice %370 {offsets = [12, 0], sizes = [2, 128], strides = [1, 1]} : vector<16x128xf32> to vector<2x128xf32>
    %cst_141 = arith.constant dense<0.000000e+00> : vector<2x128xf32>
    %438 = tpu.matmul %418, %374, %cst_141 {dimension_numbers = #tpu.dot_dimension_numbers<[1], [0], [0], [1], [0, 0, 1, 1], [], []>} : vector<2x32xf32>, vector<32x128xf32>, vector<2x128xf32> -> vector<2x128xf32>
    %439 = arith.addf %437, %438 : vector<2x128xf32>
    %440 = arith.negf %439 : vector<2x128xf32>
    %441 = math.exp %440 : vector<2x128xf32>
    %cst_142 = arith.constant 1.000000e+00 : f32
    %442 = vector.broadcast %cst_142 : f32 to vector<2x128xf32>
    %443 = arith.addf %442, %441 : vector<2x128xf32>
    %444 = arith.divf %442, %443 : vector<2x128xf32>
    %445 = vector.extract_strided_slice %444 {offsets = [0, 0], sizes = [2, 32], strides = [1, 1]} : vector<2x128xf32> to vector<2x32xf32>
    %446 = vector.extract_strided_slice %444 {offsets = [0, 32], sizes = [2, 32], strides = [1, 1]} : vector<2x128xf32> to vector<2x32xf32>
    %447 = vector.extract_strided_slice %444 {offsets = [0, 96], sizes = [2, 32], strides = [1, 1]} : vector<2x128xf32> to vector<2x32xf32>
    %448 = vector.extract_strided_slice %439 {offsets = [0, 64], sizes = [2, 32], strides = [1, 1]} : vector<2x128xf32> to vector<2x32xf32>
    %449 = math.tanh %448 : vector<2x32xf32>
    %450 = arith.mulf %446, %416 : vector<2x32xf32>
    %451 = arith.mulf %445, %449 : vector<2x32xf32>
    %452 = arith.addf %450, %451 : vector<2x32xf32>
    %453 = math.tanh %452 : vector<2x32xf32>
    %454 = arith.mulf %447, %453 : vector<2x32xf32>
    %455 = vector.extract_strided_slice %363 {offsets = [4, 0], sizes = [2, 128], strides = [1, 1]} : vector<16x128xf32> to vector<2x128xf32>
    %cst_143 = arith.constant dense<0.000000e+00> : vector<2x128xf32>
    %456 = tpu.matmul %436, %372, %cst_143 {dimension_numbers = #tpu.dot_dimension_numbers<[1], [0], [0], [1], [0, 0, 1, 1], [], []>} : vector<2x32xf32>, vector<32x128xf32>, vector<2x128xf32> -> vector<2x128xf32>
    %457 = arith.addf %455, %456 : vector<2x128xf32>
    %458 = arith.negf %457 : vector<2x128xf32>
    %459 = math.exp %458 : vector<2x128xf32>
    %cst_144 = arith.constant 1.000000e+00 : f32
    %460 = vector.broadcast %cst_144 : f32 to vector<2x128xf32>
    %461 = arith.addf %460, %459 : vector<2x128xf32>
    %462 = arith.divf %460, %461 : vector<2x128xf32>
    %463 = vector.extract_strided_slice %462 {offsets = [0, 0], sizes = [2, 32], strides = [1, 1]} : vector<2x128xf32> to vector<2x32xf32>
    %464 = vector.extract_strided_slice %462 {offsets = [0, 32], sizes = [2, 32], strides = [1, 1]} : vector<2x128xf32> to vector<2x32xf32>
    %465 = vector.extract_strided_slice %462 {offsets = [0, 96], sizes = [2, 32], strides = [1, 1]} : vector<2x128xf32> to vector<2x32xf32>
    %466 = vector.extract_strided_slice %457 {offsets = [0, 64], sizes = [2, 32], strides = [1, 1]} : vector<2x128xf32> to vector<2x32xf32>
    %467 = math.tanh %466 : vector<2x32xf32>
    %468 = arith.mulf %464, %434 : vector<2x32xf32>
    %469 = arith.mulf %463, %467 : vector<2x32xf32>
    %470 = arith.addf %468, %469 : vector<2x32xf32>
    %471 = math.tanh %470 : vector<2x32xf32>
    %472 = arith.mulf %465, %471 : vector<2x32xf32>
    %473 = vector.extract_strided_slice %370 {offsets = [10, 0], sizes = [2, 128], strides = [1, 1]} : vector<16x128xf32> to vector<2x128xf32>
    %cst_145 = arith.constant dense<0.000000e+00> : vector<2x128xf32>
    %474 = tpu.matmul %454, %374, %cst_145 {dimension_numbers = #tpu.dot_dimension_numbers<[1], [0], [0], [1], [0, 0, 1, 1], [], []>} : vector<2x32xf32>, vector<32x128xf32>, vector<2x128xf32> -> vector<2x128xf32>
    %475 = arith.addf %473, %474 : vector<2x128xf32>
    %476 = arith.negf %475 : vector<2x128xf32>
    %477 = math.exp %476 : vector<2x128xf32>
    %cst_146 = arith.constant 1.000000e+00 : f32
    %478 = vector.broadcast %cst_146 : f32 to vector<2x128xf32>
    %479 = arith.addf %478, %477 : vector<2x128xf32>
    %480 = arith.divf %478, %479 : vector<2x128xf32>
    %481 = vector.extract_strided_slice %480 {offsets = [0, 0], sizes = [2, 32], strides = [1, 1]} : vector<2x128xf32> to vector<2x32xf32>
    %482 = vector.extract_strided_slice %480 {offsets = [0, 32], sizes = [2, 32], strides = [1, 1]} : vector<2x128xf32> to vector<2x32xf32>
    %483 = vector.extract_strided_slice %480 {offsets = [0, 96], sizes = [2, 32], strides = [1, 1]} : vector<2x128xf32> to vector<2x32xf32>
    %484 = vector.extract_strided_slice %475 {offsets = [0, 64], sizes = [2, 32], strides = [1, 1]} : vector<2x128xf32> to vector<2x32xf32>
    %485 = math.tanh %484 : vector<2x32xf32>
    %486 = arith.mulf %482, %452 : vector<2x32xf32>
    %487 = arith.mulf %481, %485 : vector<2x32xf32>
    %488 = arith.addf %486, %487 : vector<2x32xf32>
    %489 = math.tanh %488 : vector<2x32xf32>
    %490 = arith.mulf %483, %489 : vector<2x32xf32>
    %491 = vector.extract_strided_slice %363 {offsets = [6, 0], sizes = [2, 128], strides = [1, 1]} : vector<16x128xf32> to vector<2x128xf32>
    %cst_147 = arith.constant dense<0.000000e+00> : vector<2x128xf32>
    %492 = tpu.matmul %472, %372, %cst_147 {dimension_numbers = #tpu.dot_dimension_numbers<[1], [0], [0], [1], [0, 0, 1, 1], [], []>} : vector<2x32xf32>, vector<32x128xf32>, vector<2x128xf32> -> vector<2x128xf32>
    %493 = arith.addf %491, %492 : vector<2x128xf32>
    %494 = arith.negf %493 : vector<2x128xf32>
    %495 = math.exp %494 : vector<2x128xf32>
    %cst_148 = arith.constant 1.000000e+00 : f32
    %496 = vector.broadcast %cst_148 : f32 to vector<2x128xf32>
    %497 = arith.addf %496, %495 : vector<2x128xf32>
    %498 = arith.divf %496, %497 : vector<2x128xf32>
    %499 = vector.extract_strided_slice %498 {offsets = [0, 0], sizes = [2, 32], strides = [1, 1]} : vector<2x128xf32> to vector<2x32xf32>
    %500 = vector.extract_strided_slice %498 {offsets = [0, 32], sizes = [2, 32], strides = [1, 1]} : vector<2x128xf32> to vector<2x32xf32>
    %501 = vector.extract_strided_slice %498 {offsets = [0, 96], sizes = [2, 32], strides = [1, 1]} : vector<2x128xf32> to vector<2x32xf32>
    %502 = vector.extract_strided_slice %493 {offsets = [0, 64], sizes = [2, 32], strides = [1, 1]} : vector<2x128xf32> to vector<2x32xf32>
    %503 = math.tanh %502 : vector<2x32xf32>
    %504 = arith.mulf %500, %470 : vector<2x32xf32>
    %505 = arith.mulf %499, %503 : vector<2x32xf32>
    %506 = arith.addf %504, %505 : vector<2x32xf32>
    %507 = math.tanh %506 : vector<2x32xf32>
    %508 = arith.mulf %501, %507 : vector<2x32xf32>
    %509 = vector.extract_strided_slice %370 {offsets = [8, 0], sizes = [2, 128], strides = [1, 1]} : vector<16x128xf32> to vector<2x128xf32>
    %cst_149 = arith.constant dense<0.000000e+00> : vector<2x128xf32>
    %510 = tpu.matmul %490, %374, %cst_149 {dimension_numbers = #tpu.dot_dimension_numbers<[1], [0], [0], [1], [0, 0, 1, 1], [], []>} : vector<2x32xf32>, vector<32x128xf32>, vector<2x128xf32> -> vector<2x128xf32>
    %511 = arith.addf %509, %510 : vector<2x128xf32>
    %512 = arith.negf %511 : vector<2x128xf32>
    %513 = math.exp %512 : vector<2x128xf32>
    %cst_150 = arith.constant 1.000000e+00 : f32
    %514 = vector.broadcast %cst_150 : f32 to vector<2x128xf32>
    %515 = arith.addf %514, %513 : vector<2x128xf32>
    %516 = arith.divf %514, %515 : vector<2x128xf32>
    %517 = vector.extract_strided_slice %516 {offsets = [0, 0], sizes = [2, 32], strides = [1, 1]} : vector<2x128xf32> to vector<2x32xf32>
    %518 = vector.extract_strided_slice %516 {offsets = [0, 32], sizes = [2, 32], strides = [1, 1]} : vector<2x128xf32> to vector<2x32xf32>
    %519 = vector.extract_strided_slice %516 {offsets = [0, 96], sizes = [2, 32], strides = [1, 1]} : vector<2x128xf32> to vector<2x32xf32>
    %520 = vector.extract_strided_slice %511 {offsets = [0, 64], sizes = [2, 32], strides = [1, 1]} : vector<2x128xf32> to vector<2x32xf32>
    %521 = math.tanh %520 : vector<2x32xf32>
    %522 = arith.mulf %518, %488 : vector<2x32xf32>
    %523 = arith.mulf %517, %521 : vector<2x32xf32>
    %524 = arith.addf %522, %523 : vector<2x32xf32>
    %525 = math.tanh %524 : vector<2x32xf32>
    %526 = arith.mulf %519, %525 : vector<2x32xf32>
    %527 = vector.extract_strided_slice %363 {offsets = [8, 0], sizes = [2, 128], strides = [1, 1]} : vector<16x128xf32> to vector<2x128xf32>
    %cst_151 = arith.constant dense<0.000000e+00> : vector<2x128xf32>
    %528 = tpu.matmul %508, %372, %cst_151 {dimension_numbers = #tpu.dot_dimension_numbers<[1], [0], [0], [1], [0, 0, 1, 1], [], []>} : vector<2x32xf32>, vector<32x128xf32>, vector<2x128xf32> -> vector<2x128xf32>
    %529 = arith.addf %527, %528 : vector<2x128xf32>
    %530 = arith.negf %529 : vector<2x128xf32>
    %531 = math.exp %530 : vector<2x128xf32>
    %cst_152 = arith.constant 1.000000e+00 : f32
    %532 = vector.broadcast %cst_152 : f32 to vector<2x128xf32>
    %533 = arith.addf %532, %531 : vector<2x128xf32>
    %534 = arith.divf %532, %533 : vector<2x128xf32>
    %535 = vector.extract_strided_slice %534 {offsets = [0, 0], sizes = [2, 32], strides = [1, 1]} : vector<2x128xf32> to vector<2x32xf32>
    %536 = vector.extract_strided_slice %534 {offsets = [0, 32], sizes = [2, 32], strides = [1, 1]} : vector<2x128xf32> to vector<2x32xf32>
    %537 = vector.extract_strided_slice %534 {offsets = [0, 96], sizes = [2, 32], strides = [1, 1]} : vector<2x128xf32> to vector<2x32xf32>
    %538 = vector.extract_strided_slice %529 {offsets = [0, 64], sizes = [2, 32], strides = [1, 1]} : vector<2x128xf32> to vector<2x32xf32>
    %539 = math.tanh %538 : vector<2x32xf32>
    %540 = arith.mulf %536, %506 : vector<2x32xf32>
    %541 = arith.mulf %535, %539 : vector<2x32xf32>
    %542 = arith.addf %540, %541 : vector<2x32xf32>
    %543 = math.tanh %542 : vector<2x32xf32>
    %544 = arith.mulf %537, %543 : vector<2x32xf32>
    %545 = vector.extract_strided_slice %370 {offsets = [6, 0], sizes = [2, 128], strides = [1, 1]} : vector<16x128xf32> to vector<2x128xf32>
    %cst_153 = arith.constant dense<0.000000e+00> : vector<2x128xf32>
    %546 = tpu.matmul %526, %374, %cst_153 {dimension_numbers = #tpu.dot_dimension_numbers<[1], [0], [0], [1], [0, 0, 1, 1], [], []>} : vector<2x32xf32>, vector<32x128xf32>, vector<2x128xf32> -> vector<2x128xf32>
    %547 = arith.addf %545, %546 : vector<2x128xf32>
    %548 = arith.negf %547 : vector<2x128xf32>
    %549 = math.exp %548 : vector<2x128xf32>
    %cst_154 = arith.constant 1.000000e+00 : f32
    %550 = vector.broadcast %cst_154 : f32 to vector<2x128xf32>
    %551 = arith.addf %550, %549 : vector<2x128xf32>
    %552 = arith.divf %550, %551 : vector<2x128xf32>
    %553 = vector.extract_strided_slice %552 {offsets = [0, 0], sizes = [2, 32], strides = [1, 1]} : vector<2x128xf32> to vector<2x32xf32>
    %554 = vector.extract_strided_slice %552 {offsets = [0, 32], sizes = [2, 32], strides = [1, 1]} : vector<2x128xf32> to vector<2x32xf32>
    %555 = vector.extract_strided_slice %552 {offsets = [0, 96], sizes = [2, 32], strides = [1, 1]} : vector<2x128xf32> to vector<2x32xf32>
    %556 = vector.extract_strided_slice %547 {offsets = [0, 64], sizes = [2, 32], strides = [1, 1]} : vector<2x128xf32> to vector<2x32xf32>
    %557 = math.tanh %556 : vector<2x32xf32>
    %558 = arith.mulf %554, %524 : vector<2x32xf32>
    %559 = arith.mulf %553, %557 : vector<2x32xf32>
    %560 = arith.addf %558, %559 : vector<2x32xf32>
    %561 = math.tanh %560 : vector<2x32xf32>
    %562 = arith.mulf %555, %561 : vector<2x32xf32>
    %563 = vector.extract_strided_slice %363 {offsets = [10, 0], sizes = [2, 128], strides = [1, 1]} : vector<16x128xf32> to vector<2x128xf32>
    %cst_155 = arith.constant dense<0.000000e+00> : vector<2x128xf32>
    %564 = tpu.matmul %544, %372, %cst_155 {dimension_numbers = #tpu.dot_dimension_numbers<[1], [0], [0], [1], [0, 0, 1, 1], [], []>} : vector<2x32xf32>, vector<32x128xf32>, vector<2x128xf32> -> vector<2x128xf32>
    %565 = arith.addf %563, %564 : vector<2x128xf32>
    %566 = arith.negf %565 : vector<2x128xf32>
    %567 = math.exp %566 : vector<2x128xf32>
    %cst_156 = arith.constant 1.000000e+00 : f32
    %568 = vector.broadcast %cst_156 : f32 to vector<2x128xf32>
    %569 = arith.addf %568, %567 : vector<2x128xf32>
    %570 = arith.divf %568, %569 : vector<2x128xf32>
    %571 = vector.extract_strided_slice %570 {offsets = [0, 0], sizes = [2, 32], strides = [1, 1]} : vector<2x128xf32> to vector<2x32xf32>
    %572 = vector.extract_strided_slice %570 {offsets = [0, 32], sizes = [2, 32], strides = [1, 1]} : vector<2x128xf32> to vector<2x32xf32>
    %573 = vector.extract_strided_slice %570 {offsets = [0, 96], sizes = [2, 32], strides = [1, 1]} : vector<2x128xf32> to vector<2x32xf32>
    %574 = vector.extract_strided_slice %565 {offsets = [0, 64], sizes = [2, 32], strides = [1, 1]} : vector<2x128xf32> to vector<2x32xf32>
    %575 = math.tanh %574 : vector<2x32xf32>
    %576 = arith.mulf %572, %542 : vector<2x32xf32>
    %577 = arith.mulf %571, %575 : vector<2x32xf32>
    %578 = arith.addf %576, %577 : vector<2x32xf32>
    %579 = math.tanh %578 : vector<2x32xf32>
    %580 = arith.mulf %573, %579 : vector<2x32xf32>
    %581 = vector.extract_strided_slice %370 {offsets = [4, 0], sizes = [2, 128], strides = [1, 1]} : vector<16x128xf32> to vector<2x128xf32>
    %cst_157 = arith.constant dense<0.000000e+00> : vector<2x128xf32>
    %582 = tpu.matmul %562, %374, %cst_157 {dimension_numbers = #tpu.dot_dimension_numbers<[1], [0], [0], [1], [0, 0, 1, 1], [], []>} : vector<2x32xf32>, vector<32x128xf32>, vector<2x128xf32> -> vector<2x128xf32>
    %583 = arith.addf %581, %582 : vector<2x128xf32>
    %584 = arith.negf %583 : vector<2x128xf32>
    %585 = math.exp %584 : vector<2x128xf32>
    %cst_158 = arith.constant 1.000000e+00 : f32
    %586 = vector.broadcast %cst_158 : f32 to vector<2x128xf32>
    %587 = arith.addf %586, %585 : vector<2x128xf32>
    %588 = arith.divf %586, %587 : vector<2x128xf32>
    %589 = vector.extract_strided_slice %588 {offsets = [0, 0], sizes = [2, 32], strides = [1, 1]} : vector<2x128xf32> to vector<2x32xf32>
    %590 = vector.extract_strided_slice %588 {offsets = [0, 32], sizes = [2, 32], strides = [1, 1]} : vector<2x128xf32> to vector<2x32xf32>
    %591 = vector.extract_strided_slice %588 {offsets = [0, 96], sizes = [2, 32], strides = [1, 1]} : vector<2x128xf32> to vector<2x32xf32>
    %592 = vector.extract_strided_slice %583 {offsets = [0, 64], sizes = [2, 32], strides = [1, 1]} : vector<2x128xf32> to vector<2x32xf32>
    %593 = math.tanh %592 : vector<2x32xf32>
    %594 = arith.mulf %590, %560 : vector<2x32xf32>
    %595 = arith.mulf %589, %593 : vector<2x32xf32>
    %596 = arith.addf %594, %595 : vector<2x32xf32>
    %597 = math.tanh %596 : vector<2x32xf32>
    %598 = arith.mulf %591, %597 : vector<2x32xf32>
    %599 = vector.extract_strided_slice %363 {offsets = [12, 0], sizes = [2, 128], strides = [1, 1]} : vector<16x128xf32> to vector<2x128xf32>
    %cst_159 = arith.constant dense<0.000000e+00> : vector<2x128xf32>
    %600 = tpu.matmul %580, %372, %cst_159 {dimension_numbers = #tpu.dot_dimension_numbers<[1], [0], [0], [1], [0, 0, 1, 1], [], []>} : vector<2x32xf32>, vector<32x128xf32>, vector<2x128xf32> -> vector<2x128xf32>
    %601 = arith.addf %599, %600 : vector<2x128xf32>
    %602 = arith.negf %601 : vector<2x128xf32>
    %603 = math.exp %602 : vector<2x128xf32>
    %cst_160 = arith.constant 1.000000e+00 : f32
    %604 = vector.broadcast %cst_160 : f32 to vector<2x128xf32>
    %605 = arith.addf %604, %603 : vector<2x128xf32>
    %606 = arith.divf %604, %605 : vector<2x128xf32>
    %607 = vector.extract_strided_slice %606 {offsets = [0, 0], sizes = [2, 32], strides = [1, 1]} : vector<2x128xf32> to vector<2x32xf32>
    %608 = vector.extract_strided_slice %606 {offsets = [0, 32], sizes = [2, 32], strides = [1, 1]} : vector<2x128xf32> to vector<2x32xf32>
    %609 = vector.extract_strided_slice %606 {offsets = [0, 96], sizes = [2, 32], strides = [1, 1]} : vector<2x128xf32> to vector<2x32xf32>
    %610 = vector.extract_strided_slice %601 {offsets = [0, 64], sizes = [2, 32], strides = [1, 1]} : vector<2x128xf32> to vector<2x32xf32>
    %611 = math.tanh %610 : vector<2x32xf32>
    %612 = arith.mulf %608, %578 : vector<2x32xf32>
    %613 = arith.mulf %607, %611 : vector<2x32xf32>
    %614 = arith.addf %612, %613 : vector<2x32xf32>
    %615 = math.tanh %614 : vector<2x32xf32>
    %616 = arith.mulf %609, %615 : vector<2x32xf32>
    %617 = vector.extract_strided_slice %370 {offsets = [2, 0], sizes = [2, 128], strides = [1, 1]} : vector<16x128xf32> to vector<2x128xf32>
    %cst_161 = arith.constant dense<0.000000e+00> : vector<2x128xf32>
    %618 = tpu.matmul %598, %374, %cst_161 {dimension_numbers = #tpu.dot_dimension_numbers<[1], [0], [0], [1], [0, 0, 1, 1], [], []>} : vector<2x32xf32>, vector<32x128xf32>, vector<2x128xf32> -> vector<2x128xf32>
    %619 = arith.addf %617, %618 : vector<2x128xf32>
    %620 = arith.negf %619 : vector<2x128xf32>
    %621 = math.exp %620 : vector<2x128xf32>
    %cst_162 = arith.constant 1.000000e+00 : f32
    %622 = vector.broadcast %cst_162 : f32 to vector<2x128xf32>
    %623 = arith.addf %622, %621 : vector<2x128xf32>
    %624 = arith.divf %622, %623 : vector<2x128xf32>
    %625 = vector.extract_strided_slice %624 {offsets = [0, 0], sizes = [2, 32], strides = [1, 1]} : vector<2x128xf32> to vector<2x32xf32>
    %626 = vector.extract_strided_slice %624 {offsets = [0, 32], sizes = [2, 32], strides = [1, 1]} : vector<2x128xf32> to vector<2x32xf32>
    %627 = vector.extract_strided_slice %624 {offsets = [0, 96], sizes = [2, 32], strides = [1, 1]} : vector<2x128xf32> to vector<2x32xf32>
    %628 = vector.extract_strided_slice %619 {offsets = [0, 64], sizes = [2, 32], strides = [1, 1]} : vector<2x128xf32> to vector<2x32xf32>
    %629 = math.tanh %628 : vector<2x32xf32>
    %630 = arith.mulf %626, %596 : vector<2x32xf32>
    %631 = arith.mulf %625, %629 : vector<2x32xf32>
    %632 = arith.addf %630, %631 : vector<2x32xf32>
    %633 = math.tanh %632 : vector<2x32xf32>
    %634 = arith.mulf %627, %633 : vector<2x32xf32>
    %635 = vector.extract_strided_slice %363 {offsets = [14, 0], sizes = [2, 128], strides = [1, 1]} : vector<16x128xf32> to vector<2x128xf32>
    %cst_163 = arith.constant dense<0.000000e+00> : vector<2x128xf32>
    %636 = tpu.matmul %616, %372, %cst_163 {dimension_numbers = #tpu.dot_dimension_numbers<[1], [0], [0], [1], [0, 0, 1, 1], [], []>} : vector<2x32xf32>, vector<32x128xf32>, vector<2x128xf32> -> vector<2x128xf32>
    %637 = arith.addf %635, %636 : vector<2x128xf32>
    %638 = arith.negf %637 : vector<2x128xf32>
    %639 = math.exp %638 : vector<2x128xf32>
    %cst_164 = arith.constant 1.000000e+00 : f32
    %640 = vector.broadcast %cst_164 : f32 to vector<2x128xf32>
    %641 = arith.addf %640, %639 : vector<2x128xf32>
    %642 = arith.divf %640, %641 : vector<2x128xf32>
    %643 = vector.extract_strided_slice %642 {offsets = [0, 0], sizes = [2, 32], strides = [1, 1]} : vector<2x128xf32> to vector<2x32xf32>
    %644 = vector.extract_strided_slice %642 {offsets = [0, 32], sizes = [2, 32], strides = [1, 1]} : vector<2x128xf32> to vector<2x32xf32>
    %645 = vector.extract_strided_slice %642 {offsets = [0, 96], sizes = [2, 32], strides = [1, 1]} : vector<2x128xf32> to vector<2x32xf32>
    %646 = vector.extract_strided_slice %637 {offsets = [0, 64], sizes = [2, 32], strides = [1, 1]} : vector<2x128xf32> to vector<2x32xf32>
    %647 = math.tanh %646 : vector<2x32xf32>
    %648 = arith.mulf %644, %614 : vector<2x32xf32>
    %649 = arith.mulf %643, %647 : vector<2x32xf32>
    %650 = arith.addf %648, %649 : vector<2x32xf32>
    %651 = math.tanh %650 : vector<2x32xf32>
    %652 = arith.mulf %645, %651 : vector<2x32xf32>
    %653 = vector.extract_strided_slice %370 {offsets = [0, 0], sizes = [2, 128], strides = [1, 1]} : vector<16x128xf32> to vector<2x128xf32>
    %cst_165 = arith.constant dense<0.000000e+00> : vector<2x128xf32>
    %654 = tpu.matmul %634, %374, %cst_165 {dimension_numbers = #tpu.dot_dimension_numbers<[1], [0], [0], [1], [0, 0, 1, 1], [], []>} : vector<2x32xf32>, vector<32x128xf32>, vector<2x128xf32> -> vector<2x128xf32>
    %655 = arith.addf %653, %654 : vector<2x128xf32>
    %656 = arith.negf %655 : vector<2x128xf32>
    %657 = math.exp %656 : vector<2x128xf32>
    %cst_166 = arith.constant 1.000000e+00 : f32
    %658 = vector.broadcast %cst_166 : f32 to vector<2x128xf32>
    %659 = arith.addf %658, %657 : vector<2x128xf32>
    %660 = arith.divf %658, %659 : vector<2x128xf32>
    %661 = vector.extract_strided_slice %660 {offsets = [0, 0], sizes = [2, 32], strides = [1, 1]} : vector<2x128xf32> to vector<2x32xf32>
    %662 = vector.extract_strided_slice %660 {offsets = [0, 32], sizes = [2, 32], strides = [1, 1]} : vector<2x128xf32> to vector<2x32xf32>
    %663 = vector.extract_strided_slice %660 {offsets = [0, 96], sizes = [2, 32], strides = [1, 1]} : vector<2x128xf32> to vector<2x32xf32>
    %664 = vector.extract_strided_slice %655 {offsets = [0, 64], sizes = [2, 32], strides = [1, 1]} : vector<2x128xf32> to vector<2x32xf32>
    %665 = math.tanh %664 : vector<2x32xf32>
    %666 = arith.mulf %662, %632 : vector<2x32xf32>
    %667 = arith.mulf %661, %665 : vector<2x32xf32>
    %668 = arith.addf %666, %667 : vector<2x32xf32>
    %669 = math.tanh %668 : vector<2x32xf32>
    %670 = arith.mulf %663, %669 : vector<2x32xf32>
    %c2_167 = arith.constant 2 : index
    %c0_168 = arith.constant 0 : index
    %c0_169 = arith.constant 0 : index
    %671 = vector.load %arg7[%c2_167, %c0_168, %c0_169] : memref<4x2x32xf32, #tpu.memory_space<vmem>>, vector<1x2x32xf32>
    %672 = vector.shape_cast %671 : vector<1x2x32xf32> to vector<2x32xf32>
    %673 = vector.shape_cast %652 : vector<2x32xf32> to vector<1x2x32xf32>
    tpu.vector_store %arg7[%c2_167, %c0_168, %c0_169], %673 {strides = array<i32>} : memref<4x2x32xf32, #tpu.memory_space<vmem>>, vector<1x2x32xf32>,
    %c2_170 = arith.constant 2 : index
    %c0_171 = arith.constant 0 : index
    %c0_172 = arith.constant 0 : index
    %674 = vector.load %arg8[%c2_170, %c0_171, %c0_172] : memref<4x2x32xf32, #tpu.memory_space<vmem>>, vector<1x2x32xf32>
    %675 = vector.shape_cast %674 : vector<1x2x32xf32> to vector<2x32xf32>
    %676 = vector.shape_cast %650 : vector<2x32xf32> to vector<1x2x32xf32>
    tpu.vector_store %arg8[%c2_170, %c0_171, %c0_172], %676 {strides = array<i32>} : memref<4x2x32xf32, #tpu.memory_space<vmem>>, vector<1x2x32xf32>,
    %c3_173 = arith.constant 3 : index
    %c0_174 = arith.constant 0 : index
    %c0_175 = arith.constant 0 : index
    %677 = vector.load %arg7[%c3_173, %c0_174, %c0_175] : memref<4x2x32xf32, #tpu.memory_space<vmem>>, vector<1x2x32xf32>
    %678 = vector.shape_cast %677 : vector<1x2x32xf32> to vector<2x32xf32>
    %679 = vector.shape_cast %670 : vector<2x32xf32> to vector<1x2x32xf32>
    tpu.vector_store %arg7[%c3_173, %c0_174, %c0_175], %679 {strides = array<i32>} : memref<4x2x32xf32, #tpu.memory_space<vmem>>, vector<1x2x32xf32>,
    %c3_176 = arith.constant 3 : index
    %c0_177 = arith.constant 0 : index
    %c0_178 = arith.constant 0 : index
    %680 = vector.load %arg8[%c3_176, %c0_177, %c0_178] : memref<4x2x32xf32, #tpu.memory_space<vmem>>, vector<1x2x32xf32>
    %681 = vector.shape_cast %680 : vector<1x2x32xf32> to vector<2x32xf32>
    %682 = vector.shape_cast %668 : vector<2x32xf32> to vector<1x2x32xf32>
    tpu.vector_store %arg8[%c3_176, %c0_177, %c0_178], %682 {strides = array<i32>} : memref<4x2x32xf32, #tpu.memory_space<vmem>>, vector<1x2x32xf32>,
    return
  }
}

</mosaic_0001>

<llo_original>
// kernel: encoder_forward.1
$region0: #{encoder_forward.1}
  #allocation0 [shape = 'u32[]', space=smem, size = 0x4, offset = 0x4, fixed_abs, tag = 'smem constant byte address 0x4 - core index']
  #allocation1 [shape = 'u32[144,128]{1,0:T(1,128)}', space=vmem, size = 0x12000, scoped, tag = 'internal scratch']
  #allocation2 [shape = 'f32[16,32]{1,0:T(8,128)}', space=vmem, size = 0x2000, scoped, tag = 'scratch operand']
  #allocation3 [shape = 'f32[16,32]{1,0:T(8,128)}', space=vmem, size = 0x2000, scoped, tag = 'scratch operand']
  %s0 = inlined_call_operand.vmem [shape: f32[16,1], index: 0, kind: input, shape index: {}]
  %s1 = inlined_call_operand.vmem [shape: f32[2,1,128], index: 1, kind: input, shape index: {}]
  %s2 = inlined_call_operand.hbm [shape: f32[2,64,128], index: 2, kind: input, shape index: {}]
  %s3 = inlined_call_operand.hbm [shape: f32[4,32,128], index: 3, kind: input, shape index: {}]
  %s4 = inlined_call_operand.vmem [shape: f32[4,1,128], index: 4, kind: input, shape index: {}]
  %s5 = inlined_call_operand.vmem [shape: f32[4,2,32], index: 5, kind: input, shape index: {}]
  %s6 = inlined_call_operand.vmem [shape: f32[4,2,32], index: 6, kind: input, shape index: {}]
  %s7 = inlined_call_operand.hbm [shape: f32[4,2,32], index: 7, kind: output, shape index: {0}]
  %s8 = inlined_call_operand.hbm [shape: f32[4,2,32], index: 8, kind: output, shape index: {1}]
  %9 = xla_tuple %s7, %s8
  %s10 = sld [smem:[#allocation0]]
  $region54: #{encoder_forward.1} parent=0
    _
  %s12 = ssub.s32 1, %s10
  %s13 = scalar_select 0, %s12, %s10
  $region1: #{encoder_forward.1} parent=0
    #allocation4 [shape = 'u8[65536]{0}', space=vmem, size = 0x10000, scoped, tag = 'input window, operand 2, single buffered']
    #allocation5 [shape = 's32[1]{0}', space=sflag, size = 0x4, scoped, tag = 'scoped memory for encoder_forward.1']
    #allocation6 [shape = 's32[1]{0}', space=sflag, size = 0x4, scoped, tag = 'scoped memory for encoder_forward.1']
    #allocation7 [shape = 'u8[65536]{0}', space=vmem, size = 0x10000, scoped, tag = 'input window, operand 3, single buffered']
    #allocation8 [shape = 's32[1]{0}', space=sflag, size = 0x4, scoped, tag = 'scoped memory for encoder_forward.1']
    #allocation9 [shape = 'u8[4096]{0}', space=vmem, size = 0x1000, scoped, tag = 'output window, operand 0, single buffered']
    #allocation10 [shape = 'u8[4096]{0}', space=vmem, size = 0x1000, scoped, tag = 'output window, operand 1, single buffered']
    #allocation11 [shape = 's32[1]{0}', space=sflag, size = 0x4, scoped, tag = 'scoped memory for encoder_forward.1']
    %14 = vsyncpa [#allocation5], 0
    %15 = vsyncpa [#allocation8], 0
    %16 = vsyncpa [#allocation6], 0
    %17 = vsyncpa [#allocation11], 0
    // Predicated region
    $region2: #{encoder_forward.1} parent=1 // pred_check
      _
    $region3: #{encoder_forward.1} parent=1 // pred_check_branch
      %19 = sbr.rel (0) target = $region5
    $region4: #{encoder_forward.1} parent=1 // pred_region
      _
    $region5: #{encoder_forward.1} parent=1 // pred_fallthru
      _
    // Predicated region
    $region6: #{encoder_forward.1} parent=1 // pred_check
      _
    $region7: #{encoder_forward.1} parent=1 // pred_check_branch
      %21 = sbr.rel (0) target = $region9
    $region8: #{encoder_forward.1} parent=1 // pred_region
      _
    $region9: #{encoder_forward.1} parent=1 // pred_fallthru
      _
    // Predicated region
    $region10: #{encoder_forward.1} parent=1 // pred_check
      _
    $region11: #{encoder_forward.1} parent=1 // pred_check_branch
      %23 = sbr.rel (0) target = $region13
    $region12: #{encoder_forward.1} parent=1 // pred_region
      %s25 = ssub.s32 2048, 2048
      %26 = vsyncadd [#allocation5], %s25
      %s27 = sshll.u32 [#allocation4], 4
      %s28 = int_to_ptr.vmem [resolvable:$true] %s27
      %33 = dma.hbm_to_vmem [thread:$0]  %s2, 2048, %s28, [#allocation5], 128, 128, 8
    $region13: #{encoder_forward.1} parent=1 // pred_fallthru
      _
    // Predicated region
    $region14: #{encoder_forward.1} parent=1 // pred_check
      _
    $region15: #{encoder_forward.1} parent=1 // pred_check_branch
      %35 = sbr.rel (0) target = $region17
    $region16: #{encoder_forward.1} parent=1 // pred_region
      %s37 = ssub.s32 2048, 2048
      %38 = vsyncadd [#allocation8], %s37
      %s39 = sshll.u32 [#allocation7], 4
      %s40 = int_to_ptr.vmem [resolvable:$true] %s39
      %45 = dma.hbm_to_vmem [thread:$0]  %s3, 2048, %s40, [#allocation8], 128, 128, 8
    $region17: #{encoder_forward.1} parent=1 // pred_fallthru
      _
    // Predicated region
    $region18: #{encoder_forward.1} parent=1 // pred_check
      _
    $region19: #{encoder_forward.1} parent=1 // pred_check_branch
      %47 = sbr.rel (0) target = $region21
    $region20: #{encoder_forward.1} parent=1 // pred_region
      _
    $region21: #{encoder_forward.1} parent=1 // pred_fallthru
      _
    // Predicated region
    $region22: #{encoder_forward.1} parent=1 // pred_check
      _
    $region23: #{encoder_forward.1} parent=1 // pred_check_branch
      %49 = sbr.rel (0) target = $region25
    $region24: #{encoder_forward.1} parent=1 // pred_region
      _
    $region25: #{encoder_forward.1} parent=1 // pred_fallthru
      _
    // Predicated region
    $region26: #{encoder_forward.1} parent=1 // pred_check
      _
    $region27: #{encoder_forward.1} parent=1 // pred_check_branch
      %51 = sbr.rel (0) target = $region29
    $region28: #{encoder_forward.1} parent=1 // pred_region
      _
    $region29: #{encoder_forward.1} parent=1 // pred_fallthru
      _
    // Predicated region
    $region30: #{encoder_forward.1} parent=1 // pred_check
      _
    $region31: #{encoder_forward.1} parent=1 // pred_check_branch
      %53 = sbr.rel (0) target = $region33
    $region32: #{encoder_forward.1} parent=1 // pred_region
      %54 = dma.done [#allocation5], 2048
    $region33: #{encoder_forward.1} parent=1 // pred_fallthru
      _
    // Predicated region
    $region34: #{encoder_forward.1} parent=1 // pred_check
      _
    $region35: #{encoder_forward.1} parent=1 // pred_check_branch
      %56 = sbr.rel (0) target = $region37
    $region36: #{encoder_forward.1} parent=1 // pred_region
      %57 = dma.done [#allocation8], 2048
    $region37: #{encoder_forward.1} parent=1 // pred_fallthru
      _
    %v58 = vld [vmem:[%s0] sm:$0xff]
    %v59 = vld [vmem:[%s0 + $0x8] sm:$0xff]
    %v60 = vld [vmem:[%s4] sm:$0x1]
    %s61 = scalar_lea.vmem %s4, 1
    %v62 = vld [vmem:[%s61] sm:$0x1]
    %v63 = vld [vmem:[%s1] sm:$0x1]
    %65 = vset.pattern.permute.xlu0 0
    %66 = vperm.xlu0 %65, %v58
    %v67 = vpop.permute.xlu0 %66
    %70 = vset.pattern.permute.xlu0 0
    %71 = vperm.xlu0 %70, %v59
    %v72 = vpop.permute.xlu0 %71
    %v75 = vlaneseq
    %v76 = vshrl.u32 %v75, 7
    %v77 = vsub.s32 0, %v76
    %v78 = vrot.slane %v63, %v77
    %v80 = vmul.f32 %v67, %v78
    %v81 = vmul.f32 %v72, %v78
    %v83 = vlaneseq
    %v84 = vshrl.u32 %v83, 7
    %v85 = vsub.s32 0, %v84
    %v86 = vrot.slane %v60, %v85
    %v88 = vadd.f32 %v80, %v86
    %v89 = vadd.f32 %v81, %v86
    %s90 = scalar_lea.vmem %s1, 1
    %v91 = vld [vmem:[%s90] sm:$0x1]
    %v93 = vlaneseq
    %v94 = vshrl.u32 %v93, 7
    %v95 = vsub.s32 0, %v94
    %v96 = vrot.slane %v91, %v95
    %v98 = vmul.f32 %v67, %v96
    %v99 = vmul.f32 %v72, %v96
    %v101 = vlaneseq
    %v102 = vshrl.u32 %v101, 7
    %v103 = vsub.s32 0, %v102
    %v104 = vrot.slane %v62, %v103
    %v106 = vadd.f32 %v98, %v104
    %v107 = vadd.f32 %v99, %v104
    %v108 = vld [vmem:[#allocation7] sm:$0xff]
    %v109 = vld [vmem:[#allocation7 + $0x8] sm:$0xff]
    %v110 = vld [vmem:[#allocation7 + $0x10] sm:$0xff]
    %v111 = vld [vmem:[#allocation7 + $0x18] sm:$0xff]
    %s112 = scalar_lea.vmem [#allocation7], 32
    %v113 = vld [vmem:[%s112] sm:$0xff]
    %v114 = vld [vmem:[%s112 + $0x8] sm:$0xff]
    %v115 = vld [vmem:[%s112 + $0x10] sm:$0xff]
    %v116 = vld [vmem:[%s112 + $0x18] sm:$0xff]
    %v117 = vld [vmem:[%s5] sm:$0x3]
    %v118 = vld [vmem:[%s6] sm:$0x3]
    %s119 = scalar_lea.vmem %s5, 2
    %v120 = vld [vmem:[%s119] sm:$0x3]
    %s121 = scalar_lea.vmem %s6, 2
    %v122 = vld [vmem:[%s121] sm:$0x3]
    %vm123 = vcmask 261120
    %v125 = vsel %vm123, %v117, 0
    %127 = vmatprep.subr.mxu0 0.0
    %128 = vmatpush1.msra.mxu0 0.0
    %129 = vmatprep.subr.mxu0 0.0
    %130 = vmatpush1.msra.mxu0 0.0
    %131 = vmatprep.subr.mxu0 0.0
    %132 = vmatpush1.msra.mxu0 0.0
    %133 = vmatprep.subr.mxu0 0.0
    %134 = vmatpush1.msra.mxu0 0.0
    %135 = vmatprep.subr.mxu0 0.0
    %136 = vmatpush1.msra.mxu0 0.0
    %137 = vmatprep.subr.mxu0 0.0
    %138 = vmatpush1.msra.mxu0 0.0
    %139 = vmatprep.subr.mxu0 0.0
    %140 = vmatpush1.msra.mxu0 0.0
    %141 = vmatprep.subr.mxu0 0.0
    %142 = vmatpush1.msra.mxu0 0.0
    %143 = vmatprep.subr.mxu0 0.0
    %144 = vmatpush1.msra.mxu0 0.0
    %145 = vmatprep.subr.mxu0 0.0
    %146 = vmatpush1.msra.mxu0 0.0
    %147 = vmatprep.subr.mxu0 0.0
    %148 = vmatpush1.msra.mxu0 0.0
    %149 = vmatprep.subr.mxu0 0.0
    %150 = vmatpush1.msra.mxu0 0.0
    %151 = vmatprep.subr.mxu0 0.0
    %152 = vmatpush1.msra.mxu0 %v111
    %153 = vmatprep.subr.mxu0 0.0
    %154 = vmatpush1.msra.mxu0 %v110
    %155 = vmatprep.subr.mxu0 0.0
    %156 = vmatpush1.msra.mxu0 %v109
    %157 = vmatprep.subr.mxu0 0.0
    %158 = vmatpush1.msra.mxu0 %v108
    %159 = vmatprep.subr.mxu0 0.0
    %160 = vmatpush2.msra.mxu0 0.0
    %161 = vmatprep.subr.mxu0 0.0
    %162 = vmatpush2.msra.mxu0 0.0
    %163 = vmatprep.subr.mxu0 0.0
    %164 = vmatpush2.msra.mxu0 0.0
    %165 = vmatprep.subr.mxu0 0.0
    %166 = vmatpush2.msra.mxu0 0.0
    %167 = vmatprep.subr.mxu0 0.0
    %168 = vmatpush2.msra.mxu0 0.0
    %169 = vmatprep.subr.mxu0 0.0
    %170 = vmatpush2.msra.mxu0 0.0
    %171 = vmatprep.subr.mxu0 0.0
    %172 = vmatpush2.msra.mxu0 0.0
    %173 = vmatprep.subr.mxu0 0.0
    %174 = vmatpush2.msra.mxu0 0.0
    %175 = vmatprep.subr.mxu0 0.0
    %176 = vmatpush2.msra.mxu0 0.0
    %177 = vmatprep.subr.mxu0 0.0
    %178 = vmatpush2.msra.mxu0 0.0
    %179 = vmatprep.subr.mxu0 0.0
    %180 = vmatpush2.msra.mxu0 0.0
    %181 = vmatprep.subr.mxu0 0.0
    %182 = vmatpush2.msra.mxu0 0.0
    %183 = vmatprep.subr.mxu0 0.0
    %184 = vmatpush2.msra.mxu0 0.0
    %185 = vmatprep.subr.mxu0 0.0
    %186 = vmatpush2.msra.mxu0 0.0
    %187 = vmatprep.subr.mxu0 0.0
    %188 = vmatpush2.msra.mxu0 0.0
    %189 = vmatprep.subr.mxu0 0.0
    %190 = vmatpush2.msra.mxu0 0.0
    %191 = vmatprep.mubr.f32.mxu0 0.0
    %192 = vmatmul.mubr.f32.gmra.mxu0 %v125
    %v193 = vpop.f32.mrf.mxu0
    %v194 = vadd.f32 0.0, %v193
    %v195 = vpop.f32.mrf.mxu0
    %196 = vdwg.mxu0
    %v197 = vadd.f32 %v88, %v194
    %v198 = vxor.u32 %v197, 2147483648
    %v199 = vmul.f32 %v198, 1.442695
    %v200 = vpow.pop %v199
    %v201 = vadd.f32 %v200, 1.0
    %v202 = vrcp.pop %v201
    %v203 = vmul.f32 1.0, %v202
    %v204 = vtanh.pop %v197
    %206 = vrot.lane.b32.xlu0 %v118, 32
    %v207 = vpop.permute.xlu0 %206
    %v209 = vmul.f32 %v203, %v207
    %211 = vrot.lane.b32.xlu0 %v204, 64
    %v212 = vpop.permute.xlu0 %211
    %v214 = vmul.f32 %v203, %v212
    %216 = vrot.lane.b32.xlu0 %v214, 32
    %v217 = vpop.permute.xlu0 %216
    %v219 = vadd.f32 %v209, %v217
    %v220 = vtanh.pop %v219
    %222 = vrot.lane.b32.xlu0 %v220, 64
    %v223 = vpop.permute.xlu0 %222
    %v225 = vmul.f32 %v203, %v223
    %v227 = vsel %vm123, %v120, 0
    %229 = vmatprep.subr.mxu0 0.0
    %230 = vmatpush1.msra.mxu0 0.0
    %231 = vmatprep.subr.mxu0 0.0
    %232 = vmatpush1.msra.mxu0 0.0
    %233 = vmatprep.subr.mxu0 0.0
    %234 = vmatpush1.msra.mxu0 0.0
    %235 = vmatprep.subr.mxu0 0.0
    %236 = vmatpush1.msra.mxu0 0.0
    %237 = vmatprep.subr.mxu0 0.0
    %238 = vmatpush1.msra.mxu0 0.0
    %239 = vmatprep.subr.mxu0 0.0
    %240 = vmatpush1.msra.mxu0 0.0
    %241 = vmatprep.subr.mxu0 0.0
    %242 = vmatpush1.msra.mxu0 0.0
    %243 = vmatprep.subr.mxu0 0.0
    %244 = vmatpush1.msra.mxu0 0.0
    %245 = vmatprep.subr.mxu0 0.0
    %246 = vmatpush1.msra.mxu0 0.0
    %247 = vmatprep.subr.mxu0 0.0
    %248 = vmatpush1.msra.mxu0 0.0
    %249 = vmatprep.subr.mxu0 0.0
    %250 = vmatpush1.msra.mxu0 0.0
    %251 = vmatprep.subr.mxu0 0.0
    %252 = vmatpush1.msra.mxu0 0.0
    %253 = vmatprep.subr.mxu0 0.0
    %254 = vmatpush1.msra.mxu0 %v116
    %255 = vmatprep.subr.mxu0 0.0
    %256 = vmatpush1.msra.mxu0 %v115
    %257 = vmatprep.subr.mxu0 0.0
    %258 = vmatpush1.msra.mxu0 %v114
    %259 = vmatprep.subr.mxu0 0.0
    %260 = vmatpush1.msra.mxu0 %v113
    %261 = vmatprep.subr.mxu0 0.0
    %262 = vmatpush2.msra.mxu0 0.0
    %263 = vmatprep.subr.mxu0 0.0
    %264 = vmatpush2.msra.mxu0 0.0
    %265 = vmatprep.subr.mxu0 0.0
    %266 = vmatpush2.msra.mxu0 0.0
    %267 = vmatprep.subr.mxu0 0.0
    %268 = vmatpush2.msra.mxu0 0.0
    %269 = vmatprep.subr.mxu0 0.0
    %270 = vmatpush2.msra.mxu0 0.0
    %271 = vmatprep.subr.mxu0 0.0
    %272 = vmatpush2.msra.mxu0 0.0
    %273 = vmatprep.subr.mxu0 0.0
    %274 = vmatpush2.msra.mxu0 0.0
    %275 = vmatprep.subr.mxu0 0.0
    %276 = vmatpush2.msra.mxu0 0.0
    %277 = vmatprep.subr.mxu0 0.0
    %278 = vmatpush2.msra.mxu0 0.0
    %279 = vmatprep.subr.mxu0 0.0
    %280 = vmatpush2.msra.mxu0 0.0
    %281 = vmatprep.subr.mxu0 0.0
    %282 = vmatpush2.msra.mxu0 0.0
    %283 = vmatprep.subr.mxu0 0.0
    %284 = vmatpush2.msra.mxu0 0.0
    %285 = vmatprep.subr.mxu0 0.0
    %286 = vmatpush2.msra.mxu0 0.0
    %287 = vmatprep.subr.mxu0 0.0
    %288 = vmatpush2.msra.mxu0 0.0
    %289 = vmatprep.subr.mxu0 0.0
    %290 = vmatpush2.msra.mxu0 0.0
    %291 = vmatprep.subr.mxu0 0.0
    %292 = vmatpush2.msra.mxu0 0.0
    %293 = vmatprep.mubr.f32.mxu0 0.0
    %294 = vmatmul.mubr.f32.gmra.mxu0 %v227
    %v295 = vpop.f32.mrf.mxu0
    %v296 = vadd.f32 0.0, %v295
    %v297 = vpop.f32.mrf.mxu0
    %298 = vdwg.mxu0
    %v300 = vrot.slane %v296, 2
    %v302 = vadd.f32 %v107, %v300
    %v303 = vxor.u32 %v302, 2147483648
    %v304 = vmul.f32 %v303, 1.442695
    %v305 = vpow.pop %v304
    %v306 = vadd.f32 %v305, 1.0
    %v307 = vrcp.pop %v306
    %v308 = vmul.f32 1.0, %v307
    %v309 = vtanh.pop %v302
    %v311 = vrot.slane %v122, 2
    %312 = vrot.lane.b32.xlu0 %v311, 32
    %v313 = vpop.permute.xlu0 %312
    %v315 = vmul.f32 %v308, %v313
    %317 = vrot.lane.b32.xlu0 %v309, 64
    %v318 = vpop.permute.xlu0 %317
    %v320 = vmul.f32 %v308, %v318
    %322 = vrot.lane.b32.xlu0 %v320, 32
    %v323 = vpop.permute.xlu0 %322
    %v325 = vadd.f32 %v315, %v323
    %v326 = vtanh.pop %v325
    %328 = vrot.lane.b32.xlu0 %v326, 64
    %v329 = vpop.permute.xlu0 %328
    %v331 = vmul.f32 %v308, %v329
    %333 = vrot.lane.b32.xlu0 %v225, 32
    %v334 = vpop.permute.xlu0 %333
    %vm336 = vcmask 254976
    %337 = vst.msk [vmem:[#allocation2] sm:$0x3] %vm336, %v334
    %339 = vrot.lane.b32.xlu0 %v331, 32
    %v340 = vpop.permute.xlu0 %339
    %vm342 = vcmask 261126
    %343 = vst.msk [vmem:[#allocation3 + $0x8] sm:$0xc0] %vm342, %v340
    %v344 = vsel %vm123, %v334, 0
    %346 = vmatprep.subr.mxu0 0.0
    %347 = vmatpush1.msra.mxu0 0.0
    %348 = vmatprep.subr.mxu0 0.0
    %349 = vmatpush1.msra.mxu0 0.0
    %350 = vmatprep.subr.mxu0 0.0
    %351 = vmatpush1.msra.mxu0 0.0
    %352 = vmatprep.subr.mxu0 0.0
    %353 = vmatpush1.msra.mxu0 0.0
    %354 = vmatprep.subr.mxu0 0.0
    %355 = vmatpush1.msra.mxu0 0.0
    %356 = vmatprep.subr.mxu0 0.0
    %357 = vmatpush1.msra.mxu0 0.0
    %358 = vmatprep.subr.mxu0 0.0
    %359 = vmatpush1.msra.mxu0 0.0
    %360 = vmatprep.subr.mxu0 0.0
    %361 = vmatpush1.msra.mxu0 0.0
    %362 = vmatprep.subr.mxu0 0.0
    %363 = vmatpush1.msra.mxu0 0.0
    %364 = vmatprep.subr.mxu0 0.0
    %365 = vmatpush1.msra.mxu0 0.0
    %366 = vmatprep.subr.mxu0 0.0
    %367 = vmatpush1.msra.mxu0 0.0
    %368 = vmatprep.subr.mxu0 0.0
    %369 = vmatpush1.msra.mxu0 0.0
    %370 = vmatprep.subr.mxu0 0.0
    %371 = vmatpush1.msra.mxu0 %v111
    %372 = vmatprep.subr.mxu0 0.0
    %373 = vmatpush1.msra.mxu0 %v110
    %374 = vmatprep.subr.mxu0 0.0
    %375 = vmatpush1.msra.mxu0 %v109
    %376 = vmatprep.subr.mxu0 0.0
    %377 = vmatpush1.msra.mxu0 %v108
    %378 = vmatprep.subr.mxu0 0.0
    %379 = vmatpush2.msra.mxu0 0.0
    %380 = vmatprep.subr.mxu0 0.0
    %381 = vmatpush2.msra.mxu0 0.0
    %382 = vmatprep.subr.mxu0 0.0
    %383 = vmatpush2.msra.mxu0 0.0
    %384 = vmatprep.subr.mxu0 0.0
    %385 = vmatpush2.msra.mxu0 0.0
    %386 = vmatprep.subr.mxu0 0.0
    %387 = vmatpush2.msra.mxu0 0.0
    %388 = vmatprep.subr.mxu0 0.0
    %389 = vmatpush2.msra.mxu0 0.0
    %390 = vmatprep.subr.mxu0 0.0
    %391 = vmatpush2.msra.mxu0 0.0
    %392 = vmatprep.subr.mxu0 0.0
    %393 = vmatpush2.msra.mxu0 0.0
    %394 = vmatprep.subr.mxu0 0.0
    %395 = vmatpush2.msra.mxu0 0.0
    %396 = vmatprep.subr.mxu0 0.0
    %397 = vmatpush2.msra.mxu0 0.0
    %398 = vmatprep.subr.mxu0 0.0
    %399 = vmatpush2.msra.mxu0 0.0
    %400 = vmatprep.subr.mxu0 0.0
    %401 = vmatpush2.msra.mxu0 0.0
    %402 = vmatprep.subr.mxu0 0.0
    %403 = vmatpush2.msra.mxu0 0.0
    %404 = vmatprep.subr.mxu0 0.0
    %405 = vmatpush2.msra.mxu0 0.0
    %406 = vmatprep.subr.mxu0 0.0
    %407 = vmatpush2.msra.mxu0 0.0
    %408 = vmatprep.subr.mxu0 0.0
    %409 = vmatpush2.msra.mxu0 0.0
    %410 = vmatprep.mubr.f32.mxu0 0.0
    %411 = vmatmul.mubr.f32.gmra.mxu0 %v344
    %v412 = vpop.f32.mrf.mxu0
    %v413 = vadd.f32 0.0, %v412
    %v414 = vpop.f32.mrf.mxu0
    %415 = vdwg.mxu0
    %v417 = vrot.slane %v413, 6
    %v419 = vadd.f32 %v88, %v417
    %v420 = vxor.u32 %v419, 2147483648
    %v421 = vmul.f32 %v420, 1.442695
    %v422 = vpow.pop %v421
    %v423 = vadd.f32 %v422, 1.0
    %v424 = vrcp.pop %v423
    %v425 = vmul.f32 1.0, %v424
    %v426 = vtanh.pop %v419
    %v428 = vrot.slane %v219, 6
    %v430 = vmul.f32 %v425, %v428
    %432 = vrot.lane.b32.xlu0 %v426, 64
    %v433 = vpop.permute.xlu0 %432
    %v435 = vmul.f32 %v425, %v433
    %437 = vrot.lane.b32.xlu0 %v435, 32
    %v438 = vpop.permute.xlu0 %437
    %v440 = vadd.f32 %v430, %v438
    %v441 = vtanh.pop %v440
    %443 = vrot.lane.b32.xlu0 %v441, 64
    %v444 = vpop.permute.xlu0 %443
    %v446 = vmul.f32 %v425, %v444
    %v447 = vrot.slane %v331, 6
    %448 = vrot.lane.b32.xlu0 %v447, 32
    %v449 = vpop.permute.xlu0 %448
    %v450 = vsel %vm123, %v449, 0
    %452 = vmatprep.subr.mxu0 0.0
    %453 = vmatpush1.msra.mxu0 0.0
    %454 = vmatprep.subr.mxu0 0.0
    %455 = vmatpush1.msra.mxu0 0.0
    %456 = vmatprep.subr.mxu0 0.0
    %457 = vmatpush1.msra.mxu0 0.0
    %458 = vmatprep.subr.mxu0 0.0
    %459 = vmatpush1.msra.mxu0 0.0
    %460 = vmatprep.subr.mxu0 0.0
    %461 = vmatpush1.msra.mxu0 0.0
    %462 = vmatprep.subr.mxu0 0.0
    %463 = vmatpush1.msra.mxu0 0.0
    %464 = vmatprep.subr.mxu0 0.0
    %465 = vmatpush1.msra.mxu0 0.0
    %466 = vmatprep.subr.mxu0 0.0
    %467 = vmatpush1.msra.mxu0 0.0
    %468 = vmatprep.subr.mxu0 0.0
    %469 = vmatpush1.msra.mxu0 0.0
    %470 = vmatprep.subr.mxu0 0.0
    %471 = vmatpush1.msra.mxu0 0.0
    %472 = vmatprep.subr.mxu0 0.0
    %473 = vmatpush1.msra.mxu0 0.0
    %474 = vmatprep.subr.mxu0 0.0
    %475 = vmatpush1.msra.mxu0 0.0
    %476 = vmatprep.subr.mxu0 0.0
    %477 = vmatpush1.msra.mxu0 %v116
    %478 = vmatprep.subr.mxu0 0.0
    %479 = vmatpush1.msra.mxu0 %v115
    %480 = vmatprep.subr.mxu0 0.0
    %481 = vmatpush1.msra.mxu0 %v114
    %482 = vmatprep.subr.mxu0 0.0
    %483 = vmatpush1.msra.mxu0 %v113
    %484 = vmatprep.subr.mxu0 0.0
    %485 = vmatpush2.msra.mxu0 0.0
    %486 = vmatprep.subr.mxu0 0.0
    %487 = vmatpush2.msra.mxu0 0.0
    %488 = vmatprep.subr.mxu0 0.0
    %489 = vmatpush2.msra.mxu0 0.0
    %490 = vmatprep.subr.mxu0 0.0
    %491 = vmatpush2.msra.mxu0 0.0
    %492 = vmatprep.subr.mxu0 0.0
    %493 = vmatpush2.msra.mxu0 0.0
    %494 = vmatprep.subr.mxu0 0.0
    %495 = vmatpush2.msra.mxu0 0.0
    %496 = vmatprep.subr.mxu0 0.0
    %497 = vmatpush2.msra.mxu0 0.0
    %498 = vmatprep.subr.mxu0 0.0
    %499 = vmatpush2.msra.mxu0 0.0
    %500 = vmatprep.subr.mxu0 0.0
    %501 = vmatpush2.msra.mxu0 0.0
    %502 = vmatprep.subr.mxu0 0.0
    %503 = vmatpush2.msra.mxu0 0.0
    %504 = vmatprep.subr.mxu0 0.0
    %505 = vmatpush2.msra.mxu0 0.0
    %506 = vmatprep.subr.mxu0 0.0
    %507 = vmatpush2.msra.mxu0 0.0
    %508 = vmatprep.subr.mxu0 0.0
    %509 = vmatpush2.msra.mxu0 0.0
    %510 = vmatprep.subr.mxu0 0.0
    %511 = vmatpush2.msra.mxu0 0.0
    %512 = vmatprep.subr.mxu0 0.0
    %513 = vmatpush2.msra.mxu0 0.0
    %514 = vmatprep.subr.mxu0 0.0
    %515 = vmatpush2.msra.mxu0 0.0
    %516 = vmatprep.mubr.f32.mxu0 0.0
    %517 = vmatmul.mubr.f32.gmra.mxu0 %v450
    %v518 = vpop.f32.mrf.mxu0
    %v519 = vadd.f32 0.0, %v518
    %v520 = vpop.f32.mrf.mxu0
    %521 = vdwg.mxu0
    %v523 = vrot.slane %v519, 4
    %v525 = vadd.f32 %v107, %v523
    %v526 = vxor.u32 %v525, 2147483648
    %v527 = vmul.f32 %v526, 1.442695
    %v528 = vpow.pop %v527
    %v529 = vadd.f32 %v528, 1.0
    %v530 = vrcp.pop %v529
    %v531 = vmul.f32 1.0, %v530
    %v532 = vtanh.pop %v525
    %v534 = vrot.slane %v325, 2
    %v536 = vmul.f32 %v531, %v534
    %538 = vrot.lane.b32.xlu0 %v532, 64
    %v539 = vpop.permute.xlu0 %538
    %v541 = vmul.f32 %v531, %v539
    %543 = vrot.lane.b32.xlu0 %v541, 32
    %v544 = vpop.permute.xlu0 %543
    %v546 = vadd.f32 %v536, %v544
    %v547 = vtanh.pop %v546
    %549 = vrot.lane.b32.xlu0 %v547, 64
    %v550 = vpop.permute.xlu0 %549
    %v552 = vmul.f32 %v531, %v550
    %554 = vrot.lane.b32.xlu0 %v446, 32
    %v555 = vpop.permute.xlu0 %554
    %vm557 = vcmask 257026
    %558 = vst.msk [vmem:[#allocation2] sm:$0xc] %vm557, %v555
    %560 = vrot.lane.b32.xlu0 %v552, 32
    %v561 = vpop.permute.xlu0 %560
    %vm563 = vcmask 259076
    %564 = vst.msk [vmem:[#allocation3 + $0x8] sm:$0x30] %vm563, %v561
    %v565 = vrot.slane %v446, 2
    %566 = vrot.lane.b32.xlu0 %v565, 32
    %v567 = vpop.permute.xlu0 %566
    %v568 = vsel %vm123, %v567, 0
    %570 = vmatprep.subr.mxu0 0.0
    %571 = vmatpush1.msra.mxu0 0.0
    %572 = vmatprep.subr.mxu0 0.0
    %573 = vmatpush1.msra.mxu0 0.0
    %574 = vmatprep.subr.mxu0 0.0
    %575 = vmatpush1.msra.mxu0 0.0
    %576 = vmatprep.subr.mxu0 0.0
    %577 = vmatpush1.msra.mxu0 0.0
    %578 = vmatprep.subr.mxu0 0.0
    %579 = vmatpush1.msra.mxu0 0.0
    %580 = vmatprep.subr.mxu0 0.0
    %581 = vmatpush1.msra.mxu0 0.0
    %582 = vmatprep.subr.mxu0 0.0
    %583 = vmatpush1.msra.mxu0 0.0
    %584 = vmatprep.subr.mxu0 0.0
    %585 = vmatpush1.msra.mxu0 0.0
    %586 = vmatprep.subr.mxu0 0.0
    %587 = vmatpush1.msra.mxu0 0.0
    %588 = vmatprep.subr.mxu0 0.0
    %589 = vmatpush1.msra.mxu0 0.0
    %590 = vmatprep.subr.mxu0 0.0
    %591 = vmatpush1.msra.mxu0 0.0
    %592 = vmatprep.subr.mxu0 0.0
    %593 = vmatpush1.msra.mxu0 0.0
    %594 = vmatprep.subr.mxu0 0.0
    %595 = vmatpush1.msra.mxu0 %v111
    %596 = vmatprep.subr.mxu0 0.0
    %597 = vmatpush1.msra.mxu0 %v110
    %598 = vmatprep.subr.mxu0 0.0
    %599 = vmatpush1.msra.mxu0 %v109
    %600 = vmatprep.subr.mxu0 0.0
    %601 = vmatpush1.msra.mxu0 %v108
    %602 = vmatprep.subr.mxu0 0.0
    %603 = vmatpush2.msra.mxu0 0.0
    %604 = vmatprep.subr.mxu0 0.0
    %605 = vmatpush2.msra.mxu0 0.0
    %606 = vmatprep.subr.mxu0 0.0
    %607 = vmatpush2.msra.mxu0 0.0
    %608 = vmatprep.subr.mxu0 0.0
    %609 = vmatpush2.msra.mxu0 0.0
    %610 = vmatprep.subr.mxu0 0.0
    %611 = vmatpush2.msra.mxu0 0.0
    %612 = vmatprep.subr.mxu0 0.0
    %613 = vmatpush2.msra.mxu0 0.0
    %614 = vmatprep.subr.mxu0 0.0
    %615 = vmatpush2.msra.mxu0 0.0
    %616 = vmatprep.subr.mxu0 0.0
    %617 = vmatpush2.msra.mxu0 0.0
    %618 = vmatprep.subr.mxu0 0.0
    %619 = vmatpush2.msra.mxu0 0.0
    %620 = vmatprep.subr.mxu0 0.0
    %621 = vmatpush2.msra.mxu0 0.0
    %622 = vmatprep.subr.mxu0 0.0
    %623 = vmatpush2.msra.mxu0 0.0
    %624 = vmatprep.subr.mxu0 0.0
    %625 = vmatpush2.msra.mxu0 0.0
    %626 = vmatprep.subr.mxu0 0.0
    %627 = vmatpush2.msra.mxu0 0.0
    %628 = vmatprep.subr.mxu0 0.0
    %629 = vmatpush2.msra.mxu0 0.0
    %630 = vmatprep.subr.mxu0 0.0
    %631 = vmatpush2.msra.mxu0 0.0
    %632 = vmatprep.subr.mxu0 0.0
    %633 = vmatpush2.msra.mxu0 0.0
    %634 = vmatprep.mubr.f32.mxu0 0.0
    %635 = vmatmul.mubr.f32.gmra.mxu0 %v568
    %v636 = vpop.f32.mrf.mxu0
    %v637 = vadd.f32 0.0, %v636
    %v638 = vpop.f32.mrf.mxu0
    %639 = vdwg.mxu0
    %v641 = vrot.slane %v637, 4
    %v643 = vadd.f32 %v88, %v641
    %v644 = vxor.u32 %v643, 2147483648
    %v645 = vmul.f32 %v644, 1.442695
    %v646 = vpow.pop %v645
    %v647 = vadd.f32 %v646, 1.0
    %v648 = vrcp.pop %v647
    %v649 = vmul.f32 1.0, %v648
    %v650 = vtanh.pop %v643
    %v652 = vrot.slane %v440, 6
    %v654 = vmul.f32 %v649, %v652
    %656 = vrot.lane.b32.xlu0 %v650, 64
    %v657 = vpop.permute.xlu0 %656
    %v659 = vmul.f32 %v649, %v657
    %661 = vrot.lane.b32.xlu0 %v659, 32
    %v662 = vpop.permute.xlu0 %661
    %v664 = vadd.f32 %v654, %v662
    %v665 = vtanh.pop %v664
    %667 = vrot.lane.b32.xlu0 %v665, 64
    %v668 = vpop.permute.xlu0 %667
    %v670 = vmul.f32 %v649, %v668
    %v671 = vrot.slane %v552, 4
    %672 = vrot.lane.b32.xlu0 %v671, 32
    %v673 = vpop.permute.xlu0 %672
    %v674 = vsel %vm123, %v673, 0
    %676 = vmatprep.subr.mxu0 0.0
    %677 = vmatpush1.msra.mxu0 0.0
    %678 = vmatprep.subr.mxu0 0.0
    %679 = vmatpush1.msra.mxu0 0.0
    %680 = vmatprep.subr.mxu0 0.0
    %681 = vmatpush1.msra.mxu0 0.0
    %682 = vmatprep.subr.mxu0 0.0
    %683 = vmatpush1.msra.mxu0 0.0
    %684 = vmatprep.subr.mxu0 0.0
    %685 = vmatpush1.msra.mxu0 0.0
    %686 = vmatprep.subr.mxu0 0.0
    %687 = vmatpush1.msra.mxu0 0.0
    %688 = vmatprep.subr.mxu0 0.0
    %689 = vmatpush1.msra.mxu0 0.0
    %690 = vmatprep.subr.mxu0 0.0
    %691 = vmatpush1.msra.mxu0 0.0
    %692 = vmatprep.subr.mxu0 0.0
    %693 = vmatpush1.msra.mxu0 0.0
    %694 = vmatprep.subr.mxu0 0.0
    %695 = vmatpush1.msra.mxu0 0.0
    %696 = vmatprep.subr.mxu0 0.0
    %697 = vmatpush1.msra.mxu0 0.0
    %698 = vmatprep.subr.mxu0 0.0
    %699 = vmatpush1.msra.mxu0 0.0
    %700 = vmatprep.subr.mxu0 0.0
    %701 = vmatpush1.msra.mxu0 %v116
    %702 = vmatprep.subr.mxu0 0.0
    %703 = vmatpush1.msra.mxu0 %v115
    %704 = vmatprep.subr.mxu0 0.0
    %705 = vmatpush1.msra.mxu0 %v114
    %706 = vmatprep.subr.mxu0 0.0
    %707 = vmatpush1.msra.mxu0 %v113
    %708 = vmatprep.subr.mxu0 0.0
    %709 = vmatpush2.msra.mxu0 0.0
    %710 = vmatprep.subr.mxu0 0.0
    %711 = vmatpush2.msra.mxu0 0.0
    %712 = vmatprep.subr.mxu0 0.0
    %713 = vmatpush2.msra.mxu0 0.0
    %714 = vmatprep.subr.mxu0 0.0
    %715 = vmatpush2.msra.mxu0 0.0
    %716 = vmatprep.subr.mxu0 0.0
    %717 = vmatpush2.msra.mxu0 0.0
    %718 = vmatprep.subr.mxu0 0.0
    %719 = vmatpush2.msra.mxu0 0.0
    %720 = vmatprep.subr.mxu0 0.0
    %721 = vmatpush2.msra.mxu0 0.0
    %722 = vmatprep.subr.mxu0 0.0
    %723 = vmatpush2.msra.mxu0 0.0
    %724 = vmatprep.subr.mxu0 0.0
    %725 = vmatpush2.msra.mxu0 0.0
    %726 = vmatprep.subr.mxu0 0.0
    %727 = vmatpush2.msra.mxu0 0.0
    %728 = vmatprep.subr.mxu0 0.0
    %729 = vmatpush2.msra.mxu0 0.0
    %730 = vmatprep.subr.mxu0 0.0
    %731 = vmatpush2.msra.mxu0 0.0
    %732 = vmatprep.subr.mxu0 0.0
    %733 = vmatpush2.msra.mxu0 0.0
    %734 = vmatprep.subr.mxu0 0.0
    %735 = vmatpush2.msra.mxu0 0.0
    %736 = vmatprep.subr.mxu0 0.0
    %737 = vmatpush2.msra.mxu0 0.0
    %738 = vmatprep.subr.mxu0 0.0
    %739 = vmatpush2.msra.mxu0 0.0
    %740 = vmatprep.mubr.f32.mxu0 0.0
    %741 = vmatmul.mubr.f32.gmra.mxu0 %v674
    %v742 = vpop.f32.mrf.mxu0
    %v743 = vadd.f32 0.0, %v742
    %v744 = vpop.f32.mrf.mxu0
    %745 = vdwg.mxu0
    %v747 = vrot.slane %v743, 6
    %v749 = vadd.f32 %v107, %v747
    %v750 = vxor.u32 %v749, 2147483648
    %v751 = vmul.f32 %v750, 1.442695
    %v752 = vpow.pop %v751
    %v753 = vadd.f32 %v752, 1.0
    %v754 = vrcp.pop %v753
    %v755 = vmul.f32 1.0, %v754
    %v756 = vtanh.pop %v749
    %v758 = vrot.slane %v546, 2
    %v760 = vmul.f32 %v755, %v758
    %762 = vrot.lane.b32.xlu0 %v756, 64
    %v763 = vpop.permute.xlu0 %762
    %v765 = vmul.f32 %v755, %v763
    %767 = vrot.lane.b32.xlu0 %v765, 32
    %v768 = vpop.permute.xlu0 %767
    %v770 = vadd.f32 %v760, %v768
    %v771 = vtanh.pop %v770
    %773 = vrot.lane.b32.xlu0 %v771, 64
    %v774 = vpop.permute.xlu0 %773
    %v776 = vmul.f32 %v755, %v774
    %778 = vrot.lane.b32.xlu0 %v670, 32
    %v779 = vpop.permute.xlu0 %778
    %781 = vst.msk [vmem:[#allocation2] sm:$0x30] %vm563, %v779
    %783 = vrot.lane.b32.xlu0 %v776, 32
    %v784 = vpop.permute.xlu0 %783
    %786 = vst.msk [vmem:[#allocation3 + $0x8] sm:$0xc] %vm557, %v784
    %v787 = vrot.slane %v670, 4
    %788 = vrot.lane.b32.xlu0 %v787, 32
    %v789 = vpop.permute.xlu0 %788
    %v790 = vsel %vm123, %v789, 0
    %792 = vmatprep.subr.mxu0 0.0
    %793 = vmatpush1.msra.mxu0 0.0
    %794 = vmatprep.subr.mxu0 0.0
    %795 = vmatpush1.msra.mxu0 0.0
    %796 = vmatprep.subr.mxu0 0.0
    %797 = vmatpush1.msra.mxu0 0.0
    %798 = vmatprep.subr.mxu0 0.0
    %799 = vmatpush1.msra.mxu0 0.0
    %800 = vmatprep.subr.mxu0 0.0
    %801 = vmatpush1.msra.mxu0 0.0
    %802 = vmatprep.subr.mxu0 0.0
    %803 = vmatpush1.msra.mxu0 0.0
    %804 = vmatprep.subr.mxu0 0.0
    %805 = vmatpush1.msra.mxu0 0.0
    %806 = vmatprep.subr.mxu0 0.0
    %807 = vmatpush1.msra.mxu0 0.0
    %808 = vmatprep.subr.mxu0 0.0
    %809 = vmatpush1.msra.mxu0 0.0
    %810 = vmatprep.subr.mxu0 0.0
    %811 = vmatpush1.msra.mxu0 0.0
    %812 = vmatprep.subr.mxu0 0.0
    %813 = vmatpush1.msra.mxu0 0.0
    %814 = vmatprep.subr.mxu0 0.0
    %815 = vmatpush1.msra.mxu0 0.0
    %816 = vmatprep.subr.mxu0 0.0
    %817 = vmatpush1.msra.mxu0 %v111
    %818 = vmatprep.subr.mxu0 0.0
    %819 = vmatpush1.msra.mxu0 %v110
    %820 = vmatprep.subr.mxu0 0.0
    %821 = vmatpush1.msra.mxu0 %v109
    %822 = vmatprep.subr.mxu0 0.0
    %823 = vmatpush1.msra.mxu0 %v108
    %824 = vmatprep.subr.mxu0 0.0
    %825 = vmatpush2.msra.mxu0 0.0
    %826 = vmatprep.subr.mxu0 0.0
    %827 = vmatpush2.msra.mxu0 0.0
    %828 = vmatprep.subr.mxu0 0.0
    %829 = vmatpush2.msra.mxu0 0.0
    %830 = vmatprep.subr.mxu0 0.0
    %831 = vmatpush2.msra.mxu0 0.0
    %832 = vmatprep.subr.mxu0 0.0
    %833 = vmatpush2.msra.mxu0 0.0
    %834 = vmatprep.subr.mxu0 0.0
    %835 = vmatpush2.msra.mxu0 0.0
    %836 = vmatprep.subr.mxu0 0.0
    %837 = vmatpush2.msra.mxu0 0.0
    %838 = vmatprep.subr.mxu0 0.0
    %839 = vmatpush2.msra.mxu0 0.0
    %840 = vmatprep.subr.mxu0 0.0
    %841 = vmatpush2.msra.mxu0 0.0
    %842 = vmatprep.subr.mxu0 0.0
    %843 = vmatpush2.msra.mxu0 0.0
    %844 = vmatprep.subr.mxu0 0.0
    %845 = vmatpush2.msra.mxu0 0.0
    %846 = vmatprep.subr.mxu0 0.0
    %847 = vmatpush2.msra.mxu0 0.0
    %848 = vmatprep.subr.mxu0 0.0
    %849 = vmatpush2.msra.mxu0 0.0
    %850 = vmatprep.subr.mxu0 0.0
    %851 = vmatpush2.msra.mxu0 0.0
    %852 = vmatprep.subr.mxu0 0.0
    %853 = vmatpush2.msra.mxu0 0.0
    %854 = vmatprep.subr.mxu0 0.0
    %855 = vmatpush2.msra.mxu0 0.0
    %856 = vmatprep.mubr.f32.mxu0 0.0
    %857 = vmatmul.mubr.f32.gmra.mxu0 %v790
    %v858 = vpop.f32.mrf.mxu0
    %v859 = vadd.f32 0.0, %v858
    %v860 = vpop.f32.mrf.mxu0
    %861 = vdwg.mxu0
    %v863 = vrot.slane %v859, 2
    %v865 = vadd.f32 %v88, %v863
    %v866 = vxor.u32 %v865, 2147483648
    %v867 = vmul.f32 %v866, 1.442695
    %v868 = vpow.pop %v867
    %v869 = vadd.f32 %v868, 1.0
    %v870 = vrcp.pop %v869
    %v871 = vmul.f32 1.0, %v870
    %v872 = vtanh.pop %v865
    %v874 = vrot.slane %v664, 6
    %v876 = vmul.f32 %v871, %v874
    %878 = vrot.lane.b32.xlu0 %v872, 64
    %v879 = vpop.permute.xlu0 %878
    %v881 = vmul.f32 %v871, %v879
    %883 = vrot.lane.b32.xlu0 %v881, 32
    %v884 = vpop.permute.xlu0 %883
    %v886 = vadd.f32 %v876, %v884
    %v887 = vtanh.pop %v886
    %889 = vrot.lane.b32.xlu0 %v887, 64
    %v890 = vpop.permute.xlu0 %889
    %v892 = vmul.f32 %v871, %v890
    %v893 = vrot.slane %v776, 2
    %894 = vrot.lane.b32.xlu0 %v893, 32
    %v895 = vpop.permute.xlu0 %894
    %v896 = vsel %vm123, %v895, 0
    %898 = vmatprep.subr.mxu0 0.0
    %899 = vmatpush1.msra.mxu0 0.0
    %900 = vmatprep.subr.mxu0 0.0
    %901 = vmatpush1.msra.mxu0 0.0
    %902 = vmatprep.subr.mxu0 0.0
    %903 = vmatpush1.msra.mxu0 0.0
    %904 = vmatprep.subr.mxu0 0.0
    %905 = vmatpush1.msra.mxu0 0.0
    %906 = vmatprep.subr.mxu0 0.0
    %907 = vmatpush1.msra.mxu0 0.0
    %908 = vmatprep.subr.mxu0 0.0
    %909 = vmatpush1.msra.mxu0 0.0
    %910 = vmatprep.subr.mxu0 0.0
    %911 = vmatpush1.msra.mxu0 0.0
    %912 = vmatprep.subr.mxu0 0.0
    %913 = vmatpush1.msra.mxu0 0.0
    %914 = vmatprep.subr.mxu0 0.0
    %915 = vmatpush1.msra.mxu0 0.0
    %916 = vmatprep.subr.mxu0 0.0
    %917 = vmatpush1.msra.mxu0 0.0
    %918 = vmatprep.subr.mxu0 0.0
    %919 = vmatpush1.msra.mxu0 0.0
    %920 = vmatprep.subr.mxu0 0.0
    %921 = vmatpush1.msra.mxu0 0.0
    %922 = vmatprep.subr.mxu0 0.0
    %923 = vmatpush1.msra.mxu0 %v116
    %924 = vmatprep.subr.mxu0 0.0
    %925 = vmatpush1.msra.mxu0 %v115
    %926 = vmatprep.subr.mxu0 0.0
    %927 = vmatpush1.msra.mxu0 %v114
    %928 = vmatprep.subr.mxu0 0.0
    %929 = vmatpush1.msra.mxu0 %v113
    %930 = vmatprep.subr.mxu0 0.0
    %931 = vmatpush2.msra.mxu0 0.0
    %932 = vmatprep.subr.mxu0 0.0
    %933 = vmatpush2.msra.mxu0 0.0
    %934 = vmatprep.subr.mxu0 0.0
    %935 = vmatpush2.msra.mxu0 0.0
    %936 = vmatprep.subr.mxu0 0.0
    %937 = vmatpush2.msra.mxu0 0.0
    %938 = vmatprep.subr.mxu0 0.0
    %939 = vmatpush2.msra.mxu0 0.0
    %940 = vmatprep.subr.mxu0 0.0
    %941 = vmatpush2.msra.mxu0 0.0
    %942 = vmatprep.subr.mxu0 0.0
    %943 = vmatpush2.msra.mxu0 0.0
    %944 = vmatprep.subr.mxu0 0.0
    %945 = vmatpush2.msra.mxu0 0.0
    %946 = vmatprep.subr.mxu0 0.0
    %947 = vmatpush2.msra.mxu0 0.0
    %948 = vmatprep.subr.mxu0 0.0
    %949 = vmatpush2.msra.mxu0 0.0
    %950 = vmatprep.subr.mxu0 0.0
    %951 = vmatpush2.msra.mxu0 0.0
    %952 = vmatprep.subr.mxu0 0.0
    %953 = vmatpush2.msra.mxu0 0.0
    %954 = vmatprep.subr.mxu0 0.0
    %955 = vmatpush2.msra.mxu0 0.0
    %956 = vmatprep.subr.mxu0 0.0
    %957 = vmatpush2.msra.mxu0 0.0
    %958 = vmatprep.subr.mxu0 0.0
    %959 = vmatpush2.msra.mxu0 0.0
    %960 = vmatprep.subr.mxu0 0.0
    %961 = vmatpush2.msra.mxu0 0.0
    %962 = vmatprep.mubr.f32.mxu0 0.0
    %963 = vmatmul.mubr.f32.gmra.mxu0 %v896
    %v964 = vpop.f32.mrf.mxu0
    %v965 = vadd.f32 0.0, %v964
    %v966 = vpop.f32.mrf.mxu0
    %967 = vdwg.mxu0
    %v968 = vadd.f32 %v107, %v965
    %v969 = vxor.u32 %v968, 2147483648
    %v970 = vmul.f32 %v969, 1.442695
    %v971 = vpow.pop %v970
    %v972 = vadd.f32 %v971, 1.0
    %v973 = vrcp.pop %v972
    %v974 = vmul.f32 1.0, %v973
    %v975 = vtanh.pop %v968
    %v977 = vrot.slane %v770, 2
    %v979 = vmul.f32 %v974, %v977
    %981 = vrot.lane.b32.xlu0 %v975, 64
    %v982 = vpop.permute.xlu0 %981
    %v984 = vmul.f32 %v974, %v982
    %986 = vrot.lane.b32.xlu0 %v984, 32
    %v987 = vpop.permute.xlu0 %986
    %v989 = vadd.f32 %v979, %v987
    %v990 = vtanh.pop %v989
    %992 = vrot.lane.b32.xlu0 %v990, 64
    %v993 = vpop.permute.xlu0 %992
    %v995 = vmul.f32 %v974, %v993
    %997 = vrot.lane.b32.xlu0 %v892, 32
    %v998 = vpop.permute.xlu0 %997
    %1000 = vst.msk [vmem:[#allocation2] sm:$0xc0] %vm342, %v998
    %1002 = vrot.lane.b32.xlu0 %v995, 32
    %v1003 = vpop.permute.xlu0 %1002
    %1005 = vst.msk [vmem:[#allocation3 + $0x8] sm:$0x3] %vm336, %v1003
    %v1006 = vrot.slane %v892, 6
    %1007 = vrot.lane.b32.xlu0 %v1006, 32
    %v1008 = vpop.permute.xlu0 %1007
    %v1009 = vsel %vm123, %v1008, 0
    %1011 = vmatprep.subr.mxu0 0.0
    %1012 = vmatpush1.msra.mxu0 0.0
    %1013 = vmatprep.subr.mxu0 0.0
    %1014 = vmatpush1.msra.mxu0 0.0
    %1015 = vmatprep.subr.mxu0 0.0
    %1016 = vmatpush1.msra.mxu0 0.0
    %1017 = vmatprep.subr.mxu0 0.0
    %1018 = vmatpush1.msra.mxu0 0.0
    %1019 = vmatprep.subr.mxu0 0.0
    %1020 = vmatpush1.msra.mxu0 0.0
    %1021 = vmatprep.subr.mxu0 0.0
    %1022 = vmatpush1.msra.mxu0 0.0
    %1023 = vmatprep.subr.mxu0 0.0
    %1024 = vmatpush1.msra.mxu0 0.0
    %1025 = vmatprep.subr.mxu0 0.0
    %1026 = vmatpush1.msra.mxu0 0.0
    %1027 = vmatprep.subr.mxu0 0.0
    %1028 = vmatpush1.msra.mxu0 0.0
    %1029 = vmatprep.subr.mxu0 0.0
    %1030 = vmatpush1.msra.mxu0 0.0
    %1031 = vmatprep.subr.mxu0 0.0
    %1032 = vmatpush1.msra.mxu0 0.0
    %1033 = vmatprep.subr.mxu0 0.0
    %1034 = vmatpush1.msra.mxu0 0.0
    %1035 = vmatprep.subr.mxu0 0.0
    %1036 = vmatpush1.msra.mxu0 %v111
    %1037 = vmatprep.subr.mxu0 0.0
    %1038 = vmatpush1.msra.mxu0 %v110
    %1039 = vmatprep.subr.mxu0 0.0
    %1040 = vmatpush1.msra.mxu0 %v109
    %1041 = vmatprep.subr.mxu0 0.0
    %1042 = vmatpush1.msra.mxu0 %v108
    %1043 = vmatprep.subr.mxu0 0.0
    %1044 = vmatpush2.msra.mxu0 0.0
    %1045 = vmatprep.subr.mxu0 0.0
    %1046 = vmatpush2.msra.mxu0 0.0
    %1047 = vmatprep.subr.mxu0 0.0
    %1048 = vmatpush2.msra.mxu0 0.0
    %1049 = vmatprep.subr.mxu0 0.0
    %1050 = vmatpush2.msra.mxu0 0.0
    %1051 = vmatprep.subr.mxu0 0.0
    %1052 = vmatpush2.msra.mxu0 0.0
    %1053 = vmatprep.subr.mxu0 0.0
    %1054 = vmatpush2.msra.mxu0 0.0
    %1055 = vmatprep.subr.mxu0 0.0
    %1056 = vmatpush2.msra.mxu0 0.0
    %1057 = vmatprep.subr.mxu0 0.0
    %1058 = vmatpush2.msra.mxu0 0.0
    %1059 = vmatprep.subr.mxu0 0.0
    %1060 = vmatpush2.msra.mxu0 0.0
    %1061 = vmatprep.subr.mxu0 0.0
    %1062 = vmatpush2.msra.mxu0 0.0
    %1063 = vmatprep.subr.mxu0 0.0
    %1064 = vmatpush2.msra.mxu0 0.0
    %1065 = vmatprep.subr.mxu0 0.0
    %1066 = vmatpush2.msra.mxu0 0.0
    %1067 = vmatprep.subr.mxu0 0.0
    %1068 = vmatpush2.msra.mxu0 0.0
    %1069 = vmatprep.subr.mxu0 0.0
    %1070 = vmatpush2.msra.mxu0 0.0
    %1071 = vmatprep.subr.mxu0 0.0
    %1072 = vmatpush2.msra.mxu0 0.0
    %1073 = vmatprep.subr.mxu0 0.0
    %1074 = vmatpush2.msra.mxu0 0.0
    %1075 = vmatprep.mubr.f32.mxu0 0.0
    %1076 = vmatmul.mubr.f32.gmra.mxu0 %v1009
    %v1077 = vpop.f32.mrf.mxu0
    %v1078 = vadd.f32 0.0, %v1077
    %v1079 = vpop.f32.mrf.mxu0
    %1080 = vdwg.mxu0
    %v1081 = vadd.f32 %v89, %v1078
    %v1082 = vxor.u32 %v1081, 2147483648
    %v1083 = vmul.f32 %v1082, 1.442695
    %v1084 = vpow.pop %v1083
    %v1085 = vadd.f32 %v1084, 1.0
    %v1086 = vrcp.pop %v1085
    %v1087 = vmul.f32 1.0, %v1086
    %v1088 = vtanh.pop %v1081
    %v1090 = vrot.slane %v886, 6
    %v1092 = vmul.f32 %v1087, %v1090
    %1094 = vrot.lane.b32.xlu0 %v1088, 64
    %v1095 = vpop.permute.xlu0 %1094
    %v1097 = vmul.f32 %v1087, %v1095
    %1099 = vrot.lane.b32.xlu0 %v1097, 32
    %v1100 = vpop.permute.xlu0 %1099
    %v1102 = vadd.f32 %v1092, %v1100
    %v1103 = vtanh.pop %v1102
    %1105 = vrot.lane.b32.xlu0 %v1103, 64
    %v1106 = vpop.permute.xlu0 %1105
    %v1108 = vmul.f32 %v1087, %v1106
    %v1109 = vsel %vm123, %v1003, 0
    %1111 = vmatprep.subr.mxu0 0.0
    %1112 = vmatpush1.msra.mxu0 0.0
    %1113 = vmatprep.subr.mxu0 0.0
    %1114 = vmatpush1.msra.mxu0 0.0
    %1115 = vmatprep.subr.mxu0 0.0
    %1116 = vmatpush1.msra.mxu0 0.0
    %1117 = vmatprep.subr.mxu0 0.0
    %1118 = vmatpush1.msra.mxu0 0.0
    %1119 = vmatprep.subr.mxu0 0.0
    %1120 = vmatpush1.msra.mxu0 0.0
    %1121 = vmatprep.subr.mxu0 0.0
    %1122 = vmatpush1.msra.mxu0 0.0
    %1123 = vmatprep.subr.mxu0 0.0
    %1124 = vmatpush1.msra.mxu0 0.0
    %1125 = vmatprep.subr.mxu0 0.0
    %1126 = vmatpush1.msra.mxu0 0.0
    %1127 = vmatprep.subr.mxu0 0.0
    %1128 = vmatpush1.msra.mxu0 0.0
    %1129 = vmatprep.subr.mxu0 0.0
    %1130 = vmatpush1.msra.mxu0 0.0
    %1131 = vmatprep.subr.mxu0 0.0
    %1132 = vmatpush1.msra.mxu0 0.0
    %1133 = vmatprep.subr.mxu0 0.0
    %1134 = vmatpush1.msra.mxu0 0.0
    %1135 = vmatprep.subr.mxu0 0.0
    %1136 = vmatpush1.msra.mxu0 %v116
    %1137 = vmatprep.subr.mxu0 0.0
    %1138 = vmatpush1.msra.mxu0 %v115
    %1139 = vmatprep.subr.mxu0 0.0
    %1140 = vmatpush1.msra.mxu0 %v114
    %1141 = vmatprep.subr.mxu0 0.0
    %1142 = vmatpush1.msra.mxu0 %v113
    %1143 = vmatprep.subr.mxu0 0.0
    %1144 = vmatpush2.msra.mxu0 0.0
    %1145 = vmatprep.subr.mxu0 0.0
    %1146 = vmatpush2.msra.mxu0 0.0
    %1147 = vmatprep.subr.mxu0 0.0
    %1148 = vmatpush2.msra.mxu0 0.0
    %1149 = vmatprep.subr.mxu0 0.0
    %1150 = vmatpush2.msra.mxu0 0.0
    %1151 = vmatprep.subr.mxu0 0.0
    %1152 = vmatpush2.msra.mxu0 0.0
    %1153 = vmatprep.subr.mxu0 0.0
    %1154 = vmatpush2.msra.mxu0 0.0
    %1155 = vmatprep.subr.mxu0 0.0
    %1156 = vmatpush2.msra.mxu0 0.0
    %1157 = vmatprep.subr.mxu0 0.0
    %1158 = vmatpush2.msra.mxu0 0.0
    %1159 = vmatprep.subr.mxu0 0.0
    %1160 = vmatpush2.msra.mxu0 0.0
    %1161 = vmatprep.subr.mxu0 0.0
    %1162 = vmatpush2.msra.mxu0 0.0
    %1163 = vmatprep.subr.mxu0 0.0
    %1164 = vmatpush2.msra.mxu0 0.0
    %1165 = vmatprep.subr.mxu0 0.0
    %1166 = vmatpush2.msra.mxu0 0.0
    %1167 = vmatprep.subr.mxu0 0.0
    %1168 = vmatpush2.msra.mxu0 0.0
    %1169 = vmatprep.subr.mxu0 0.0
    %1170 = vmatpush2.msra.mxu0 0.0
    %1171 = vmatprep.subr.mxu0 0.0
    %1172 = vmatpush2.msra.mxu0 0.0
    %1173 = vmatprep.subr.mxu0 0.0
    %1174 = vmatpush2.msra.mxu0 0.0
    %1175 = vmatprep.mubr.f32.mxu0 0.0
    %1176 = vmatmul.mubr.f32.gmra.mxu0 %v1109
    %v1177 = vpop.f32.mrf.mxu0
    %v1178 = vadd.f32 0.0, %v1177
    %v1179 = vpop.f32.mrf.mxu0
    %1180 = vdwg.mxu0
    %v1182 = vrot.slane %v1178, 2
    %v1184 = vadd.f32 %v106, %v1182
    %v1185 = vxor.u32 %v1184, 2147483648
    %v1186 = vmul.f32 %v1185, 1.442695
    %v1187 = vpow.pop %v1186
    %v1188 = vadd.f32 %v1187, 1.0
    %v1189 = vrcp.pop %v1188
    %v1190 = vmul.f32 1.0, %v1189
    %v1191 = vtanh.pop %v1184
    %v1193 = vrot.slane %v989, 2
    %v1195 = vmul.f32 %v1190, %v1193
    %1197 = vrot.lane.b32.xlu0 %v1191, 64
    %v1198 = vpop.permute.xlu0 %1197
    %v1200 = vmul.f32 %v1190, %v1198
    %1202 = vrot.lane.b32.xlu0 %v1200, 32
    %v1203 = vpop.permute.xlu0 %1202
    %v1205 = vadd.f32 %v1195, %v1203
    %v1206 = vtanh.pop %v1205
    %1208 = vrot.lane.b32.xlu0 %v1206, 64
    %v1209 = vpop.permute.xlu0 %1208
    %v1211 = vmul.f32 %v1190, %v1209
    %1213 = vrot.lane.b32.xlu0 %v1108, 32
    %v1214 = vpop.permute.xlu0 %1213
    %1216 = vst.msk [vmem:[#allocation2 + $0x8] sm:$0x3] %vm336, %v1214
    %1218 = vrot.lane.b32.xlu0 %v1211, 32
    %v1219 = vpop.permute.xlu0 %1218
    %1221 = vst.msk [vmem:[#allocation3] sm:$0xc0] %vm342, %v1219
    %v1222 = vsel %vm123, %v1214, 0
    %1224 = vmatprep.subr.mxu0 0.0
    %1225 = vmatpush1.msra.mxu0 0.0
    %1226 = vmatprep.subr.mxu0 0.0
    %1227 = vmatpush1.msra.mxu0 0.0
    %1228 = vmatprep.subr.mxu0 0.0
    %1229 = vmatpush1.msra.mxu0 0.0
    %1230 = vmatprep.subr.mxu0 0.0
    %1231 = vmatpush1.msra.mxu0 0.0
    %1232 = vmatprep.subr.mxu0 0.0
    %1233 = vmatpush1.msra.mxu0 0.0
    %1234 = vmatprep.subr.mxu0 0.0
    %1235 = vmatpush1.msra.mxu0 0.0
    %1236 = vmatprep.subr.mxu0 0.0
    %1237 = vmatpush1.msra.mxu0 0.0
    %1238 = vmatprep.subr.mxu0 0.0
    %1239 = vmatpush1.msra.mxu0 0.0
    %1240 = vmatprep.subr.mxu0 0.0
    %1241 = vmatpush1.msra.mxu0 0.0
    %1242 = vmatprep.subr.mxu0 0.0
    %1243 = vmatpush1.msra.mxu0 0.0
    %1244 = vmatprep.subr.mxu0 0.0
    %1245 = vmatpush1.msra.mxu0 0.0
    %1246 = vmatprep.subr.mxu0 0.0
    %1247 = vmatpush1.msra.mxu0 0.0
    %1248 = vmatprep.subr.mxu0 0.0
    %1249 = vmatpush1.msra.mxu0 %v111
    %1250 = vmatprep.subr.mxu0 0.0
    %1251 = vmatpush1.msra.mxu0 %v110
    %1252 = vmatprep.subr.mxu0 0.0
    %1253 = vmatpush1.msra.mxu0 %v109
    %1254 = vmatprep.subr.mxu0 0.0
    %1255 = vmatpush1.msra.mxu0 %v108
    %1256 = vmatprep.subr.mxu0 0.0
    %1257 = vmatpush2.msra.mxu0 0.0
    %1258 = vmatprep.subr.mxu0 0.0
    %1259 = vmatpush2.msra.mxu0 0.0
    %1260 = vmatprep.subr.mxu0 0.0
    %1261 = vmatpush2.msra.mxu0 0.0
    %1262 = vmatprep.subr.mxu0 0.0
    %1263 = vmatpush2.msra.mxu0 0.0
    %1264 = vmatprep.subr.mxu0 0.0
    %1265 = vmatpush2.msra.mxu0 0.0
    %1266 = vmatprep.subr.mxu0 0.0
    %1267 = vmatpush2.msra.mxu0 0.0
    %1268 = vmatprep.subr.mxu0 0.0
    %1269 = vmatpush2.msra.mxu0 0.0
    %1270 = vmatprep.subr.mxu0 0.0
    %1271 = vmatpush2.msra.mxu0 0.0
    %1272 = vmatprep.subr.mxu0 0.0
    %1273 = vmatpush2.msra.mxu0 0.0
    %1274 = vmatprep.subr.mxu0 0.0
    %1275 = vmatpush2.msra.mxu0 0.0
    %1276 = vmatprep.subr.mxu0 0.0
    %1277 = vmatpush2.msra.mxu0 0.0
    %1278 = vmatprep.subr.mxu0 0.0
    %1279 = vmatpush2.msra.mxu0 0.0
    %1280 = vmatprep.subr.mxu0 0.0
    %1281 = vmatpush2.msra.mxu0 0.0
    %1282 = vmatprep.subr.mxu0 0.0
    %1283 = vmatpush2.msra.mxu0 0.0
    %1284 = vmatprep.subr.mxu0 0.0
    %1285 = vmatpush2.msra.mxu0 0.0
    %1286 = vmatprep.subr.mxu0 0.0
    %1287 = vmatpush2.msra.mxu0 0.0
    %1288 = vmatprep.mubr.f32.mxu0 0.0
    %1289 = vmatmul.mubr.f32.gmra.mxu0 %v1222
    %v1290 = vpop.f32.mrf.mxu0
    %v1291 = vadd.f32 0.0, %v1290
    %v1292 = vpop.f32.mrf.mxu0
    %1293 = vdwg.mxu0
    %v1295 = vrot.slane %v1291, 6
    %v1297 = vadd.f32 %v89, %v1295
    %v1298 = vxor.u32 %v1297, 2147483648
    %v1299 = vmul.f32 %v1298, 1.442695
    %v1300 = vpow.pop %v1299
    %v1301 = vadd.f32 %v1300, 1.0
    %v1302 = vrcp.pop %v1301
    %v1303 = vmul.f32 1.0, %v1302
    %v1304 = vtanh.pop %v1297
    %v1306 = vrot.slane %v1102, 6
    %v1308 = vmul.f32 %v1303, %v1306
    %1310 = vrot.lane.b32.xlu0 %v1304, 64
    %v1311 = vpop.permute.xlu0 %1310
    %v1313 = vmul.f32 %v1303, %v1311
    %1315 = vrot.lane.b32.xlu0 %v1313, 32
    %v1316 = vpop.permute.xlu0 %1315
    %v1318 = vadd.f32 %v1308, %v1316
    %v1319 = vtanh.pop %v1318
    %1321 = vrot.lane.b32.xlu0 %v1319, 64
    %v1322 = vpop.permute.xlu0 %1321
    %v1324 = vmul.f32 %v1303, %v1322
    %v1325 = vrot.slane %v1211, 6
    %1326 = vrot.lane.b32.xlu0 %v1325, 32
    %v1327 = vpop.permute.xlu0 %1326
    %v1328 = vsel %vm123, %v1327, 0
    %1330 = vmatprep.subr.mxu0 0.0
    %1331 = vmatpush1.msra.mxu0 0.0
    %1332 = vmatprep.subr.mxu0 0.0
    %1333 = vmatpush1.msra.mxu0 0.0
    %1334 = vmatprep.subr.mxu0 0.0
    %1335 = vmatpush1.msra.mxu0 0.0
    %1336 = vmatprep.subr.mxu0 0.0
    %1337 = vmatpush1.msra.mxu0 0.0
    %1338 = vmatprep.subr.mxu0 0.0
    %1339 = vmatpush1.msra.mxu0 0.0
    %1340 = vmatprep.subr.mxu0 0.0
    %1341 = vmatpush1.msra.mxu0 0.0
    %1342 = vmatprep.subr.mxu0 0.0
    %1343 = vmatpush1.msra.mxu0 0.0
    %1344 = vmatprep.subr.mxu0 0.0
    %1345 = vmatpush1.msra.mxu0 0.0
    %1346 = vmatprep.subr.mxu0 0.0
    %1347 = vmatpush1.msra.mxu0 0.0
    %1348 = vmatprep.subr.mxu0 0.0
    %1349 = vmatpush1.msra.mxu0 0.0
    %1350 = vmatprep.subr.mxu0 0.0
    %1351 = vmatpush1.msra.mxu0 0.0
    %1352 = vmatprep.subr.mxu0 0.0
    %1353 = vmatpush1.msra.mxu0 0.0
    %1354 = vmatprep.subr.mxu0 0.0
    %1355 = vmatpush1.msra.mxu0 %v116
    %1356 = vmatprep.subr.mxu0 0.0
    %1357 = vmatpush1.msra.mxu0 %v115
    %1358 = vmatprep.subr.mxu0 0.0
    %1359 = vmatpush1.msra.mxu0 %v114
    %1360 = vmatprep.subr.mxu0 0.0
    %1361 = vmatpush1.msra.mxu0 %v113
    %1362 = vmatprep.subr.mxu0 0.0
    %1363 = vmatpush2.msra.mxu0 0.0
    %1364 = vmatprep.subr.mxu0 0.0
    %1365 = vmatpush2.msra.mxu0 0.0
    %1366 = vmatprep.subr.mxu0 0.0
    %1367 = vmatpush2.msra.mxu0 0.0
    %1368 = vmatprep.subr.mxu0 0.0
    %1369 = vmatpush2.msra.mxu0 0.0
    %1370 = vmatprep.subr.mxu0 0.0
    %1371 = vmatpush2.msra.mxu0 0.0
    %1372 = vmatprep.subr.mxu0 0.0
    %1373 = vmatpush2.msra.mxu0 0.0
    %1374 = vmatprep.subr.mxu0 0.0
    %1375 = vmatpush2.msra.mxu0 0.0
    %1376 = vmatprep.subr.mxu0 0.0
    %1377 = vmatpush2.msra.mxu0 0.0
    %1378 = vmatprep.subr.mxu0 0.0
    %1379 = vmatpush2.msra.mxu0 0.0
    %1380 = vmatprep.subr.mxu0 0.0
    %1381 = vmatpush2.msra.mxu0 0.0
    %1382 = vmatprep.subr.mxu0 0.0
    %1383 = vmatpush2.msra.mxu0 0.0
    %1384 = vmatprep.subr.mxu0 0.0
    %1385 = vmatpush2.msra.mxu0 0.0
    %1386 = vmatprep.subr.mxu0 0.0
    %1387 = vmatpush2.msra.mxu0 0.0
    %1388 = vmatprep.subr.mxu0 0.0
    %1389 = vmatpush2.msra.mxu0 0.0
    %1390 = vmatprep.subr.mxu0 0.0
    %1391 = vmatpush2.msra.mxu0 0.0
    %1392 = vmatprep.subr.mxu0 0.0
    %1393 = vmatpush2.msra.mxu0 0.0
    %1394 = vmatprep.mubr.f32.mxu0 0.0
    %1395 = vmatmul.mubr.f32.gmra.mxu0 %v1328
    %v1396 = vpop.f32.mrf.mxu0
    %v1397 = vadd.f32 0.0, %v1396
    %v1398 = vpop.f32.mrf.mxu0
    %1399 = vdwg.mxu0
    %v1401 = vrot.slane %v1397, 4
    %v1403 = vadd.f32 %v106, %v1401
    %v1404 = vxor.u32 %v1403, 2147483648
    %v1405 = vmul.f32 %v1404, 1.442695
    %v1406 = vpow.pop %v1405
    %v1407 = vadd.f32 %v1406, 1.0
    %v1408 = vrcp.pop %v1407
    %v1409 = vmul.f32 1.0, %v1408
    %v1410 = vtanh.pop %v1403
    %v1412 = vrot.slane %v1205, 2
    %v1414 = vmul.f32 %v1409, %v1412
    %1416 = vrot.lane.b32.xlu0 %v1410, 64
    %v1417 = vpop.permute.xlu0 %1416
    %v1419 = vmul.f32 %v1409, %v1417
    %1421 = vrot.lane.b32.xlu0 %v1419, 32
    %v1422 = vpop.permute.xlu0 %1421
    %v1424 = vadd.f32 %v1414, %v1422
    %v1425 = vtanh.pop %v1424
    %1427 = vrot.lane.b32.xlu0 %v1425, 64
    %v1428 = vpop.permute.xlu0 %1427
    %v1430 = vmul.f32 %v1409, %v1428
    %1432 = vrot.lane.b32.xlu0 %v1324, 32
    %v1433 = vpop.permute.xlu0 %1432
    %1435 = vst.msk [vmem:[#allocation2 + $0x8] sm:$0xc] %vm557, %v1433
    %1437 = vrot.lane.b32.xlu0 %v1430, 32
    %v1438 = vpop.permute.xlu0 %1437
    %1440 = vst.msk [vmem:[#allocation3] sm:$0x30] %vm563, %v1438
    %v1441 = vrot.slane %v1324, 2
    %1442 = vrot.lane.b32.xlu0 %v1441, 32
    %v1443 = vpop.permute.xlu0 %1442
    %v1444 = vsel %vm123, %v1443, 0
    %1446 = vmatprep.subr.mxu0 0.0
    %1447 = vmatpush1.msra.mxu0 0.0
    %1448 = vmatprep.subr.mxu0 0.0
    %1449 = vmatpush1.msra.mxu0 0.0
    %1450 = vmatprep.subr.mxu0 0.0
    %1451 = vmatpush1.msra.mxu0 0.0
    %1452 = vmatprep.subr.mxu0 0.0
    %1453 = vmatpush1.msra.mxu0 0.0
    %1454 = vmatprep.subr.mxu0 0.0
    %1455 = vmatpush1.msra.mxu0 0.0
    %1456 = vmatprep.subr.mxu0 0.0
    %1457 = vmatpush1.msra.mxu0 0.0
    %1458 = vmatprep.subr.mxu0 0.0
    %1459 = vmatpush1.msra.mxu0 0.0
    %1460 = vmatprep.subr.mxu0 0.0
    %1461 = vmatpush1.msra.mxu0 0.0
    %1462 = vmatprep.subr.mxu0 0.0
    %1463 = vmatpush1.msra.mxu0 0.0
    %1464 = vmatprep.subr.mxu0 0.0
    %1465 = vmatpush1.msra.mxu0 0.0
    %1466 = vmatprep.subr.mxu0 0.0
    %1467 = vmatpush1.msra.mxu0 0.0
    %1468 = vmatprep.subr.mxu0 0.0
    %1469 = vmatpush1.msra.mxu0 0.0
    %1470 = vmatprep.subr.mxu0 0.0
    %1471 = vmatpush1.msra.mxu0 %v111
    %1472 = vmatprep.subr.mxu0 0.0
    %1473 = vmatpush1.msra.mxu0 %v110
    %1474 = vmatprep.subr.mxu0 0.0
    %1475 = vmatpush1.msra.mxu0 %v109
    %1476 = vmatprep.subr.mxu0 0.0
    %1477 = vmatpush1.msra.mxu0 %v108
    %1478 = vmatprep.subr.mxu0 0.0
    %1479 = vmatpush2.msra.mxu0 0.0
    %1480 = vmatprep.subr.mxu0 0.0
    %1481 = vmatpush2.msra.mxu0 0.0
    %1482 = vmatprep.subr.mxu0 0.0
    %1483 = vmatpush2.msra.mxu0 0.0
    %1484 = vmatprep.subr.mxu0 0.0
    %1485 = vmatpush2.msra.mxu0 0.0
    %1486 = vmatprep.subr.mxu0 0.0
    %1487 = vmatpush2.msra.mxu0 0.0
    %1488 = vmatprep.subr.mxu0 0.0
    %1489 = vmatpush2.msra.mxu0 0.0
    %1490 = vmatprep.subr.mxu0 0.0
    %1491 = vmatpush2.msra.mxu0 0.0
    %1492 = vmatprep.subr.mxu0 0.0
    %1493 = vmatpush2.msra.mxu0 0.0
    %1494 = vmatprep.subr.mxu0 0.0
    %1495 = vmatpush2.msra.mxu0 0.0
    %1496 = vmatprep.subr.mxu0 0.0
    %1497 = vmatpush2.msra.mxu0 0.0
    %1498 = vmatprep.subr.mxu0 0.0
    %1499 = vmatpush2.msra.mxu0 0.0
    %1500 = vmatprep.subr.mxu0 0.0
    %1501 = vmatpush2.msra.mxu0 0.0
    %1502 = vmatprep.subr.mxu0 0.0
    %1503 = vmatpush2.msra.mxu0 0.0
    %1504 = vmatprep.subr.mxu0 0.0
    %1505 = vmatpush2.msra.mxu0 0.0
    %1506 = vmatprep.subr.mxu0 0.0
    %1507 = vmatpush2.msra.mxu0 0.0
    %1508 = vmatprep.subr.mxu0 0.0
    %1509 = vmatpush2.msra.mxu0 0.0
    %1510 = vmatprep.mubr.f32.mxu0 0.0
    %1511 = vmatmul.mubr.f32.gmra.mxu0 %v1444
    %v1512 = vpop.f32.mrf.mxu0
    %v1513 = vadd.f32 0.0, %v1512
    %v1514 = vpop.f32.mrf.mxu0
    %1515 = vdwg.mxu0
    %v1517 = vrot.slane %v1513, 4
    %v1519 = vadd.f32 %v89, %v1517
    %v1520 = vxor.u32 %v1519, 2147483648
    %v1521 = vmul.f32 %v1520, 1.442695
    %v1522 = vpow.pop %v1521
    %v1523 = vadd.f32 %v1522, 1.0
    %v1524 = vrcp.pop %v1523
    %v1525 = vmul.f32 1.0, %v1524
    %v1526 = vtanh.pop %v1519
    %v1528 = vrot.slane %v1318, 6
    %v1530 = vmul.f32 %v1525, %v1528
    %1532 = vrot.lane.b32.xlu0 %v1526, 64
    %v1533 = vpop.permute.xlu0 %1532
    %v1535 = vmul.f32 %v1525, %v1533
    %1537 = vrot.lane.b32.xlu0 %v1535, 32
    %v1538 = vpop.permute.xlu0 %1537
    %v1540 = vadd.f32 %v1530, %v1538
    %v1541 = vtanh.pop %v1540
    %1543 = vrot.lane.b32.xlu0 %v1541, 64
    %v1544 = vpop.permute.xlu0 %1543
    %v1546 = vmul.f32 %v1525, %v1544
    %v1547 = vrot.slane %v1430, 4
    %1548 = vrot.lane.b32.xlu0 %v1547, 32
    %v1549 = vpop.permute.xlu0 %1548
    %v1550 = vsel %vm123, %v1549, 0
    %1552 = vmatprep.subr.mxu0 0.0
    %1553 = vmatpush1.msra.mxu0 0.0
    %1554 = vmatprep.subr.mxu0 0.0
    %1555 = vmatpush1.msra.mxu0 0.0
    %1556 = vmatprep.subr.mxu0 0.0
    %1557 = vmatpush1.msra.mxu0 0.0
    %1558 = vmatprep.subr.mxu0 0.0
    %1559 = vmatpush1.msra.mxu0 0.0
    %1560 = vmatprep.subr.mxu0 0.0
    %1561 = vmatpush1.msra.mxu0 0.0
    %1562 = vmatprep.subr.mxu0 0.0
    %1563 = vmatpush1.msra.mxu0 0.0
    %1564 = vmatprep.subr.mxu0 0.0
    %1565 = vmatpush1.msra.mxu0 0.0
    %1566 = vmatprep.subr.mxu0 0.0
    %1567 = vmatpush1.msra.mxu0 0.0
    %1568 = vmatprep.subr.mxu0 0.0
    %1569 = vmatpush1.msra.mxu0 0.0
    %1570 = vmatprep.subr.mxu0 0.0
    %1571 = vmatpush1.msra.mxu0 0.0
    %1572 = vmatprep.subr.mxu0 0.0
    %1573 = vmatpush1.msra.mxu0 0.0
    %1574 = vmatprep.subr.mxu0 0.0
    %1575 = vmatpush1.msra.mxu0 0.0
    %1576 = vmatprep.subr.mxu0 0.0
    %1577 = vmatpush1.msra.mxu0 %v116
    %1578 = vmatprep.subr.mxu0 0.0
    %1579 = vmatpush1.msra.mxu0 %v115
    %1580 = vmatprep.subr.mxu0 0.0
    %1581 = vmatpush1.msra.mxu0 %v114
    %1582 = vmatprep.subr.mxu0 0.0
    %1583 = vmatpush1.msra.mxu0 %v113
    %1584 = vmatprep.subr.mxu0 0.0
    %1585 = vmatpush2.msra.mxu0 0.0
    %1586 = vmatprep.subr.mxu0 0.0
    %1587 = vmatpush2.msra.mxu0 0.0
    %1588 = vmatprep.subr.mxu0 0.0
    %1589 = vmatpush2.msra.mxu0 0.0
    %1590 = vmatprep.subr.mxu0 0.0
    %1591 = vmatpush2.msra.mxu0 0.0
    %1592 = vmatprep.subr.mxu0 0.0
    %1593 = vmatpush2.msra.mxu0 0.0
    %1594 = vmatprep.subr.mxu0 0.0
    %1595 = vmatpush2.msra.mxu0 0.0
    %1596 = vmatprep.subr.mxu0 0.0
    %1597 = vmatpush2.msra.mxu0 0.0
    %1598 = vmatprep.subr.mxu0 0.0
    %1599 = vmatpush2.msra.mxu0 0.0
    %1600 = vmatprep.subr.mxu0 0.0
    %1601 = vmatpush2.msra.mxu0 0.0
    %1602 = vmatprep.subr.mxu0 0.0
    %1603 = vmatpush2.msra.mxu0 0.0
    %1604 = vmatprep.subr.mxu0 0.0
    %1605 = vmatpush2.msra.mxu0 0.0
    %1606 = vmatprep.subr.mxu0 0.0
    %1607 = vmatpush2.msra.mxu0 0.0
    %1608 = vmatprep.subr.mxu0 0.0
    %1609 = vmatpush2.msra.mxu0 0.0
    %1610 = vmatprep.subr.mxu0 0.0
    %1611 = vmatpush2.msra.mxu0 0.0
    %1612 = vmatprep.subr.mxu0 0.0
    %1613 = vmatpush2.msra.mxu0 0.0
    %1614 = vmatprep.subr.mxu0 0.0
    %1615 = vmatpush2.msra.mxu0 0.0
    %1616 = vmatprep.mubr.f32.mxu0 0.0
    %1617 = vmatmul.mubr.f32.gmra.mxu0 %v1550
    %v1618 = vpop.f32.mrf.mxu0
    %v1619 = vadd.f32 0.0, %v1618
    %v1620 = vpop.f32.mrf.mxu0
    %1621 = vdwg.mxu0
    %v1623 = vrot.slane %v1619, 6
    %v1625 = vadd.f32 %v106, %v1623
    %v1626 = vxor.u32 %v1625, 2147483648
    %v1627 = vmul.f32 %v1626, 1.442695
    %v1628 = vpow.pop %v1627
    %v1629 = vadd.f32 %v1628, 1.0
    %v1630 = vrcp.pop %v1629
    %v1631 = vmul.f32 1.0, %v1630
    %v1632 = vtanh.pop %v1625
    %v1634 = vrot.slane %v1424, 2
    %v1636 = vmul.f32 %v1631, %v1634
    %1638 = vrot.lane.b32.xlu0 %v1632, 64
    %v1639 = vpop.permute.xlu0 %1638
    %v1641 = vmul.f32 %v1631, %v1639
    %1643 = vrot.lane.b32.xlu0 %v1641, 32
    %v1644 = vpop.permute.xlu0 %1643
    %v1646 = vadd.f32 %v1636, %v1644
    %v1647 = vtanh.pop %v1646
    %1649 = vrot.lane.b32.xlu0 %v1647, 64
    %v1650 = vpop.permute.xlu0 %1649
    %v1652 = vmul.f32 %v1631, %v1650
    %1654 = vrot.lane.b32.xlu0 %v1546, 32
    %v1655 = vpop.permute.xlu0 %1654
    %1657 = vst.msk [vmem:[#allocation2 + $0x8] sm:$0x30] %vm563, %v1655
    %1659 = vrot.lane.b32.xlu0 %v1652, 32
    %v1660 = vpop.permute.xlu0 %1659
    %1662 = vst.msk [vmem:[#allocation3] sm:$0xc] %vm557, %v1660
    %v1663 = vrot.slane %v1546, 4
    %1664 = vrot.lane.b32.xlu0 %v1663, 32
    %v1665 = vpop.permute.xlu0 %1664
    %v1666 = vsel %vm123, %v1665, 0
    %1668 = vmatprep.subr.mxu0 0.0
    %1669 = vmatpush1.msra.mxu0 0.0
    %1670 = vmatprep.subr.mxu0 0.0
    %1671 = vmatpush1.msra.mxu0 0.0
    %1672 = vmatprep.subr.mxu0 0.0
    %1673 = vmatpush1.msra.mxu0 0.0
    %1674 = vmatprep.subr.mxu0 0.0
    %1675 = vmatpush1.msra.mxu0 0.0
    %1676 = vmatprep.subr.mxu0 0.0
    %1677 = vmatpush1.msra.mxu0 0.0
    %1678 = vmatprep.subr.mxu0 0.0
    %1679 = vmatpush1.msra.mxu0 0.0
    %1680 = vmatprep.subr.mxu0 0.0
    %1681 = vmatpush1.msra.mxu0 0.0
    %1682 = vmatprep.subr.mxu0 0.0
    %1683 = vmatpush1.msra.mxu0 0.0
    %1684 = vmatprep.subr.mxu0 0.0
    %1685 = vmatpush1.msra.mxu0 0.0
    %1686 = vmatprep.subr.mxu0 0.0
    %1687 = vmatpush1.msra.mxu0 0.0
    %1688 = vmatprep.subr.mxu0 0.0
    %1689 = vmatpush1.msra.mxu0 0.0
    %1690 = vmatprep.subr.mxu0 0.0
    %1691 = vmatpush1.msra.mxu0 0.0
    %1692 = vmatprep.subr.mxu0 0.0
    %1693 = vmatpush1.msra.mxu0 %v111
    %1694 = vmatprep.subr.mxu0 0.0
    %1695 = vmatpush1.msra.mxu0 %v110
    %1696 = vmatprep.subr.mxu0 0.0
    %1697 = vmatpush1.msra.mxu0 %v109
    %1698 = vmatprep.subr.mxu0 0.0
    %1699 = vmatpush1.msra.mxu0 %v108
    %1700 = vmatprep.subr.mxu0 0.0
    %1701 = vmatpush2.msra.mxu0 0.0
    %1702 = vmatprep.subr.mxu0 0.0
    %1703 = vmatpush2.msra.mxu0 0.0
    %1704 = vmatprep.subr.mxu0 0.0
    %1705 = vmatpush2.msra.mxu0 0.0
    %1706 = vmatprep.subr.mxu0 0.0
    %1707 = vmatpush2.msra.mxu0 0.0
    %1708 = vmatprep.subr.mxu0 0.0
    %1709 = vmatpush2.msra.mxu0 0.0
    %1710 = vmatprep.subr.mxu0 0.0
    %1711 = vmatpush2.msra.mxu0 0.0
    %1712 = vmatprep.subr.mxu0 0.0
    %1713 = vmatpush2.msra.mxu0 0.0
    %1714 = vmatprep.subr.mxu0 0.0
    %1715 = vmatpush2.msra.mxu0 0.0
    %1716 = vmatprep.subr.mxu0 0.0
    %1717 = vmatpush2.msra.mxu0 0.0
    %1718 = vmatprep.subr.mxu0 0.0
    %1719 = vmatpush2.msra.mxu0 0.0
    %1720 = vmatprep.subr.mxu0 0.0
    %1721 = vmatpush2.msra.mxu0 0.0
    %1722 = vmatprep.subr.mxu0 0.0
    %1723 = vmatpush2.msra.mxu0 0.0
    %1724 = vmatprep.subr.mxu0 0.0
    %1725 = vmatpush2.msra.mxu0 0.0
    %1726 = vmatprep.subr.mxu0 0.0
    %1727 = vmatpush2.msra.mxu0 0.0
    %1728 = vmatprep.subr.mxu0 0.0
    %1729 = vmatpush2.msra.mxu0 0.0
    %1730 = vmatprep.subr.mxu0 0.0
    %1731 = vmatpush2.msra.mxu0 0.0
    %1732 = vmatprep.mubr.f32.mxu0 0.0
    %1733 = vmatmul.mubr.f32.gmra.mxu0 %v1666
    %v1734 = vpop.f32.mrf.mxu0
    %v1735 = vadd.f32 0.0, %v1734
    %v1736 = vpop.f32.mrf.mxu0
    %1737 = vdwg.mxu0
    %v1739 = vrot.slane %v1735, 2
    %v1741 = vadd.f32 %v89, %v1739
    %v1742 = vxor.u32 %v1741, 2147483648
    %v1743 = vmul.f32 %v1742, 1.442695
    %v1744 = vpow.pop %v1743
    %v1745 = vadd.f32 %v1744, 1.0
    %v1746 = vrcp.pop %v1745
    %v1747 = vmul.f32 1.0, %v1746
    %v1748 = vtanh.pop %v1741
    %v1750 = vrot.slane %v1540, 6
    %v1752 = vmul.f32 %v1747, %v1750
    %1754 = vrot.lane.b32.xlu0 %v1748, 64
    %v1755 = vpop.permute.xlu0 %1754
    %v1757 = vmul.f32 %v1747, %v1755
    %1759 = vrot.lane.b32.xlu0 %v1757, 32
    %v1760 = vpop.permute.xlu0 %1759
    %v1762 = vadd.f32 %v1752, %v1760
    %v1763 = vtanh.pop %v1762
    %1765 = vrot.lane.b32.xlu0 %v1763, 64
    %v1766 = vpop.permute.xlu0 %1765
    %v1768 = vmul.f32 %v1747, %v1766
    %v1769 = vrot.slane %v1652, 2
    %1770 = vrot.lane.b32.xlu0 %v1769, 32
    %v1771 = vpop.permute.xlu0 %1770
    %v1772 = vsel %vm123, %v1771, 0
    %1774 = vmatprep.subr.mxu0 0.0
    %1775 = vmatpush1.msra.mxu0 0.0
    %1776 = vmatprep.subr.mxu0 0.0
    %1777 = vmatpush1.msra.mxu0 0.0
    %1778 = vmatprep.subr.mxu0 0.0
    %1779 = vmatpush1.msra.mxu0 0.0
    %1780 = vmatprep.subr.mxu0 0.0
    %1781 = vmatpush1.msra.mxu0 0.0
    %1782 = vmatprep.subr.mxu0 0.0
    %1783 = vmatpush1.msra.mxu0 0.0
    %1784 = vmatprep.subr.mxu0 0.0
    %1785 = vmatpush1.msra.mxu0 0.0
    %1786 = vmatprep.subr.mxu0 0.0
    %1787 = vmatpush1.msra.mxu0 0.0
    %1788 = vmatprep.subr.mxu0 0.0
    %1789 = vmatpush1.msra.mxu0 0.0
    %1790 = vmatprep.subr.mxu0 0.0
    %1791 = vmatpush1.msra.mxu0 0.0
    %1792 = vmatprep.subr.mxu0 0.0
    %1793 = vmatpush1.msra.mxu0 0.0
    %1794 = vmatprep.subr.mxu0 0.0
    %1795 = vmatpush1.msra.mxu0 0.0
    %1796 = vmatprep.subr.mxu0 0.0
    %1797 = vmatpush1.msra.mxu0 0.0
    %1798 = vmatprep.subr.mxu0 0.0
    %1799 = vmatpush1.msra.mxu0 %v116
    %1800 = vmatprep.subr.mxu0 0.0
    %1801 = vmatpush1.msra.mxu0 %v115
    %1802 = vmatprep.subr.mxu0 0.0
    %1803 = vmatpush1.msra.mxu0 %v114
    %1804 = vmatprep.subr.mxu0 0.0
    %1805 = vmatpush1.msra.mxu0 %v113
    %1806 = vmatprep.subr.mxu0 0.0
    %1807 = vmatpush2.msra.mxu0 0.0
    %1808 = vmatprep.subr.mxu0 0.0
    %1809 = vmatpush2.msra.mxu0 0.0
    %1810 = vmatprep.subr.mxu0 0.0
    %1811 = vmatpush2.msra.mxu0 0.0
    %1812 = vmatprep.subr.mxu0 0.0
    %1813 = vmatpush2.msra.mxu0 0.0
    %1814 = vmatprep.subr.mxu0 0.0
    %1815 = vmatpush2.msra.mxu0 0.0
    %1816 = vmatprep.subr.mxu0 0.0
    %1817 = vmatpush2.msra.mxu0 0.0
    %1818 = vmatprep.subr.mxu0 0.0
    %1819 = vmatpush2.msra.mxu0 0.0
    %1820 = vmatprep.subr.mxu0 0.0
    %1821 = vmatpush2.msra.mxu0 0.0
    %1822 = vmatprep.subr.mxu0 0.0
    %1823 = vmatpush2.msra.mxu0 0.0
    %1824 = vmatprep.subr.mxu0 0.0
    %1825 = vmatpush2.msra.mxu0 0.0
    %1826 = vmatprep.subr.mxu0 0.0
    %1827 = vmatpush2.msra.mxu0 0.0
    %1828 = vmatprep.subr.mxu0 0.0
    %1829 = vmatpush2.msra.mxu0 0.0
    %1830 = vmatprep.subr.mxu0 0.0
    %1831 = vmatpush2.msra.mxu0 0.0
    %1832 = vmatprep.subr.mxu0 0.0
    %1833 = vmatpush2.msra.mxu0 0.0
    %1834 = vmatprep.subr.mxu0 0.0
    %1835 = vmatpush2.msra.mxu0 0.0
    %1836 = vmatprep.subr.mxu0 0.0
    %1837 = vmatpush2.msra.mxu0 0.0
    %1838 = vmatprep.mubr.f32.mxu0 0.0
    %1839 = vmatmul.mubr.f32.gmra.mxu0 %v1772
    %v1840 = vpop.f32.mrf.mxu0
    %v1841 = vadd.f32 0.0, %v1840
    %v1842 = vpop.f32.mrf.mxu0
    %1843 = vdwg.mxu0
    %v1844 = vadd.f32 %v106, %v1841
    %v1845 = vxor.u32 %v1844, 2147483648
    %v1846 = vmul.f32 %v1845, 1.442695
    %v1847 = vpow.pop %v1846
    %v1848 = vadd.f32 %v1847, 1.0
    %v1849 = vrcp.pop %v1848
    %v1850 = vmul.f32 1.0, %v1849
    %v1851 = vtanh.pop %v1844
    %v1853 = vrot.slane %v1646, 2
    %v1855 = vmul.f32 %v1850, %v1853
    %1857 = vrot.lane.b32.xlu0 %v1851, 64
    %v1858 = vpop.permute.xlu0 %1857
    %v1860 = vmul.f32 %v1850, %v1858
    %1862 = vrot.lane.b32.xlu0 %v1860, 32
    %v1863 = vpop.permute.xlu0 %1862
    %v1865 = vadd.f32 %v1855, %v1863
    %v1866 = vtanh.pop %v1865
    %1868 = vrot.lane.b32.xlu0 %v1866, 64
    %v1869 = vpop.permute.xlu0 %1868
    %v1871 = vmul.f32 %v1850, %v1869
    %1873 = vrot.lane.b32.xlu0 %v1768, 32
    %v1874 = vpop.permute.xlu0 %1873
    %1876 = vst.msk [vmem:[#allocation2 + $0x8] sm:$0xc0] %vm342, %v1874
    %1878 = vrot.lane.b32.xlu0 %v1871, 32
    %v1879 = vpop.permute.xlu0 %1878
    %1881 = vst.msk [vmem:[#allocation3] sm:$0x3] %vm336, %v1879
    %1882 = vst.msk [vmem:[#allocation9 - $0x6] sm:$0xc0] %vm342, %v1874
    %1884 = vrot.lane.b32.xlu0 %v1762, 96
    %v1885 = vpop.permute.xlu0 %1884
    %1887 = vst.msk [vmem:[#allocation10 - $0x6] sm:$0xc0] %vm342, %v1885
    %s1888 = scalar_lea.vmem [#allocation9], 2
    %1889 = vst.msk [vmem:[%s1888] sm:$0x3] %vm336, %v1879
    %1891 = vrot.lane.b32.xlu0 %v1865, 96
    %v1892 = vpop.permute.xlu0 %1891
    %s1894 = scalar_lea.vmem [#allocation10], 2
    %1895 = vst.msk [vmem:[%s1894] sm:$0x3] %vm336, %v1892
    %s1896 = scalar_lea.vmem %s4, 2
    %v1897 = vld [vmem:[%s1896] sm:$0x1]
    %s1898 = scalar_lea.vmem %s4, 3
    %v1899 = vld [vmem:[%s1898] sm:$0x1]
    %v1900 = vld [vmem:[#allocation2] sm:$0xff]
    %v1901 = vld [vmem:[#allocation2 + $0x8] sm:$0xff]
    %v1902 = vld [vmem:[#allocation3] sm:$0xff]
    %v1903 = vld [vmem:[#allocation3 + $0x8] sm:$0xff]
    %v1904 = vld [vmem:[#allocation4] sm:$0xff]
    %v1905 = vld [vmem:[#allocation4 + $0x8] sm:$0xff]
    %v1906 = vld [vmem:[#allocation4 + $0x10] sm:$0xff]
    %v1907 = vld [vmem:[#allocation4 + $0x18] sm:$0xff]
    %v1908 = vld [vmem:[#allocation4 + $0x20] sm:$0xff]
    %v1909 = vld [vmem:[#allocation4 + $0x28] sm:$0xff]
    %v1910 = vld [vmem:[#allocation4 + $0x30] sm:$0xff]
    %v1911 = vld [vmem:[#allocation4 + $0x38] sm:$0xff]
    %s1912 = scalar_lea.vmem [#allocation4], 64
    %v1913 = vld [vmem:[%s1912] sm:$0xff]
    %v1914 = vld [vmem:[%s1912 + $0x8] sm:$0xff]
    %v1915 = vld [vmem:[%s1912 + $0x10] sm:$0xff]
    %v1916 = vld [vmem:[%s1912 + $0x18] sm:$0xff]
    %v1917 = vld [vmem:[%s1912 + $0x20] sm:$0xff]
    %v1918 = vld [vmem:[%s1912 + $0x28] sm:$0xff]
    %v1919 = vld [vmem:[%s1912 + $0x30] sm:$0xff]
    %v1920 = vld [vmem:[%s1912 + $0x38] sm:$0xff]
    %v1922 = vsel %vm123, %v1902, 0
    %v1925 = vsel %vm123, %v1903, 0
    %1927 = vmatprep.subr.mxu0 0.0
    %1928 = vmatpush1.msra.mxu0 0.0
    %1929 = vmatprep.subr.mxu0 0.0
    %1930 = vmatpush1.msra.mxu0 0.0
    %1931 = vmatprep.subr.mxu0 0.0
    %1932 = vmatpush1.msra.mxu0 0.0
    %1933 = vmatprep.subr.mxu0 0.0
    %1934 = vmatpush1.msra.mxu0 0.0
    %1935 = vmatprep.subr.mxu0 0.0
    %1936 = vmatpush1.msra.mxu0 0.0
    %1937 = vmatprep.subr.mxu0 0.0
    %1938 = vmatpush1.msra.mxu0 0.0
    %1939 = vmatprep.subr.mxu0 0.0
    %1940 = vmatpush1.msra.mxu0 0.0
    %1941 = vmatprep.subr.mxu0 0.0
    %1942 = vmatpush1.msra.mxu0 0.0
    %1943 = vmatprep.subr.mxu0 0.0
    %1944 = vmatpush1.msra.mxu0 0.0
    %1945 = vmatprep.subr.mxu0 0.0
    %1946 = vmatpush1.msra.mxu0 0.0
    %1947 = vmatprep.subr.mxu0 0.0
    %1948 = vmatpush1.msra.mxu0 0.0
    %1949 = vmatprep.subr.mxu0 0.0
    %1950 = vmatpush1.msra.mxu0 0.0
    %1951 = vmatprep.subr.mxu0 0.0
    %1952 = vmatpush1.msra.mxu0 %v1911
    %1953 = vmatprep.subr.mxu0 0.0
    %1954 = vmatpush1.msra.mxu0 %v1910
    %1955 = vmatprep.subr.mxu0 0.0
    %1956 = vmatpush1.msra.mxu0 %v1909
    %1957 = vmatprep.subr.mxu0 0.0
    %1958 = vmatpush1.msra.mxu0 %v1908
    %1959 = vmatprep.subr.mxu0 0.0
    %1960 = vmatpush2.msra.mxu0 0.0
    %1961 = vmatprep.subr.mxu0 0.0
    %1962 = vmatpush2.msra.mxu0 0.0
    %1963 = vmatprep.subr.mxu0 0.0
    %1964 = vmatpush2.msra.mxu0 0.0
    %1965 = vmatprep.subr.mxu0 0.0
    %1966 = vmatpush2.msra.mxu0 0.0
    %1967 = vmatprep.subr.mxu0 0.0
    %1968 = vmatpush2.msra.mxu0 0.0
    %1969 = vmatprep.subr.mxu0 0.0
    %1970 = vmatpush2.msra.mxu0 0.0
    %1971 = vmatprep.subr.mxu0 0.0
    %1972 = vmatpush2.msra.mxu0 0.0
    %1973 = vmatprep.subr.mxu0 0.0
    %1974 = vmatpush2.msra.mxu0 0.0
    %1975 = vmatprep.subr.mxu0 0.0
    %1976 = vmatpush2.msra.mxu0 0.0
    %1977 = vmatprep.subr.mxu0 0.0
    %1978 = vmatpush2.msra.mxu0 0.0
    %1979 = vmatprep.subr.mxu0 0.0
    %1980 = vmatpush2.msra.mxu0 0.0
    %1981 = vmatprep.subr.mxu0 0.0
    %1982 = vmatpush2.msra.mxu0 0.0
    %1983 = vmatprep.subr.mxu0 0.0
    %1984 = vmatpush2.msra.mxu0 0.0
    %1985 = vmatprep.subr.mxu0 0.0
    %1986 = vmatpush2.msra.mxu0 0.0
    %1987 = vmatprep.subr.mxu0 0.0
    %1988 = vmatpush2.msra.mxu0 0.0
    %1989 = vmatprep.subr.mxu0 0.0
    %1990 = vmatpush2.msra.mxu0 0.0
    %1991 = vmatprep.mubr.f32.mxu0 0.0
    %1992 = vmatmul.mubr.f32.gmra.mxu0 %v1922
    %v1993 = vpop.f32.mrf.mxu0
    %v1994 = vadd.f32 0.0, %v1993
    %v1995 = vpop.f32.mrf.mxu0
    %1996 = vmatprep.mubr.f32.mxu0 0.0
    %1997 = vmatmul.mubr.f32.gmra.mxu0 %v1925
    %v1998 = vpop.f32.mrf.mxu0
    %v1999 = vadd.f32 0.0, %v1998
    %v2000 = vpop.f32.mrf.mxu0
    %2001 = vdwg.mxu0
    %v2003 = vsel %vm123, %v1900, 0
    %v2006 = vsel %vm123, %v1901, 0
    %2008 = vmatprep.subr.mxu0 0.0
    %2009 = vmatpush1.msra.mxu0 0.0
    %2010 = vmatprep.subr.mxu0 0.0
    %2011 = vmatpush1.msra.mxu0 0.0
    %2012 = vmatprep.subr.mxu0 0.0
    %2013 = vmatpush1.msra.mxu0 0.0
    %2014 = vmatprep.subr.mxu0 0.0
    %2015 = vmatpush1.msra.mxu0 0.0
    %2016 = vmatprep.subr.mxu0 0.0
    %2017 = vmatpush1.msra.mxu0 0.0
    %2018 = vmatprep.subr.mxu0 0.0
    %2019 = vmatpush1.msra.mxu0 0.0
    %2020 = vmatprep.subr.mxu0 0.0
    %2021 = vmatpush1.msra.mxu0 0.0
    %2022 = vmatprep.subr.mxu0 0.0
    %2023 = vmatpush1.msra.mxu0 0.0
    %2024 = vmatprep.subr.mxu0 0.0
    %2025 = vmatpush1.msra.mxu0 0.0
    %2026 = vmatprep.subr.mxu0 0.0
    %2027 = vmatpush1.msra.mxu0 0.0
    %2028 = vmatprep.subr.mxu0 0.0
    %2029 = vmatpush1.msra.mxu0 0.0
    %2030 = vmatprep.subr.mxu0 0.0
    %2031 = vmatpush1.msra.mxu0 0.0
    %2032 = vmatprep.subr.mxu0 0.0
    %2033 = vmatpush1.msra.mxu0 %v1907
    %2034 = vmatprep.subr.mxu0 0.0
    %2035 = vmatpush1.msra.mxu0 %v1906
    %2036 = vmatprep.subr.mxu0 0.0
    %2037 = vmatpush1.msra.mxu0 %v1905
    %2038 = vmatprep.subr.mxu0 0.0
    %2039 = vmatpush1.msra.mxu0 %v1904
    %2040 = vmatprep.subr.mxu0 0.0
    %2041 = vmatpush2.msra.mxu0 0.0
    %2042 = vmatprep.subr.mxu0 0.0
    %2043 = vmatpush2.msra.mxu0 0.0
    %2044 = vmatprep.subr.mxu0 0.0
    %2045 = vmatpush2.msra.mxu0 0.0
    %2046 = vmatprep.subr.mxu0 0.0
    %2047 = vmatpush2.msra.mxu0 0.0
    %2048 = vmatprep.subr.mxu0 0.0
    %2049 = vmatpush2.msra.mxu0 0.0
    %2050 = vmatprep.subr.mxu0 0.0
    %2051 = vmatpush2.msra.mxu0 0.0
    %2052 = vmatprep.subr.mxu0 0.0
    %2053 = vmatpush2.msra.mxu0 0.0
    %2054 = vmatprep.subr.mxu0 0.0
    %2055 = vmatpush2.msra.mxu0 0.0
    %2056 = vmatprep.subr.mxu0 0.0
    %2057 = vmatpush2.msra.mxu0 0.0
    %2058 = vmatprep.subr.mxu0 0.0
    %2059 = vmatpush2.msra.mxu0 0.0
    %2060 = vmatprep.subr.mxu0 0.0
    %2061 = vmatpush2.msra.mxu0 0.0
    %2062 = vmatprep.subr.mxu0 0.0
    %2063 = vmatpush2.msra.mxu0 0.0
    %2064 = vmatprep.subr.mxu0 0.0
    %2065 = vmatpush2.msra.mxu0 0.0
    %2066 = vmatprep.subr.mxu0 0.0
    %2067 = vmatpush2.msra.mxu0 0.0
    %2068 = vmatprep.subr.mxu0 0.0
    %2069 = vmatpush2.msra.mxu0 0.0
    %2070 = vmatprep.subr.mxu0 0.0
    %2071 = vmatpush2.msra.mxu0 0.0
    %2072 = vmatprep.mubr.f32.mxu0 0.0
    %2073 = vmatmul.mubr.f32.gmra.mxu0 %v2003
    %v2074 = vpop.f32.mrf.mxu0
    %v2075 = vadd.f32 %v1994, %v2074
    %v2076 = vpop.f32.mrf.mxu0
    %2077 = vmatprep.mubr.f32.mxu0 0.0
    %2078 = vmatmul.mubr.f32.gmra.mxu0 %v2006
    %v2079 = vpop.f32.mrf.mxu0
    %v2080 = vadd.f32 %v1999, %v2079
    %v2081 = vpop.f32.mrf.mxu0
    %2082 = vdwg.mxu0
    %v2084 = vlaneseq
    %v2085 = vshrl.u32 %v2084, 7
    %v2086 = vsub.s32 0, %v2085
    %v2087 = vrot.slane %v1897, %v2086
    %v2089 = vadd.f32 %v2075, %v2087
    %v2090 = vadd.f32 %v2080, %v2087
    %2091 = vmatprep.subr.mxu0 0.0
    %2092 = vmatpush1.msra.mxu0 0.0
    %2093 = vmatprep.subr.mxu0 0.0
    %2094 = vmatpush1.msra.mxu0 0.0
    %2095 = vmatprep.subr.mxu0 0.0
    %2096 = vmatpush1.msra.mxu0 0.0
    %2097 = vmatprep.subr.mxu0 0.0
    %2098 = vmatpush1.msra.mxu0 0.0
    %2099 = vmatprep.subr.mxu0 0.0
    %2100 = vmatpush1.msra.mxu0 0.0
    %2101 = vmatprep.subr.mxu0 0.0
    %2102 = vmatpush1.msra.mxu0 0.0
    %2103 = vmatprep.subr.mxu0 0.0
    %2104 = vmatpush1.msra.mxu0 0.0
    %2105 = vmatprep.subr.mxu0 0.0
    %2106 = vmatpush1.msra.mxu0 0.0
    %2107 = vmatprep.subr.mxu0 0.0
    %2108 = vmatpush1.msra.mxu0 0.0
    %2109 = vmatprep.subr.mxu0 0.0
    %2110 = vmatpush1.msra.mxu0 0.0
    %2111 = vmatprep.subr.mxu0 0.0
    %2112 = vmatpush1.msra.mxu0 0.0
    %2113 = vmatprep.subr.mxu0 0.0
    %2114 = vmatpush1.msra.mxu0 0.0
    %2115 = vmatprep.subr.mxu0 0.0
    %2116 = vmatpush1.msra.mxu0 %v1920
    %2117 = vmatprep.subr.mxu0 0.0
    %2118 = vmatpush1.msra.mxu0 %v1919
    %2119 = vmatprep.subr.mxu0 0.0
    %2120 = vmatpush1.msra.mxu0 %v1918
    %2121 = vmatprep.subr.mxu0 0.0
    %2122 = vmatpush1.msra.mxu0 %v1917
    %2123 = vmatprep.subr.mxu0 0.0
    %2124 = vmatpush2.msra.mxu0 0.0
    %2125 = vmatprep.subr.mxu0 0.0
    %2126 = vmatpush2.msra.mxu0 0.0
    %2127 = vmatprep.subr.mxu0 0.0
    %2128 = vmatpush2.msra.mxu0 0.0
    %2129 = vmatprep.subr.mxu0 0.0
    %2130 = vmatpush2.msra.mxu0 0.0
    %2131 = vmatprep.subr.mxu0 0.0
    %2132 = vmatpush2.msra.mxu0 0.0
    %2133 = vmatprep.subr.mxu0 0.0
    %2134 = vmatpush2.msra.mxu0 0.0
    %2135 = vmatprep.subr.mxu0 0.0
    %2136 = vmatpush2.msra.mxu0 0.0
    %2137 = vmatprep.subr.mxu0 0.0
    %2138 = vmatpush2.msra.mxu0 0.0
    %2139 = vmatprep.subr.mxu0 0.0
    %2140 = vmatpush2.msra.mxu0 0.0
    %2141 = vmatprep.subr.mxu0 0.0
    %2142 = vmatpush2.msra.mxu0 0.0
    %2143 = vmatprep.subr.mxu0 0.0
    %2144 = vmatpush2.msra.mxu0 0.0
    %2145 = vmatprep.subr.mxu0 0.0
    %2146 = vmatpush2.msra.mxu0 0.0
    %2147 = vmatprep.subr.mxu0 0.0
    %2148 = vmatpush2.msra.mxu0 0.0
    %2149 = vmatprep.subr.mxu0 0.0
    %2150 = vmatpush2.msra.mxu0 0.0
    %2151 = vmatprep.subr.mxu0 0.0
    %2152 = vmatpush2.msra.mxu0 0.0
    %2153 = vmatprep.subr.mxu0 0.0
    %2154 = vmatpush2.msra.mxu0 0.0
    %2155 = vmatprep.mubr.f32.mxu0 0.0
    %2156 = vmatmul.mubr.f32.gmra.mxu0 %v1922
    %v2157 = vpop.f32.mrf.mxu0
    %v2158 = vadd.f32 0.0, %v2157
    %v2159 = vpop.f32.mrf.mxu0
    %2160 = vmatprep.mubr.f32.mxu0 0.0
    %2161 = vmatmul.mubr.f32.gmra.mxu0 %v1925
    %v2162 = vpop.f32.mrf.mxu0
    %v2163 = vadd.f32 0.0, %v2162
    %v2164 = vpop.f32.mrf.mxu0
    %2165 = vdwg.mxu0
    %2166 = vmatprep.subr.mxu0 0.0
    %2167 = vmatpush1.msra.mxu0 0.0
    %2168 = vmatprep.subr.mxu0 0.0
    %2169 = vmatpush1.msra.mxu0 0.0
    %2170 = vmatprep.subr.mxu0 0.0
    %2171 = vmatpush1.msra.mxu0 0.0
    %2172 = vmatprep.subr.mxu0 0.0
    %2173 = vmatpush1.msra.mxu0 0.0
    %2174 = vmatprep.subr.mxu0 0.0
    %2175 = vmatpush1.msra.mxu0 0.0
    %2176 = vmatprep.subr.mxu0 0.0
    %2177 = vmatpush1.msra.mxu0 0.0
    %2178 = vmatprep.subr.mxu0 0.0
    %2179 = vmatpush1.msra.mxu0 0.0
    %2180 = vmatprep.subr.mxu0 0.0
    %2181 = vmatpush1.msra.mxu0 0.0
    %2182 = vmatprep.subr.mxu0 0.0
    %2183 = vmatpush1.msra.mxu0 0.0
    %2184 = vmatprep.subr.mxu0 0.0
    %2185 = vmatpush1.msra.mxu0 0.0
    %2186 = vmatprep.subr.mxu0 0.0
    %2187 = vmatpush1.msra.mxu0 0.0
    %2188 = vmatprep.subr.mxu0 0.0
    %2189 = vmatpush1.msra.mxu0 0.0
    %2190 = vmatprep.subr.mxu0 0.0
    %2191 = vmatpush1.msra.mxu0 %v1916
    %2192 = vmatprep.subr.mxu0 0.0
    %2193 = vmatpush1.msra.mxu0 %v1915
    %2194 = vmatprep.subr.mxu0 0.0
    %2195 = vmatpush1.msra.mxu0 %v1914
    %2196 = vmatprep.subr.mxu0 0.0
    %2197 = vmatpush1.msra.mxu0 %v1913
    %2198 = vmatprep.subr.mxu0 0.0
    %2199 = vmatpush2.msra.mxu0 0.0
    %2200 = vmatprep.subr.mxu0 0.0
    %2201 = vmatpush2.msra.mxu0 0.0
    %2202 = vmatprep.subr.mxu0 0.0
    %2203 = vmatpush2.msra.mxu0 0.0
    %2204 = vmatprep.subr.mxu0 0.0
    %2205 = vmatpush2.msra.mxu0 0.0
    %2206 = vmatprep.subr.mxu0 0.0
    %2207 = vmatpush2.msra.mxu0 0.0
    %2208 = vmatprep.subr.mxu0 0.0
    %2209 = vmatpush2.msra.mxu0 0.0
    %2210 = vmatprep.subr.mxu0 0.0
    %2211 = vmatpush2.msra.mxu0 0.0
    %2212 = vmatprep.subr.mxu0 0.0
    %2213 = vmatpush2.msra.mxu0 0.0
    %2214 = vmatprep.subr.mxu0 0.0
    %2215 = vmatpush2.msra.mxu0 0.0
    %2216 = vmatprep.subr.mxu0 0.0
    %2217 = vmatpush2.msra.mxu0 0.0
    %2218 = vmatprep.subr.mxu0 0.0
    %2219 = vmatpush2.msra.mxu0 0.0
    %2220 = vmatprep.subr.mxu0 0.0
    %2221 = vmatpush2.msra.mxu0 0.0
    %2222 = vmatprep.subr.mxu0 0.0
    %2223 = vmatpush2.msra.mxu0 0.0
    %2224 = vmatprep.subr.mxu0 0.0
    %2225 = vmatpush2.msra.mxu0 0.0
    %2226 = vmatprep.subr.mxu0 0.0
    %2227 = vmatpush2.msra.mxu0 0.0
    %2228 = vmatprep.subr.mxu0 0.0
    %2229 = vmatpush2.msra.mxu0 0.0
    %2230 = vmatprep.mubr.f32.mxu0 0.0
    %2231 = vmatmul.mubr.f32.gmra.mxu0 %v2003
    %v2232 = vpop.f32.mrf.mxu0
    %v2233 = vadd.f32 %v2158, %v2232
    %v2234 = vpop.f32.mrf.mxu0
    %2235 = vmatprep.mubr.f32.mxu0 0.0
    %2236 = vmatmul.mubr.f32.gmra.mxu0 %v2006
    %v2237 = vpop.f32.mrf.mxu0
    %v2238 = vadd.f32 %v2163, %v2237
    %v2239 = vpop.f32.mrf.mxu0
    %2240 = vdwg.mxu0
    %v2242 = vlaneseq
    %v2243 = vshrl.u32 %v2242, 7
    %v2244 = vsub.s32 0, %v2243
    %v2245 = vrot.slane %v1899, %v2244
    %v2247 = vadd.f32 %v2233, %v2245
    %v2248 = vadd.f32 %v2238, %v2245
    %s2249 = scalar_lea.vmem [#allocation7], 64
    %v2250 = vld [vmem:[%s2249] sm:$0xff]
    %v2251 = vld [vmem:[%s2249 + $0x8] sm:$0xff]
    %v2252 = vld [vmem:[%s2249 + $0x10] sm:$0xff]
    %v2253 = vld [vmem:[%s2249 + $0x18] sm:$0xff]
    %s2254 = scalar_lea.vmem [#allocation7], 96
    %v2255 = vld [vmem:[%s2254] sm:$0xff]
    %v2256 = vld [vmem:[%s2254 + $0x8] sm:$0xff]
    %v2257 = vld [vmem:[%s2254 + $0x10] sm:$0xff]
    %v2258 = vld [vmem:[%s2254 + $0x18] sm:$0xff]
    %s2259 = scalar_lea.vmem %s5, 4
    %v2260 = vld [vmem:[%s2259] sm:$0x3]
    %s2261 = scalar_lea.vmem %s6, 4
    %v2262 = vld [vmem:[%s2261] sm:$0x3]
    %s2263 = scalar_lea.vmem %s5, 6
    %v2264 = vld [vmem:[%s2263] sm:$0x3]
    %s2265 = scalar_lea.vmem %s6, 6
    %v2266 = vld [vmem:[%s2265] sm:$0x3]
    %v2268 = vsel %vm123, %v2260, 0
    %2270 = vmatprep.subr.mxu0 0.0
    %2271 = vmatpush1.msra.mxu0 0.0
    %2272 = vmatprep.subr.mxu0 0.0
    %2273 = vmatpush1.msra.mxu0 0.0
    %2274 = vmatprep.subr.mxu0 0.0
    %2275 = vmatpush1.msra.mxu0 0.0
    %2276 = vmatprep.subr.mxu0 0.0
    %2277 = vmatpush1.msra.mxu0 0.0
    %2278 = vmatprep.subr.mxu0 0.0
    %2279 = vmatpush1.msra.mxu0 0.0
    %2280 = vmatprep.subr.mxu0 0.0
    %2281 = vmatpush1.msra.mxu0 0.0
    %2282 = vmatprep.subr.mxu0 0.0
    %2283 = vmatpush1.msra.mxu0 0.0
    %2284 = vmatprep.subr.mxu0 0.0
    %2285 = vmatpush1.msra.mxu0 0.0
    %2286 = vmatprep.subr.mxu0 0.0
    %2287 = vmatpush1.msra.mxu0 0.0
    %2288 = vmatprep.subr.mxu0 0.0
    %2289 = vmatpush1.msra.mxu0 0.0
    %2290 = vmatprep.subr.mxu0 0.0
    %2291 = vmatpush1.msra.mxu0 0.0
    %2292 = vmatprep.subr.mxu0 0.0
    %2293 = vmatpush1.msra.mxu0 0.0
    %2294 = vmatprep.subr.mxu0 0.0
    %2295 = vmatpush1.msra.mxu0 %v2253
    %2296 = vmatprep.subr.mxu0 0.0
    %2297 = vmatpush1.msra.mxu0 %v2252
    %2298 = vmatprep.subr.mxu0 0.0
    %2299 = vmatpush1.msra.mxu0 %v2251
    %2300 = vmatprep.subr.mxu0 0.0
    %2301 = vmatpush1.msra.mxu0 %v2250
    %2302 = vmatprep.subr.mxu0 0.0
    %2303 = vmatpush2.msra.mxu0 0.0
    %2304 = vmatprep.subr.mxu0 0.0
    %2305 = vmatpush2.msra.mxu0 0.0
    %2306 = vmatprep.subr.mxu0 0.0
    %2307 = vmatpush2.msra.mxu0 0.0
    %2308 = vmatprep.subr.mxu0 0.0
    %2309 = vmatpush2.msra.mxu0 0.0
    %2310 = vmatprep.subr.mxu0 0.0
    %2311 = vmatpush2.msra.mxu0 0.0
    %2312 = vmatprep.subr.mxu0 0.0
    %2313 = vmatpush2.msra.mxu0 0.0
    %2314 = vmatprep.subr.mxu0 0.0
    %2315 = vmatpush2.msra.mxu0 0.0
    %2316 = vmatprep.subr.mxu0 0.0
    %2317 = vmatpush2.msra.mxu0 0.0
    %2318 = vmatprep.subr.mxu0 0.0
    %2319 = vmatpush2.msra.mxu0 0.0
    %2320 = vmatprep.subr.mxu0 0.0
    %2321 = vmatpush2.msra.mxu0 0.0
    %2322 = vmatprep.subr.mxu0 0.0
    %2323 = vmatpush2.msra.mxu0 0.0
    %2324 = vmatprep.subr.mxu0 0.0
    %2325 = vmatpush2.msra.mxu0 0.0
    %2326 = vmatprep.subr.mxu0 0.0
    %2327 = vmatpush2.msra.mxu0 0.0
    %2328 = vmatprep.subr.mxu0 0.0
    %2329 = vmatpush2.msra.mxu0 0.0
    %2330 = vmatprep.subr.mxu0 0.0
    %2331 = vmatpush2.msra.mxu0 0.0
    %2332 = vmatprep.subr.mxu0 0.0
    %2333 = vmatpush2.msra.mxu0 0.0
    %2334 = vmatprep.mubr.f32.mxu0 0.0
    %2335 = vmatmul.mubr.f32.gmra.mxu0 %v2268
    %v2336 = vpop.f32.mrf.mxu0
    %v2337 = vadd.f32 0.0, %v2336
    %v2338 = vpop.f32.mrf.mxu0
    %2339 = vdwg.mxu0
    %v2340 = vadd.f32 %v2089, %v2337
    %v2341 = vxor.u32 %v2340, 2147483648
    %v2342 = vmul.f32 %v2341, 1.442695
    %v2343 = vpow.pop %v2342
    %v2344 = vadd.f32 %v2343, 1.0
    %v2345 = vrcp.pop %v2344
    %v2346 = vmul.f32 1.0, %v2345
    %v2347 = vtanh.pop %v2340
    %2349 = vrot.lane.b32.xlu0 %v2262, 32
    %v2350 = vpop.permute.xlu0 %2349
    %v2352 = vmul.f32 %v2346, %v2350
    %2354 = vrot.lane.b32.xlu0 %v2347, 64
    %v2355 = vpop.permute.xlu0 %2354
    %v2357 = vmul.f32 %v2346, %v2355
    %2359 = vrot.lane.b32.xlu0 %v2357, 32
    %v2360 = vpop.permute.xlu0 %2359
    %v2362 = vadd.f32 %v2352, %v2360
    %v2363 = vtanh.pop %v2362
    %2365 = vrot.lane.b32.xlu0 %v2363, 64
    %v2366 = vpop.permute.xlu0 %2365
    %v2368 = vmul.f32 %v2346, %v2366
    %v2370 = vsel %vm123, %v2264, 0
    %2372 = vmatprep.subr.mxu0 0.0
    %2373 = vmatpush1.msra.mxu0 0.0
    %2374 = vmatprep.subr.mxu0 0.0
    %2375 = vmatpush1.msra.mxu0 0.0
    %2376 = vmatprep.subr.mxu0 0.0
    %2377 = vmatpush1.msra.mxu0 0.0
    %2378 = vmatprep.subr.mxu0 0.0
    %2379 = vmatpush1.msra.mxu0 0.0
    %2380 = vmatprep.subr.mxu0 0.0
    %2381 = vmatpush1.msra.mxu0 0.0
    %2382 = vmatprep.subr.mxu0 0.0
    %2383 = vmatpush1.msra.mxu0 0.0
    %2384 = vmatprep.subr.mxu0 0.0
    %2385 = vmatpush1.msra.mxu0 0.0
    %2386 = vmatprep.subr.mxu0 0.0
    %2387 = vmatpush1.msra.mxu0 0.0
    %2388 = vmatprep.subr.mxu0 0.0
    %2389 = vmatpush1.msra.mxu0 0.0
    %2390 = vmatprep.subr.mxu0 0.0
    %2391 = vmatpush1.msra.mxu0 0.0
    %2392 = vmatprep.subr.mxu0 0.0
    %2393 = vmatpush1.msra.mxu0 0.0
    %2394 = vmatprep.subr.mxu0 0.0
    %2395 = vmatpush1.msra.mxu0 0.0
    %2396 = vmatprep.subr.mxu0 0.0
    %2397 = vmatpush1.msra.mxu0 %v2258
    %2398 = vmatprep.subr.mxu0 0.0
    %2399 = vmatpush1.msra.mxu0 %v2257
    %2400 = vmatprep.subr.mxu0 0.0
    %2401 = vmatpush1.msra.mxu0 %v2256
    %2402 = vmatprep.subr.mxu0 0.0
    %2403 = vmatpush1.msra.mxu0 %v2255
    %2404 = vmatprep.subr.mxu0 0.0
    %2405 = vmatpush2.msra.mxu0 0.0
    %2406 = vmatprep.subr.mxu0 0.0
    %2407 = vmatpush2.msra.mxu0 0.0
    %2408 = vmatprep.subr.mxu0 0.0
    %2409 = vmatpush2.msra.mxu0 0.0
    %2410 = vmatprep.subr.mxu0 0.0
    %2411 = vmatpush2.msra.mxu0 0.0
    %2412 = vmatprep.subr.mxu0 0.0
    %2413 = vmatpush2.msra.mxu0 0.0
    %2414 = vmatprep.subr.mxu0 0.0
    %2415 = vmatpush2.msra.mxu0 0.0
    %2416 = vmatprep.subr.mxu0 0.0
    %2417 = vmatpush2.msra.mxu0 0.0
    %2418 = vmatprep.subr.mxu0 0.0
    %2419 = vmatpush2.msra.mxu0 0.0
    %2420 = vmatprep.subr.mxu0 0.0
    %2421 = vmatpush2.msra.mxu0 0.0
    %2422 = vmatprep.subr.mxu0 0.0
    %2423 = vmatpush2.msra.mxu0 0.0
    %2424 = vmatprep.subr.mxu0 0.0
    %2425 = vmatpush2.msra.mxu0 0.0
    %2426 = vmatprep.subr.mxu0 0.0
    %2427 = vmatpush2.msra.mxu0 0.0
    %2428 = vmatprep.subr.mxu0 0.0
    %2429 = vmatpush2.msra.mxu0 0.0
    %2430 = vmatprep.subr.mxu0 0.0
    %2431 = vmatpush2.msra.mxu0 0.0
    %2432 = vmatprep.subr.mxu0 0.0
    %2433 = vmatpush2.msra.mxu0 0.0
    %2434 = vmatprep.subr.mxu0 0.0
    %2435 = vmatpush2.msra.mxu0 0.0
    %2436 = vmatprep.mubr.f32.mxu0 0.0
    %2437 = vmatmul.mubr.f32.gmra.mxu0 %v2370
    %v2438 = vpop.f32.mrf.mxu0
    %v2439 = vadd.f32 0.0, %v2438
    %v2440 = vpop.f32.mrf.mxu0
    %2441 = vdwg.mxu0
    %v2443 = vrot.slane %v2439, 2
    %v2445 = vadd.f32 %v2248, %v2443
    %v2446 = vxor.u32 %v2445, 2147483648
    %v2447 = vmul.f32 %v2446, 1.442695
    %v2448 = vpow.pop %v2447
    %v2449 = vadd.f32 %v2448, 1.0
    %v2450 = vrcp.pop %v2449
    %v2451 = vmul.f32 1.0, %v2450
    %v2452 = vtanh.pop %v2445
    %v2454 = vrot.slane %v2266, 2
    %2455 = vrot.lane.b32.xlu0 %v2454, 32
    %v2456 = vpop.permute.xlu0 %2455
    %v2458 = vmul.f32 %v2451, %v2456
    %2460 = vrot.lane.b32.xlu0 %v2452, 64
    %v2461 = vpop.permute.xlu0 %2460
    %v2463 = vmul.f32 %v2451, %v2461
    %2465 = vrot.lane.b32.xlu0 %v2463, 32
    %v2466 = vpop.permute.xlu0 %2465
    %v2468 = vadd.f32 %v2458, %v2466
    %v2469 = vtanh.pop %v2468
    %2471 = vrot.lane.b32.xlu0 %v2469, 64
    %v2472 = vpop.permute.xlu0 %2471
    %v2474 = vmul.f32 %v2451, %v2472
    %2476 = vrot.lane.b32.xlu0 %v2368, 32
    %v2477 = vpop.permute.xlu0 %2476
    %v2478 = vsel %vm123, %v2477, 0
    %2480 = vmatprep.subr.mxu0 0.0
    %2481 = vmatpush1.msra.mxu0 0.0
    %2482 = vmatprep.subr.mxu0 0.0
    %2483 = vmatpush1.msra.mxu0 0.0
    %2484 = vmatprep.subr.mxu0 0.0
    %2485 = vmatpush1.msra.mxu0 0.0
    %2486 = vmatprep.subr.mxu0 0.0
    %2487 = vmatpush1.msra.mxu0 0.0
    %2488 = vmatprep.subr.mxu0 0.0
    %2489 = vmatpush1.msra.mxu0 0.0
    %2490 = vmatprep.subr.mxu0 0.0
    %2491 = vmatpush1.msra.mxu0 0.0
    %2492 = vmatprep.subr.mxu0 0.0
    %2493 = vmatpush1.msra.mxu0 0.0
    %2494 = vmatprep.subr.mxu0 0.0
    %2495 = vmatpush1.msra.mxu0 0.0
    %2496 = vmatprep.subr.mxu0 0.0
    %2497 = vmatpush1.msra.mxu0 0.0
    %2498 = vmatprep.subr.mxu0 0.0
    %2499 = vmatpush1.msra.mxu0 0.0
    %2500 = vmatprep.subr.mxu0 0.0
    %2501 = vmatpush1.msra.mxu0 0.0
    %2502 = vmatprep.subr.mxu0 0.0
    %2503 = vmatpush1.msra.mxu0 0.0
    %2504 = vmatprep.subr.mxu0 0.0
    %2505 = vmatpush1.msra.mxu0 %v2253
    %2506 = vmatprep.subr.mxu0 0.0
    %2507 = vmatpush1.msra.mxu0 %v2252
    %2508 = vmatprep.subr.mxu0 0.0
    %2509 = vmatpush1.msra.mxu0 %v2251
    %2510 = vmatprep.subr.mxu0 0.0
    %2511 = vmatpush1.msra.mxu0 %v2250
    %2512 = vmatprep.subr.mxu0 0.0
    %2513 = vmatpush2.msra.mxu0 0.0
    %2514 = vmatprep.subr.mxu0 0.0
    %2515 = vmatpush2.msra.mxu0 0.0
    %2516 = vmatprep.subr.mxu0 0.0
    %2517 = vmatpush2.msra.mxu0 0.0
    %2518 = vmatprep.subr.mxu0 0.0
    %2519 = vmatpush2.msra.mxu0 0.0
    %2520 = vmatprep.subr.mxu0 0.0
    %2521 = vmatpush2.msra.mxu0 0.0
    %2522 = vmatprep.subr.mxu0 0.0
    %2523 = vmatpush2.msra.mxu0 0.0
    %2524 = vmatprep.subr.mxu0 0.0
    %2525 = vmatpush2.msra.mxu0 0.0
    %2526 = vmatprep.subr.mxu0 0.0
    %2527 = vmatpush2.msra.mxu0 0.0
    %2528 = vmatprep.subr.mxu0 0.0
    %2529 = vmatpush2.msra.mxu0 0.0
    %2530 = vmatprep.subr.mxu0 0.0
    %2531 = vmatpush2.msra.mxu0 0.0
    %2532 = vmatprep.subr.mxu0 0.0
    %2533 = vmatpush2.msra.mxu0 0.0
    %2534 = vmatprep.subr.mxu0 0.0
    %2535 = vmatpush2.msra.mxu0 0.0
    %2536 = vmatprep.subr.mxu0 0.0
    %2537 = vmatpush2.msra.mxu0 0.0
    %2538 = vmatprep.subr.mxu0 0.0
    %2539 = vmatpush2.msra.mxu0 0.0
    %2540 = vmatprep.subr.mxu0 0.0
    %2541 = vmatpush2.msra.mxu0 0.0
    %2542 = vmatprep.subr.mxu0 0.0
    %2543 = vmatpush2.msra.mxu0 0.0
    %2544 = vmatprep.mubr.f32.mxu0 0.0
    %2545 = vmatmul.mubr.f32.gmra.mxu0 %v2478
    %v2546 = vpop.f32.mrf.mxu0
    %v2547 = vadd.f32 0.0, %v2546
    %v2548 = vpop.f32.mrf.mxu0
    %2549 = vdwg.mxu0
    %v2551 = vrot.slane %v2547, 6
    %v2553 = vadd.f32 %v2089, %v2551
    %v2554 = vxor.u32 %v2553, 2147483648
    %v2555 = vmul.f32 %v2554, 1.442695
    %v2556 = vpow.pop %v2555
    %v2557 = vadd.f32 %v2556, 1.0
    %v2558 = vrcp.pop %v2557
    %v2559 = vmul.f32 1.0, %v2558
    %v2560 = vtanh.pop %v2553
    %v2562 = vrot.slane %v2362, 6
    %v2564 = vmul.f32 %v2559, %v2562
    %2566 = vrot.lane.b32.xlu0 %v2560, 64
    %v2567 = vpop.permute.xlu0 %2566
    %v2569 = vmul.f32 %v2559, %v2567
    %2571 = vrot.lane.b32.xlu0 %v2569, 32
    %v2572 = vpop.permute.xlu0 %2571
    %v2574 = vadd.f32 %v2564, %v2572
    %v2575 = vtanh.pop %v2574
    %2577 = vrot.lane.b32.xlu0 %v2575, 64
    %v2578 = vpop.permute.xlu0 %2577
    %v2580 = vmul.f32 %v2559, %v2578
    %v2582 = vrot.slane %v2474, 6
    %2583 = vrot.lane.b32.xlu0 %v2582, 32
    %v2584 = vpop.permute.xlu0 %2583
    %v2585 = vsel %vm123, %v2584, 0
    %2587 = vmatprep.subr.mxu0 0.0
    %2588 = vmatpush1.msra.mxu0 0.0
    %2589 = vmatprep.subr.mxu0 0.0
    %2590 = vmatpush1.msra.mxu0 0.0
    %2591 = vmatprep.subr.mxu0 0.0
    %2592 = vmatpush1.msra.mxu0 0.0
    %2593 = vmatprep.subr.mxu0 0.0
    %2594 = vmatpush1.msra.mxu0 0.0
    %2595 = vmatprep.subr.mxu0 0.0
    %2596 = vmatpush1.msra.mxu0 0.0
    %2597 = vmatprep.subr.mxu0 0.0
    %2598 = vmatpush1.msra.mxu0 0.0
    %2599 = vmatprep.subr.mxu0 0.0
    %2600 = vmatpush1.msra.mxu0 0.0
    %2601 = vmatprep.subr.mxu0 0.0
    %2602 = vmatpush1.msra.mxu0 0.0
    %2603 = vmatprep.subr.mxu0 0.0
    %2604 = vmatpush1.msra.mxu0 0.0
    %2605 = vmatprep.subr.mxu0 0.0
    %2606 = vmatpush1.msra.mxu0 0.0
    %2607 = vmatprep.subr.mxu0 0.0
    %2608 = vmatpush1.msra.mxu0 0.0
    %2609 = vmatprep.subr.mxu0 0.0
    %2610 = vmatpush1.msra.mxu0 0.0
    %2611 = vmatprep.subr.mxu0 0.0
    %2612 = vmatpush1.msra.mxu0 %v2258
    %2613 = vmatprep.subr.mxu0 0.0
    %2614 = vmatpush1.msra.mxu0 %v2257
    %2615 = vmatprep.subr.mxu0 0.0
    %2616 = vmatpush1.msra.mxu0 %v2256
    %2617 = vmatprep.subr.mxu0 0.0
    %2618 = vmatpush1.msra.mxu0 %v2255
    %2619 = vmatprep.subr.mxu0 0.0
    %2620 = vmatpush2.msra.mxu0 0.0
    %2621 = vmatprep.subr.mxu0 0.0
    %2622 = vmatpush2.msra.mxu0 0.0
    %2623 = vmatprep.subr.mxu0 0.0
    %2624 = vmatpush2.msra.mxu0 0.0
    %2625 = vmatprep.subr.mxu0 0.0
    %2626 = vmatpush2.msra.mxu0 0.0
    %2627 = vmatprep.subr.mxu0 0.0
    %2628 = vmatpush2.msra.mxu0 0.0
    %2629 = vmatprep.subr.mxu0 0.0
    %2630 = vmatpush2.msra.mxu0 0.0
    %2631 = vmatprep.subr.mxu0 0.0
    %2632 = vmatpush2.msra.mxu0 0.0
    %2633 = vmatprep.subr.mxu0 0.0
    %2634 = vmatpush2.msra.mxu0 0.0
    %2635 = vmatprep.subr.mxu0 0.0
    %2636 = vmatpush2.msra.mxu0 0.0
    %2637 = vmatprep.subr.mxu0 0.0
    %2638 = vmatpush2.msra.mxu0 0.0
    %2639 = vmatprep.subr.mxu0 0.0
    %2640 = vmatpush2.msra.mxu0 0.0
    %2641 = vmatprep.subr.mxu0 0.0
    %2642 = vmatpush2.msra.mxu0 0.0
    %2643 = vmatprep.subr.mxu0 0.0
    %2644 = vmatpush2.msra.mxu0 0.0
    %2645 = vmatprep.subr.mxu0 0.0
    %2646 = vmatpush2.msra.mxu0 0.0
    %2647 = vmatprep.subr.mxu0 0.0
    %2648 = vmatpush2.msra.mxu0 0.0
    %2649 = vmatprep.subr.mxu0 0.0
    %2650 = vmatpush2.msra.mxu0 0.0
    %2651 = vmatprep.mubr.f32.mxu0 0.0
    %2652 = vmatmul.mubr.f32.gmra.mxu0 %v2585
    %v2653 = vpop.f32.mrf.mxu0
    %v2654 = vadd.f32 0.0, %v2653
    %v2655 = vpop.f32.mrf.mxu0
    %2656 = vdwg.mxu0
    %v2658 = vrot.slane %v2654, 4
    %v2660 = vadd.f32 %v2248, %v2658
    %v2661 = vxor.u32 %v2660, 2147483648
    %v2662 = vmul.f32 %v2661, 1.442695
    %v2663 = vpow.pop %v2662
    %v2664 = vadd.f32 %v2663, 1.0
    %v2665 = vrcp.pop %v2664
    %v2666 = vmul.f32 1.0, %v2665
    %v2667 = vtanh.pop %v2660
    %v2669 = vrot.slane %v2468, 2
    %v2671 = vmul.f32 %v2666, %v2669
    %2673 = vrot.lane.b32.xlu0 %v2667, 64
    %v2674 = vpop.permute.xlu0 %2673
    %v2676 = vmul.f32 %v2666, %v2674
    %2678 = vrot.lane.b32.xlu0 %v2676, 32
    %v2679 = vpop.permute.xlu0 %2678
    %v2681 = vadd.f32 %v2671, %v2679
    %v2682 = vtanh.pop %v2681
    %2684 = vrot.lane.b32.xlu0 %v2682, 64
    %v2685 = vpop.permute.xlu0 %2684
    %v2687 = vmul.f32 %v2666, %v2685
    %v2689 = vrot.slane %v2580, 2
    %2690 = vrot.lane.b32.xlu0 %v2689, 32
    %v2691 = vpop.permute.xlu0 %2690
    %v2692 = vsel %vm123, %v2691, 0
    %2694 = vmatprep.subr.mxu0 0.0
    %2695 = vmatpush1.msra.mxu0 0.0
    %2696 = vmatprep.subr.mxu0 0.0
    %2697 = vmatpush1.msra.mxu0 0.0
    %2698 = vmatprep.subr.mxu0 0.0
    %2699 = vmatpush1.msra.mxu0 0.0
    %2700 = vmatprep.subr.mxu0 0.0
    %2701 = vmatpush1.msra.mxu0 0.0
    %2702 = vmatprep.subr.mxu0 0.0
    %2703 = vmatpush1.msra.mxu0 0.0
    %2704 = vmatprep.subr.mxu0 0.0
    %2705 = vmatpush1.msra.mxu0 0.0
    %2706 = vmatprep.subr.mxu0 0.0
    %2707 = vmatpush1.msra.mxu0 0.0
    %2708 = vmatprep.subr.mxu0 0.0
    %2709 = vmatpush1.msra.mxu0 0.0
    %2710 = vmatprep.subr.mxu0 0.0
    %2711 = vmatpush1.msra.mxu0 0.0
    %2712 = vmatprep.subr.mxu0 0.0
    %2713 = vmatpush1.msra.mxu0 0.0
    %2714 = vmatprep.subr.mxu0 0.0
    %2715 = vmatpush1.msra.mxu0 0.0
    %2716 = vmatprep.subr.mxu0 0.0
    %2717 = vmatpush1.msra.mxu0 0.0
    %2718 = vmatprep.subr.mxu0 0.0
    %2719 = vmatpush1.msra.mxu0 %v2253
    %2720 = vmatprep.subr.mxu0 0.0
    %2721 = vmatpush1.msra.mxu0 %v2252
    %2722 = vmatprep.subr.mxu0 0.0
    %2723 = vmatpush1.msra.mxu0 %v2251
    %2724 = vmatprep.subr.mxu0 0.0
    %2725 = vmatpush1.msra.mxu0 %v2250
    %2726 = vmatprep.subr.mxu0 0.0
    %2727 = vmatpush2.msra.mxu0 0.0
    %2728 = vmatprep.subr.mxu0 0.0
    %2729 = vmatpush2.msra.mxu0 0.0
    %2730 = vmatprep.subr.mxu0 0.0
    %2731 = vmatpush2.msra.mxu0 0.0
    %2732 = vmatprep.subr.mxu0 0.0
    %2733 = vmatpush2.msra.mxu0 0.0
    %2734 = vmatprep.subr.mxu0 0.0
    %2735 = vmatpush2.msra.mxu0 0.0
    %2736 = vmatprep.subr.mxu0 0.0
    %2737 = vmatpush2.msra.mxu0 0.0
    %2738 = vmatprep.subr.mxu0 0.0
    %2739 = vmatpush2.msra.mxu0 0.0
    %2740 = vmatprep.subr.mxu0 0.0
    %2741 = vmatpush2.msra.mxu0 0.0
    %2742 = vmatprep.subr.mxu0 0.0
    %2743 = vmatpush2.msra.mxu0 0.0
    %2744 = vmatprep.subr.mxu0 0.0
    %2745 = vmatpush2.msra.mxu0 0.0
    %2746 = vmatprep.subr.mxu0 0.0
    %2747 = vmatpush2.msra.mxu0 0.0
    %2748 = vmatprep.subr.mxu0 0.0
    %2749 = vmatpush2.msra.mxu0 0.0
    %2750 = vmatprep.subr.mxu0 0.0
    %2751 = vmatpush2.msra.mxu0 0.0
    %2752 = vmatprep.subr.mxu0 0.0
    %2753 = vmatpush2.msra.mxu0 0.0
    %2754 = vmatprep.subr.mxu0 0.0
    %2755 = vmatpush2.msra.mxu0 0.0
    %2756 = vmatprep.subr.mxu0 0.0
    %2757 = vmatpush2.msra.mxu0 0.0
    %2758 = vmatprep.mubr.f32.mxu0 0.0
    %2759 = vmatmul.mubr.f32.gmra.mxu0 %v2692
    %v2760 = vpop.f32.mrf.mxu0
    %v2761 = vadd.f32 0.0, %v2760
    %v2762 = vpop.f32.mrf.mxu0
    %2763 = vdwg.mxu0
    %v2765 = vrot.slane %v2761, 4
    %v2767 = vadd.f32 %v2089, %v2765
    %v2768 = vxor.u32 %v2767, 2147483648
    %v2769 = vmul.f32 %v2768, 1.442695
    %v2770 = vpow.pop %v2769
    %v2771 = vadd.f32 %v2770, 1.0
    %v2772 = vrcp.pop %v2771
    %v2773 = vmul.f32 1.0, %v2772
    %v2774 = vtanh.pop %v2767
    %v2776 = vrot.slane %v2574, 6
    %v2778 = vmul.f32 %v2773, %v2776
    %2780 = vrot.lane.b32.xlu0 %v2774, 64
    %v2781 = vpop.permute.xlu0 %2780
    %v2783 = vmul.f32 %v2773, %v2781
    %2785 = vrot.lane.b32.xlu0 %v2783, 32
    %v2786 = vpop.permute.xlu0 %2785
    %v2788 = vadd.f32 %v2778, %v2786
    %v2789 = vtanh.pop %v2788
    %2791 = vrot.lane.b32.xlu0 %v2789, 64
    %v2792 = vpop.permute.xlu0 %2791
    %v2794 = vmul.f32 %v2773, %v2792
    %v2796 = vrot.slane %v2687, 4
    %2797 = vrot.lane.b32.xlu0 %v2796, 32
    %v2798 = vpop.permute.xlu0 %2797
    %v2799 = vsel %vm123, %v2798, 0
    %2801 = vmatprep.subr.mxu0 0.0
    %2802 = vmatpush1.msra.mxu0 0.0
    %2803 = vmatprep.subr.mxu0 0.0
    %2804 = vmatpush1.msra.mxu0 0.0
    %2805 = vmatprep.subr.mxu0 0.0
    %2806 = vmatpush1.msra.mxu0 0.0
    %2807 = vmatprep.subr.mxu0 0.0
    %2808 = vmatpush1.msra.mxu0 0.0
    %2809 = vmatprep.subr.mxu0 0.0
    %2810 = vmatpush1.msra.mxu0 0.0
    %2811 = vmatprep.subr.mxu0 0.0
    %2812 = vmatpush1.msra.mxu0 0.0
    %2813 = vmatprep.subr.mxu0 0.0
    %2814 = vmatpush1.msra.mxu0 0.0
    %2815 = vmatprep.subr.mxu0 0.0
    %2816 = vmatpush1.msra.mxu0 0.0
    %2817 = vmatprep.subr.mxu0 0.0
    %2818 = vmatpush1.msra.mxu0 0.0
    %2819 = vmatprep.subr.mxu0 0.0
    %2820 = vmatpush1.msra.mxu0 0.0
    %2821 = vmatprep.subr.mxu0 0.0
    %2822 = vmatpush1.msra.mxu0 0.0
    %2823 = vmatprep.subr.mxu0 0.0
    %2824 = vmatpush1.msra.mxu0 0.0
    %2825 = vmatprep.subr.mxu0 0.0
    %2826 = vmatpush1.msra.mxu0 %v2258
    %2827 = vmatprep.subr.mxu0 0.0
    %2828 = vmatpush1.msra.mxu0 %v2257
    %2829 = vmatprep.subr.mxu0 0.0
    %2830 = vmatpush1.msra.mxu0 %v2256
    %2831 = vmatprep.subr.mxu0 0.0
    %2832 = vmatpush1.msra.mxu0 %v2255
    %2833 = vmatprep.subr.mxu0 0.0
    %2834 = vmatpush2.msra.mxu0 0.0
    %2835 = vmatprep.subr.mxu0 0.0
    %2836 = vmatpush2.msra.mxu0 0.0
    %2837 = vmatprep.subr.mxu0 0.0
    %2838 = vmatpush2.msra.mxu0 0.0
    %2839 = vmatprep.subr.mxu0 0.0
    %2840 = vmatpush2.msra.mxu0 0.0
    %2841 = vmatprep.subr.mxu0 0.0
    %2842 = vmatpush2.msra.mxu0 0.0
    %2843 = vmatprep.subr.mxu0 0.0
    %2844 = vmatpush2.msra.mxu0 0.0
    %2845 = vmatprep.subr.mxu0 0.0
    %2846 = vmatpush2.msra.mxu0 0.0
    %2847 = vmatprep.subr.mxu0 0.0
    %2848 = vmatpush2.msra.mxu0 0.0
    %2849 = vmatprep.subr.mxu0 0.0
    %2850 = vmatpush2.msra.mxu0 0.0
    %2851 = vmatprep.subr.mxu0 0.0
    %2852 = vmatpush2.msra.mxu0 0.0
    %2853 = vmatprep.subr.mxu0 0.0
    %2854 = vmatpush2.msra.mxu0 0.0
    %2855 = vmatprep.subr.mxu0 0.0
    %2856 = vmatpush2.msra.mxu0 0.0
    %2857 = vmatprep.subr.mxu0 0.0
    %2858 = vmatpush2.msra.mxu0 0.0
    %2859 = vmatprep.subr.mxu0 0.0
    %2860 = vmatpush2.msra.mxu0 0.0
    %2861 = vmatprep.subr.mxu0 0.0
    %2862 = vmatpush2.msra.mxu0 0.0
    %2863 = vmatprep.subr.mxu0 0.0
    %2864 = vmatpush2.msra.mxu0 0.0
    %2865 = vmatprep.mubr.f32.mxu0 0.0
    %2866 = vmatmul.mubr.f32.gmra.mxu0 %v2799
    %v2867 = vpop.f32.mrf.mxu0
    %v2868 = vadd.f32 0.0, %v2867
    %v2869 = vpop.f32.mrf.mxu0
    %2870 = vdwg.mxu0
    %v2872 = vrot.slane %v2868, 6
    %v2874 = vadd.f32 %v2248, %v2872
    %v2875 = vxor.u32 %v2874, 2147483648
    %v2876 = vmul.f32 %v2875, 1.442695
    %v2877 = vpow.pop %v2876
    %v2878 = vadd.f32 %v2877, 1.0
    %v2879 = vrcp.pop %v2878
    %v2880 = vmul.f32 1.0, %v2879
    %v2881 = vtanh.pop %v2874
    %v2883 = vrot.slane %v2681, 2
    %v2885 = vmul.f32 %v2880, %v2883
    %2887 = vrot.lane.b32.xlu0 %v2881, 64
    %v2888 = vpop.permute.xlu0 %2887
    %v2890 = vmul.f32 %v2880, %v2888
    %2892 = vrot.lane.b32.xlu0 %v2890, 32
    %v2893 = vpop.permute.xlu0 %2892
    %v2895 = vadd.f32 %v2885, %v2893
    %v2896 = vtanh.pop %v2895
    %2898 = vrot.lane.b32.xlu0 %v2896, 64
    %v2899 = vpop.permute.xlu0 %2898
    %v2901 = vmul.f32 %v2880, %v2899
    %v2903 = vrot.slane %v2794, 4
    %2904 = vrot.lane.b32.xlu0 %v2903, 32
    %v2905 = vpop.permute.xlu0 %2904
    %v2906 = vsel %vm123, %v2905, 0
    %2908 = vmatprep.subr.mxu0 0.0
    %2909 = vmatpush1.msra.mxu0 0.0
    %2910 = vmatprep.subr.mxu0 0.0
    %2911 = vmatpush1.msra.mxu0 0.0
    %2912 = vmatprep.subr.mxu0 0.0
    %2913 = vmatpush1.msra.mxu0 0.0
    %2914 = vmatprep.subr.mxu0 0.0
    %2915 = vmatpush1.msra.mxu0 0.0
    %2916 = vmatprep.subr.mxu0 0.0
    %2917 = vmatpush1.msra.mxu0 0.0
    %2918 = vmatprep.subr.mxu0 0.0
    %2919 = vmatpush1.msra.mxu0 0.0
    %2920 = vmatprep.subr.mxu0 0.0
    %2921 = vmatpush1.msra.mxu0 0.0
    %2922 = vmatprep.subr.mxu0 0.0
    %2923 = vmatpush1.msra.mxu0 0.0
    %2924 = vmatprep.subr.mxu0 0.0
    %2925 = vmatpush1.msra.mxu0 0.0
    %2926 = vmatprep.subr.mxu0 0.0
    %2927 = vmatpush1.msra.mxu0 0.0
    %2928 = vmatprep.subr.mxu0 0.0
    %2929 = vmatpush1.msra.mxu0 0.0
    %2930 = vmatprep.subr.mxu0 0.0
    %2931 = vmatpush1.msra.mxu0 0.0
    %2932 = vmatprep.subr.mxu0 0.0
    %2933 = vmatpush1.msra.mxu0 %v2253
    %2934 = vmatprep.subr.mxu0 0.0
    %2935 = vmatpush1.msra.mxu0 %v2252
    %2936 = vmatprep.subr.mxu0 0.0
    %2937 = vmatpush1.msra.mxu0 %v2251
    %2938 = vmatprep.subr.mxu0 0.0
    %2939 = vmatpush1.msra.mxu0 %v2250
    %2940 = vmatprep.subr.mxu0 0.0
    %2941 = vmatpush2.msra.mxu0 0.0
    %2942 = vmatprep.subr.mxu0 0.0
    %2943 = vmatpush2.msra.mxu0 0.0
    %2944 = vmatprep.subr.mxu0 0.0
    %2945 = vmatpush2.msra.mxu0 0.0
    %2946 = vmatprep.subr.mxu0 0.0
    %2947 = vmatpush2.msra.mxu0 0.0
    %2948 = vmatprep.subr.mxu0 0.0
    %2949 = vmatpush2.msra.mxu0 0.0
    %2950 = vmatprep.subr.mxu0 0.0
    %2951 = vmatpush2.msra.mxu0 0.0
    %2952 = vmatprep.subr.mxu0 0.0
    %2953 = vmatpush2.msra.mxu0 0.0
    %2954 = vmatprep.subr.mxu0 0.0
    %2955 = vmatpush2.msra.mxu0 0.0
    %2956 = vmatprep.subr.mxu0 0.0
    %2957 = vmatpush2.msra.mxu0 0.0
    %2958 = vmatprep.subr.mxu0 0.0
    %2959 = vmatpush2.msra.mxu0 0.0
    %2960 = vmatprep.subr.mxu0 0.0
    %2961 = vmatpush2.msra.mxu0 0.0
    %2962 = vmatprep.subr.mxu0 0.0
    %2963 = vmatpush2.msra.mxu0 0.0
    %2964 = vmatprep.subr.mxu0 0.0
    %2965 = vmatpush2.msra.mxu0 0.0
    %2966 = vmatprep.subr.mxu0 0.0
    %2967 = vmatpush2.msra.mxu0 0.0
    %2968 = vmatprep.subr.mxu0 0.0
    %2969 = vmatpush2.msra.mxu0 0.0
    %2970 = vmatprep.subr.mxu0 0.0
    %2971 = vmatpush2.msra.mxu0 0.0
    %2972 = vmatprep.mubr.f32.mxu0 0.0
    %2973 = vmatmul.mubr.f32.gmra.mxu0 %v2906
    %v2974 = vpop.f32.mrf.mxu0
    %v2975 = vadd.f32 0.0, %v2974
    %v2976 = vpop.f32.mrf.mxu0
    %2977 = vdwg.mxu0
    %v2979 = vrot.slane %v2975, 2
    %v2981 = vadd.f32 %v2089, %v2979
    %v2982 = vxor.u32 %v2981, 2147483648
    %v2983 = vmul.f32 %v2982, 1.442695
    %v2984 = vpow.pop %v2983
    %v2985 = vadd.f32 %v2984, 1.0
    %v2986 = vrcp.pop %v2985
    %v2987 = vmul.f32 1.0, %v2986
    %v2988 = vtanh.pop %v2981
    %v2990 = vrot.slane %v2788, 6
    %v2992 = vmul.f32 %v2987, %v2990
    %2994 = vrot.lane.b32.xlu0 %v2988, 64
    %v2995 = vpop.permute.xlu0 %2994
    %v2997 = vmul.f32 %v2987, %v2995
    %2999 = vrot.lane.b32.xlu0 %v2997, 32
    %v3000 = vpop.permute.xlu0 %2999
    %v3002 = vadd.f32 %v2992, %v3000
    %v3003 = vtanh.pop %v3002
    %3005 = vrot.lane.b32.xlu0 %v3003, 64
    %v3006 = vpop.permute.xlu0 %3005
    %v3008 = vmul.f32 %v2987, %v3006
    %v3010 = vrot.slane %v2901, 2
    %3011 = vrot.lane.b32.xlu0 %v3010, 32
    %v3012 = vpop.permute.xlu0 %3011
    %v3013 = vsel %vm123, %v3012, 0
    %3015 = vmatprep.subr.mxu0 0.0
    %3016 = vmatpush1.msra.mxu0 0.0
    %3017 = vmatprep.subr.mxu0 0.0
    %3018 = vmatpush1.msra.mxu0 0.0
    %3019 = vmatprep.subr.mxu0 0.0
    %3020 = vmatpush1.msra.mxu0 0.0
    %3021 = vmatprep.subr.mxu0 0.0
    %3022 = vmatpush1.msra.mxu0 0.0
    %3023 = vmatprep.subr.mxu0 0.0
    %3024 = vmatpush1.msra.mxu0 0.0
    %3025 = vmatprep.subr.mxu0 0.0
    %3026 = vmatpush1.msra.mxu0 0.0
    %3027 = vmatprep.subr.mxu0 0.0
    %3028 = vmatpush1.msra.mxu0 0.0
    %3029 = vmatprep.subr.mxu0 0.0
    %3030 = vmatpush1.msra.mxu0 0.0
    %3031 = vmatprep.subr.mxu0 0.0
    %3032 = vmatpush1.msra.mxu0 0.0
    %3033 = vmatprep.subr.mxu0 0.0
    %3034 = vmatpush1.msra.mxu0 0.0
    %3035 = vmatprep.subr.mxu0 0.0
    %3036 = vmatpush1.msra.mxu0 0.0
    %3037 = vmatprep.subr.mxu0 0.0
    %3038 = vmatpush1.msra.mxu0 0.0
    %3039 = vmatprep.subr.mxu0 0.0
    %3040 = vmatpush1.msra.mxu0 %v2258
    %3041 = vmatprep.subr.mxu0 0.0
    %3042 = vmatpush1.msra.mxu0 %v2257
    %3043 = vmatprep.subr.mxu0 0.0
    %3044 = vmatpush1.msra.mxu0 %v2256
    %3045 = vmatprep.subr.mxu0 0.0
    %3046 = vmatpush1.msra.mxu0 %v2255
    %3047 = vmatprep.subr.mxu0 0.0
    %3048 = vmatpush2.msra.mxu0 0.0
    %3049 = vmatprep.subr.mxu0 0.0
    %3050 = vmatpush2.msra.mxu0 0.0
    %3051 = vmatprep.subr.mxu0 0.0
    %3052 = vmatpush2.msra.mxu0 0.0
    %3053 = vmatprep.subr.mxu0 0.0
    %3054 = vmatpush2.msra.mxu0 0.0
    %3055 = vmatprep.subr.mxu0 0.0
    %3056 = vmatpush2.msra.mxu0 0.0
    %3057 = vmatprep.subr.mxu0 0.0
    %3058 = vmatpush2.msra.mxu0 0.0
    %3059 = vmatprep.subr.mxu0 0.0
    %3060 = vmatpush2.msra.mxu0 0.0
    %3061 = vmatprep.subr.mxu0 0.0
    %3062 = vmatpush2.msra.mxu0 0.0
    %3063 = vmatprep.subr.mxu0 0.0
    %3064 = vmatpush2.msra.mxu0 0.0
    %3065 = vmatprep.subr.mxu0 0.0
    %3066 = vmatpush2.msra.mxu0 0.0
    %3067 = vmatprep.subr.mxu0 0.0
    %3068 = vmatpush2.msra.mxu0 0.0
    %3069 = vmatprep.subr.mxu0 0.0
    %3070 = vmatpush2.msra.mxu0 0.0
    %3071 = vmatprep.subr.mxu0 0.0
    %3072 = vmatpush2.msra.mxu0 0.0
    %3073 = vmatprep.subr.mxu0 0.0
    %3074 = vmatpush2.msra.mxu0 0.0
    %3075 = vmatprep.subr.mxu0 0.0
    %3076 = vmatpush2.msra.mxu0 0.0
    %3077 = vmatprep.subr.mxu0 0.0
    %3078 = vmatpush2.msra.mxu0 0.0
    %3079 = vmatprep.mubr.f32.mxu0 0.0
    %3080 = vmatmul.mubr.f32.gmra.mxu0 %v3013
    %v3081 = vpop.f32.mrf.mxu0
    %v3082 = vadd.f32 0.0, %v3081
    %v3083 = vpop.f32.mrf.mxu0
    %3084 = vdwg.mxu0
    %v3085 = vadd.f32 %v2248, %v3082
    %v3086 = vxor.u32 %v3085, 2147483648
    %v3087 = vmul.f32 %v3086, 1.442695
    %v3088 = vpow.pop %v3087
    %v3089 = vadd.f32 %v3088, 1.0
    %v3090 = vrcp.pop %v3089
    %v3091 = vmul.f32 1.0, %v3090
    %v3092 = vtanh.pop %v3085
    %v3094 = vrot.slane %v2895, 2
    %v3096 = vmul.f32 %v3091, %v3094
    %3098 = vrot.lane.b32.xlu0 %v3092, 64
    %v3099 = vpop.permute.xlu0 %3098
    %v3101 = vmul.f32 %v3091, %v3099
    %3103 = vrot.lane.b32.xlu0 %v3101, 32
    %v3104 = vpop.permute.xlu0 %3103
    %v3106 = vadd.f32 %v3096, %v3104
    %v3107 = vtanh.pop %v3106
    %3109 = vrot.lane.b32.xlu0 %v3107, 64
    %v3110 = vpop.permute.xlu0 %3109
    %v3112 = vmul.f32 %v3091, %v3110
    %v3114 = vrot.slane %v3008, 6
    %3115 = vrot.lane.b32.xlu0 %v3114, 32
    %v3116 = vpop.permute.xlu0 %3115
    %v3117 = vsel %vm123, %v3116, 0
    %3119 = vmatprep.subr.mxu0 0.0
    %3120 = vmatpush1.msra.mxu0 0.0
    %3121 = vmatprep.subr.mxu0 0.0
    %3122 = vmatpush1.msra.mxu0 0.0
    %3123 = vmatprep.subr.mxu0 0.0
    %3124 = vmatpush1.msra.mxu0 0.0
    %3125 = vmatprep.subr.mxu0 0.0
    %3126 = vmatpush1.msra.mxu0 0.0
    %3127 = vmatprep.subr.mxu0 0.0
    %3128 = vmatpush1.msra.mxu0 0.0
    %3129 = vmatprep.subr.mxu0 0.0
    %3130 = vmatpush1.msra.mxu0 0.0
    %3131 = vmatprep.subr.mxu0 0.0
    %3132 = vmatpush1.msra.mxu0 0.0
    %3133 = vmatprep.subr.mxu0 0.0
    %3134 = vmatpush1.msra.mxu0 0.0
    %3135 = vmatprep.subr.mxu0 0.0
    %3136 = vmatpush1.msra.mxu0 0.0
    %3137 = vmatprep.subr.mxu0 0.0
    %3138 = vmatpush1.msra.mxu0 0.0
    %3139 = vmatprep.subr.mxu0 0.0
    %3140 = vmatpush1.msra.mxu0 0.0
    %3141 = vmatprep.subr.mxu0 0.0
    %3142 = vmatpush1.msra.mxu0 0.0
    %3143 = vmatprep.subr.mxu0 0.0
    %3144 = vmatpush1.msra.mxu0 %v2253
    %3145 = vmatprep.subr.mxu0 0.0
    %3146 = vmatpush1.msra.mxu0 %v2252
    %3147 = vmatprep.subr.mxu0 0.0
    %3148 = vmatpush1.msra.mxu0 %v2251
    %3149 = vmatprep.subr.mxu0 0.0
    %3150 = vmatpush1.msra.mxu0 %v2250
    %3151 = vmatprep.subr.mxu0 0.0
    %3152 = vmatpush2.msra.mxu0 0.0
    %3153 = vmatprep.subr.mxu0 0.0
    %3154 = vmatpush2.msra.mxu0 0.0
    %3155 = vmatprep.subr.mxu0 0.0
    %3156 = vmatpush2.msra.mxu0 0.0
    %3157 = vmatprep.subr.mxu0 0.0
    %3158 = vmatpush2.msra.mxu0 0.0
    %3159 = vmatprep.subr.mxu0 0.0
    %3160 = vmatpush2.msra.mxu0 0.0
    %3161 = vmatprep.subr.mxu0 0.0
    %3162 = vmatpush2.msra.mxu0 0.0
    %3163 = vmatprep.subr.mxu0 0.0
    %3164 = vmatpush2.msra.mxu0 0.0
    %3165 = vmatprep.subr.mxu0 0.0
    %3166 = vmatpush2.msra.mxu0 0.0
    %3167 = vmatprep.subr.mxu0 0.0
    %3168 = vmatpush2.msra.mxu0 0.0
    %3169 = vmatprep.subr.mxu0 0.0
    %3170 = vmatpush2.msra.mxu0 0.0
    %3171 = vmatprep.subr.mxu0 0.0
    %3172 = vmatpush2.msra.mxu0 0.0
    %3173 = vmatprep.subr.mxu0 0.0
    %3174 = vmatpush2.msra.mxu0 0.0
    %3175 = vmatprep.subr.mxu0 0.0
    %3176 = vmatpush2.msra.mxu0 0.0
    %3177 = vmatprep.subr.mxu0 0.0
    %3178 = vmatpush2.msra.mxu0 0.0
    %3179 = vmatprep.subr.mxu0 0.0
    %3180 = vmatpush2.msra.mxu0 0.0
    %3181 = vmatprep.subr.mxu0 0.0
    %3182 = vmatpush2.msra.mxu0 0.0
    %3183 = vmatprep.mubr.f32.mxu0 0.0
    %3184 = vmatmul.mubr.f32.gmra.mxu0 %v3117
    %v3185 = vpop.f32.mrf.mxu0
    %v3186 = vadd.f32 0.0, %v3185
    %v3187 = vpop.f32.mrf.mxu0
    %3188 = vdwg.mxu0
    %v3189 = vadd.f32 %v2090, %v3186
    %v3190 = vxor.u32 %v3189, 2147483648
    %v3191 = vmul.f32 %v3190, 1.442695
    %v3192 = vpow.pop %v3191
    %v3193 = vadd.f32 %v3192, 1.0
    %v3194 = vrcp.pop %v3193
    %v3195 = vmul.f32 1.0, %v3194
    %v3196 = vtanh.pop %v3189
    %v3198 = vrot.slane %v3002, 6
    %v3200 = vmul.f32 %v3195, %v3198
    %3202 = vrot.lane.b32.xlu0 %v3196, 64
    %v3203 = vpop.permute.xlu0 %3202
    %v3205 = vmul.f32 %v3195, %v3203
    %3207 = vrot.lane.b32.xlu0 %v3205, 32
    %v3208 = vpop.permute.xlu0 %3207
    %v3210 = vadd.f32 %v3200, %v3208
    %v3211 = vtanh.pop %v3210
    %3213 = vrot.lane.b32.xlu0 %v3211, 64
    %v3214 = vpop.permute.xlu0 %3213
    %v3216 = vmul.f32 %v3195, %v3214
    %3218 = vrot.lane.b32.xlu0 %v3112, 32
    %v3219 = vpop.permute.xlu0 %3218
    %v3220 = vsel %vm123, %v3219, 0
    %3222 = vmatprep.subr.mxu0 0.0
    %3223 = vmatpush1.msra.mxu0 0.0
    %3224 = vmatprep.subr.mxu0 0.0
    %3225 = vmatpush1.msra.mxu0 0.0
    %3226 = vmatprep.subr.mxu0 0.0
    %3227 = vmatpush1.msra.mxu0 0.0
    %3228 = vmatprep.subr.mxu0 0.0
    %3229 = vmatpush1.msra.mxu0 0.0
    %3230 = vmatprep.subr.mxu0 0.0
    %3231 = vmatpush1.msra.mxu0 0.0
    %3232 = vmatprep.subr.mxu0 0.0
    %3233 = vmatpush1.msra.mxu0 0.0
    %3234 = vmatprep.subr.mxu0 0.0
    %3235 = vmatpush1.msra.mxu0 0.0
    %3236 = vmatprep.subr.mxu0 0.0
    %3237 = vmatpush1.msra.mxu0 0.0
    %3238 = vmatprep.subr.mxu0 0.0
    %3239 = vmatpush1.msra.mxu0 0.0
    %3240 = vmatprep.subr.mxu0 0.0
    %3241 = vmatpush1.msra.mxu0 0.0
    %3242 = vmatprep.subr.mxu0 0.0
    %3243 = vmatpush1.msra.mxu0 0.0
    %3244 = vmatprep.subr.mxu0 0.0
    %3245 = vmatpush1.msra.mxu0 0.0
    %3246 = vmatprep.subr.mxu0 0.0
    %3247 = vmatpush1.msra.mxu0 %v2258
    %3248 = vmatprep.subr.mxu0 0.0
    %3249 = vmatpush1.msra.mxu0 %v2257
    %3250 = vmatprep.subr.mxu0 0.0
    %3251 = vmatpush1.msra.mxu0 %v2256
    %3252 = vmatprep.subr.mxu0 0.0
    %3253 = vmatpush1.msra.mxu0 %v2255
    %3254 = vmatprep.subr.mxu0 0.0
    %3255 = vmatpush2.msra.mxu0 0.0
    %3256 = vmatprep.subr.mxu0 0.0
    %3257 = vmatpush2.msra.mxu0 0.0
    %3258 = vmatprep.subr.mxu0 0.0
    %3259 = vmatpush2.msra.mxu0 0.0
    %3260 = vmatprep.subr.mxu0 0.0
    %3261 = vmatpush2.msra.mxu0 0.0
    %3262 = vmatprep.subr.mxu0 0.0
    %3263 = vmatpush2.msra.mxu0 0.0
    %3264 = vmatprep.subr.mxu0 0.0
    %3265 = vmatpush2.msra.mxu0 0.0
    %3266 = vmatprep.subr.mxu0 0.0
    %3267 = vmatpush2.msra.mxu0 0.0
    %3268 = vmatprep.subr.mxu0 0.0
    %3269 = vmatpush2.msra.mxu0 0.0
    %3270 = vmatprep.subr.mxu0 0.0
    %3271 = vmatpush2.msra.mxu0 0.0
    %3272 = vmatprep.subr.mxu0 0.0
    %3273 = vmatpush2.msra.mxu0 0.0
    %3274 = vmatprep.subr.mxu0 0.0
    %3275 = vmatpush2.msra.mxu0 0.0
    %3276 = vmatprep.subr.mxu0 0.0
    %3277 = vmatpush2.msra.mxu0 0.0
    %3278 = vmatprep.subr.mxu0 0.0
    %3279 = vmatpush2.msra.mxu0 0.0
    %3280 = vmatprep.subr.mxu0 0.0
    %3281 = vmatpush2.msra.mxu0 0.0
    %3282 = vmatprep.subr.mxu0 0.0
    %3283 = vmatpush2.msra.mxu0 0.0
    %3284 = vmatprep.subr.mxu0 0.0
    %3285 = vmatpush2.msra.mxu0 0.0
    %3286 = vmatprep.mubr.f32.mxu0 0.0
    %3287 = vmatmul.mubr.f32.gmra.mxu0 %v3220
    %v3288 = vpop.f32.mrf.mxu0
    %v3289 = vadd.f32 0.0, %v3288
    %v3290 = vpop.f32.mrf.mxu0
    %3291 = vdwg.mxu0
    %v3293 = vrot.slane %v3289, 2
    %v3295 = vadd.f32 %v2247, %v3293
    %v3296 = vxor.u32 %v3295, 2147483648
    %v3297 = vmul.f32 %v3296, 1.442695
    %v3298 = vpow.pop %v3297
    %v3299 = vadd.f32 %v3298, 1.0
    %v3300 = vrcp.pop %v3299
    %v3301 = vmul.f32 1.0, %v3300
    %v3302 = vtanh.pop %v3295
    %v3304 = vrot.slane %v3106, 2
    %v3306 = vmul.f32 %v3301, %v3304
    %3308 = vrot.lane.b32.xlu0 %v3302, 64
    %v3309 = vpop.permute.xlu0 %3308
    %v3311 = vmul.f32 %v3301, %v3309
    %3313 = vrot.lane.b32.xlu0 %v3311, 32
    %v3314 = vpop.permute.xlu0 %3313
    %v3316 = vadd.f32 %v3306, %v3314
    %v3317 = vtanh.pop %v3316
    %3319 = vrot.lane.b32.xlu0 %v3317, 64
    %v3320 = vpop.permute.xlu0 %3319
    %v3322 = vmul.f32 %v3301, %v3320
    %3324 = vrot.lane.b32.xlu0 %v3216, 32
    %v3325 = vpop.permute.xlu0 %3324
    %v3326 = vsel %vm123, %v3325, 0
    %3328 = vmatprep.subr.mxu0 0.0
    %3329 = vmatpush1.msra.mxu0 0.0
    %3330 = vmatprep.subr.mxu0 0.0
    %3331 = vmatpush1.msra.mxu0 0.0
    %3332 = vmatprep.subr.mxu0 0.0
    %3333 = vmatpush1.msra.mxu0 0.0
    %3334 = vmatprep.subr.mxu0 0.0
    %3335 = vmatpush1.msra.mxu0 0.0
    %3336 = vmatprep.subr.mxu0 0.0
    %3337 = vmatpush1.msra.mxu0 0.0
    %3338 = vmatprep.subr.mxu0 0.0
    %3339 = vmatpush1.msra.mxu0 0.0
    %3340 = vmatprep.subr.mxu0 0.0
    %3341 = vmatpush1.msra.mxu0 0.0
    %3342 = vmatprep.subr.mxu0 0.0
    %3343 = vmatpush1.msra.mxu0 0.0
    %3344 = vmatprep.subr.mxu0 0.0
    %3345 = vmatpush1.msra.mxu0 0.0
    %3346 = vmatprep.subr.mxu0 0.0
    %3347 = vmatpush1.msra.mxu0 0.0
    %3348 = vmatprep.subr.mxu0 0.0
    %3349 = vmatpush1.msra.mxu0 0.0
    %3350 = vmatprep.subr.mxu0 0.0
    %3351 = vmatpush1.msra.mxu0 0.0
    %3352 = vmatprep.subr.mxu0 0.0
    %3353 = vmatpush1.msra.mxu0 %v2253
    %3354 = vmatprep.subr.mxu0 0.0
    %3355 = vmatpush1.msra.mxu0 %v2252
    %3356 = vmatprep.subr.mxu0 0.0
    %3357 = vmatpush1.msra.mxu0 %v2251
    %3358 = vmatprep.subr.mxu0 0.0
    %3359 = vmatpush1.msra.mxu0 %v2250
    %3360 = vmatprep.subr.mxu0 0.0
    %3361 = vmatpush2.msra.mxu0 0.0
    %3362 = vmatprep.subr.mxu0 0.0
    %3363 = vmatpush2.msra.mxu0 0.0
    %3364 = vmatprep.subr.mxu0 0.0
    %3365 = vmatpush2.msra.mxu0 0.0
    %3366 = vmatprep.subr.mxu0 0.0
    %3367 = vmatpush2.msra.mxu0 0.0
    %3368 = vmatprep.subr.mxu0 0.0
    %3369 = vmatpush2.msra.mxu0 0.0
    %3370 = vmatprep.subr.mxu0 0.0
    %3371 = vmatpush2.msra.mxu0 0.0
    %3372 = vmatprep.subr.mxu0 0.0
    %3373 = vmatpush2.msra.mxu0 0.0
    %3374 = vmatprep.subr.mxu0 0.0
    %3375 = vmatpush2.msra.mxu0 0.0
    %3376 = vmatprep.subr.mxu0 0.0
    %3377 = vmatpush2.msra.mxu0 0.0
    %3378 = vmatprep.subr.mxu0 0.0
    %3379 = vmatpush2.msra.mxu0 0.0
    %3380 = vmatprep.subr.mxu0 0.0
    %3381 = vmatpush2.msra.mxu0 0.0
    %3382 = vmatprep.subr.mxu0 0.0
    %3383 = vmatpush2.msra.mxu0 0.0
    %3384 = vmatprep.subr.mxu0 0.0
    %3385 = vmatpush2.msra.mxu0 0.0
    %3386 = vmatprep.subr.mxu0 0.0
    %3387 = vmatpush2.msra.mxu0 0.0
    %3388 = vmatprep.subr.mxu0 0.0
    %3389 = vmatpush2.msra.mxu0 0.0
    %3390 = vmatprep.subr.mxu0 0.0
    %3391 = vmatpush2.msra.mxu0 0.0
    %3392 = vmatprep.mubr.f32.mxu0 0.0
    %3393 = vmatmul.mubr.f32.gmra.mxu0 %v3326
    %v3394 = vpop.f32.mrf.mxu0
    %v3395 = vadd.f32 0.0, %v3394
    %v3396 = vpop.f32.mrf.mxu0
    %3397 = vdwg.mxu0
    %v3399 = vrot.slane %v3395, 6
    %v3401 = vadd.f32 %v2090, %v3399
    %v3402 = vxor.u32 %v3401, 2147483648
    %v3403 = vmul.f32 %v3402, 1.442695
    %v3404 = vpow.pop %v3403
    %v3405 = vadd.f32 %v3404, 1.0
    %v3406 = vrcp.pop %v3405
    %v3407 = vmul.f32 1.0, %v3406
    %v3408 = vtanh.pop %v3401
    %v3410 = vrot.slane %v3210, 6
    %v3412 = vmul.f32 %v3407, %v3410
    %3414 = vrot.lane.b32.xlu0 %v3408, 64
    %v3415 = vpop.permute.xlu0 %3414
    %v3417 = vmul.f32 %v3407, %v3415
    %3419 = vrot.lane.b32.xlu0 %v3417, 32
    %v3420 = vpop.permute.xlu0 %3419
    %v3422 = vadd.f32 %v3412, %v3420
    %v3423 = vtanh.pop %v3422
    %3425 = vrot.lane.b32.xlu0 %v3423, 64
    %v3426 = vpop.permute.xlu0 %3425
    %v3428 = vmul.f32 %v3407, %v3426
    %v3430 = vrot.slane %v3322, 6
    %3431 = vrot.lane.b32.xlu0 %v3430, 32
    %v3432 = vpop.permute.xlu0 %3431
    %v3433 = vsel %vm123, %v3432, 0
    %3435 = vmatprep.subr.mxu0 0.0
    %3436 = vmatpush1.msra.mxu0 0.0
    %3437 = vmatprep.subr.mxu0 0.0
    %3438 = vmatpush1.msra.mxu0 0.0
    %3439 = vmatprep.subr.mxu0 0.0
    %3440 = vmatpush1.msra.mxu0 0.0
    %3441 = vmatprep.subr.mxu0 0.0
    %3442 = vmatpush1.msra.mxu0 0.0
    %3443 = vmatprep.subr.mxu0 0.0
    %3444 = vmatpush1.msra.mxu0 0.0
    %3445 = vmatprep.subr.mxu0 0.0
    %3446 = vmatpush1.msra.mxu0 0.0
    %3447 = vmatprep.subr.mxu0 0.0
    %3448 = vmatpush1.msra.mxu0 0.0
    %3449 = vmatprep.subr.mxu0 0.0
    %3450 = vmatpush1.msra.mxu0 0.0
    %3451 = vmatprep.subr.mxu0 0.0
    %3452 = vmatpush1.msra.mxu0 0.0
    %3453 = vmatprep.subr.mxu0 0.0
    %3454 = vmatpush1.msra.mxu0 0.0
    %3455 = vmatprep.subr.mxu0 0.0
    %3456 = vmatpush1.msra.mxu0 0.0
    %3457 = vmatprep.subr.mxu0 0.0
    %3458 = vmatpush1.msra.mxu0 0.0
    %3459 = vmatprep.subr.mxu0 0.0
    %3460 = vmatpush1.msra.mxu0 %v2258
    %3461 = vmatprep.subr.mxu0 0.0
    %3462 = vmatpush1.msra.mxu0 %v2257
    %3463 = vmatprep.subr.mxu0 0.0
    %3464 = vmatpush1.msra.mxu0 %v2256
    %3465 = vmatprep.subr.mxu0 0.0
    %3466 = vmatpush1.msra.mxu0 %v2255
    %3467 = vmatprep.subr.mxu0 0.0
    %3468 = vmatpush2.msra.mxu0 0.0
    %3469 = vmatprep.subr.mxu0 0.0
    %3470 = vmatpush2.msra.mxu0 0.0
    %3471 = vmatprep.subr.mxu0 0.0
    %3472 = vmatpush2.msra.mxu0 0.0
    %3473 = vmatprep.subr.mxu0 0.0
    %3474 = vmatpush2.msra.mxu0 0.0
    %3475 = vmatprep.subr.mxu0 0.0
    %3476 = vmatpush2.msra.mxu0 0.0
    %3477 = vmatprep.subr.mxu0 0.0
    %3478 = vmatpush2.msra.mxu0 0.0
    %3479 = vmatprep.subr.mxu0 0.0
    %3480 = vmatpush2.msra.mxu0 0.0
    %3481 = vmatprep.subr.mxu0 0.0
    %3482 = vmatpush2.msra.mxu0 0.0
    %3483 = vmatprep.subr.mxu0 0.0
    %3484 = vmatpush2.msra.mxu0 0.0
    %3485 = vmatprep.subr.mxu0 0.0
    %3486 = vmatpush2.msra.mxu0 0.0
    %3487 = vmatprep.subr.mxu0 0.0
    %3488 = vmatpush2.msra.mxu0 0.0
    %3489 = vmatprep.subr.mxu0 0.0
    %3490 = vmatpush2.msra.mxu0 0.0
    %3491 = vmatprep.subr.mxu0 0.0
    %3492 = vmatpush2.msra.mxu0 0.0
    %3493 = vmatprep.subr.mxu0 0.0
    %3494 = vmatpush2.msra.mxu0 0.0
    %3495 = vmatprep.subr.mxu0 0.0
    %3496 = vmatpush2.msra.mxu0 0.0
    %3497 = vmatprep.subr.mxu0 0.0
    %3498 = vmatpush2.msra.mxu0 0.0
    %3499 = vmatprep.mubr.f32.mxu0 0.0
    %3500 = vmatmul.mubr.f32.gmra.mxu0 %v3433
    %v3501 = vpop.f32.mrf.mxu0
    %v3502 = vadd.f32 0.0, %v3501
    %v3503 = vpop.f32.mrf.mxu0
    %3504 = vdwg.mxu0
    %v3506 = vrot.slane %v3502, 4
    %v3508 = vadd.f32 %v2247, %v3506
    %v3509 = vxor.u32 %v3508, 2147483648
    %v3510 = vmul.f32 %v3509, 1.442695
    %v3511 = vpow.pop %v3510
    %v3512 = vadd.f32 %v3511, 1.0
    %v3513 = vrcp.pop %v3512
    %v3514 = vmul.f32 1.0, %v3513
    %v3515 = vtanh.pop %v3508
    %v3517 = vrot.slane %v3316, 2
    %v3519 = vmul.f32 %v3514, %v3517
    %3521 = vrot.lane.b32.xlu0 %v3515, 64
    %v3522 = vpop.permute.xlu0 %3521
    %v3524 = vmul.f32 %v3514, %v3522
    %3526 = vrot.lane.b32.xlu0 %v3524, 32
    %v3527 = vpop.permute.xlu0 %3526
    %v3529 = vadd.f32 %v3519, %v3527
    %v3530 = vtanh.pop %v3529
    %3532 = vrot.lane.b32.xlu0 %v3530, 64
    %v3533 = vpop.permute.xlu0 %3532
    %v3535 = vmul.f32 %v3514, %v3533
    %v3537 = vrot.slane %v3428, 2
    %3538 = vrot.lane.b32.xlu0 %v3537, 32
    %v3539 = vpop.permute.xlu0 %3538
    %v3540 = vsel %vm123, %v3539, 0
    %3542 = vmatprep.subr.mxu0 0.0
    %3543 = vmatpush1.msra.mxu0 0.0
    %3544 = vmatprep.subr.mxu0 0.0
    %3545 = vmatpush1.msra.mxu0 0.0
    %3546 = vmatprep.subr.mxu0 0.0
    %3547 = vmatpush1.msra.mxu0 0.0
    %3548 = vmatprep.subr.mxu0 0.0
    %3549 = vmatpush1.msra.mxu0 0.0
    %3550 = vmatprep.subr.mxu0 0.0
    %3551 = vmatpush1.msra.mxu0 0.0
    %3552 = vmatprep.subr.mxu0 0.0
    %3553 = vmatpush1.msra.mxu0 0.0
    %3554 = vmatprep.subr.mxu0 0.0
    %3555 = vmatpush1.msra.mxu0 0.0
    %3556 = vmatprep.subr.mxu0 0.0
    %3557 = vmatpush1.msra.mxu0 0.0
    %3558 = vmatprep.subr.mxu0 0.0
    %3559 = vmatpush1.msra.mxu0 0.0
    %3560 = vmatprep.subr.mxu0 0.0
    %3561 = vmatpush1.msra.mxu0 0.0
    %3562 = vmatprep.subr.mxu0 0.0
    %3563 = vmatpush1.msra.mxu0 0.0
    %3564 = vmatprep.subr.mxu0 0.0
    %3565 = vmatpush1.msra.mxu0 0.0
    %3566 = vmatprep.subr.mxu0 0.0
    %3567 = vmatpush1.msra.mxu0 %v2253
    %3568 = vmatprep.subr.mxu0 0.0
    %3569 = vmatpush1.msra.mxu0 %v2252
    %3570 = vmatprep.subr.mxu0 0.0
    %3571 = vmatpush1.msra.mxu0 %v2251
    %3572 = vmatprep.subr.mxu0 0.0
    %3573 = vmatpush1.msra.mxu0 %v2250
    %3574 = vmatprep.subr.mxu0 0.0
    %3575 = vmatpush2.msra.mxu0 0.0
    %3576 = vmatprep.subr.mxu0 0.0
    %3577 = vmatpush2.msra.mxu0 0.0
    %3578 = vmatprep.subr.mxu0 0.0
    %3579 = vmatpush2.msra.mxu0 0.0
    %3580 = vmatprep.subr.mxu0 0.0
    %3581 = vmatpush2.msra.mxu0 0.0
    %3582 = vmatprep.subr.mxu0 0.0
    %3583 = vmatpush2.msra.mxu0 0.0
    %3584 = vmatprep.subr.mxu0 0.0
    %3585 = vmatpush2.msra.mxu0 0.0
    %3586 = vmatprep.subr.mxu0 0.0
    %3587 = vmatpush2.msra.mxu0 0.0
    %3588 = vmatprep.subr.mxu0 0.0
    %3589 = vmatpush2.msra.mxu0 0.0
    %3590 = vmatprep.subr.mxu0 0.0
    %3591 = vmatpush2.msra.mxu0 0.0
    %3592 = vmatprep.subr.mxu0 0.0
    %3593 = vmatpush2.msra.mxu0 0.0
    %3594 = vmatprep.subr.mxu0 0.0
    %3595 = vmatpush2.msra.mxu0 0.0
    %3596 = vmatprep.subr.mxu0 0.0
    %3597 = vmatpush2.msra.mxu0 0.0
    %3598 = vmatprep.subr.mxu0 0.0
    %3599 = vmatpush2.msra.mxu0 0.0
    %3600 = vmatprep.subr.mxu0 0.0
    %3601 = vmatpush2.msra.mxu0 0.0
    %3602 = vmatprep.subr.mxu0 0.0
    %3603 = vmatpush2.msra.mxu0 0.0
    %3604 = vmatprep.subr.mxu0 0.0
    %3605 = vmatpush2.msra.mxu0 0.0
    %3606 = vmatprep.mubr.f32.mxu0 0.0
    %3607 = vmatmul.mubr.f32.gmra.mxu0 %v3540
    %v3608 = vpop.f32.mrf.mxu0
    %v3609 = vadd.f32 0.0, %v3608
    %v3610 = vpop.f32.mrf.mxu0
    %3611 = vdwg.mxu0
    %v3613 = vrot.slane %v3609, 4
    %v3615 = vadd.f32 %v2090, %v3613
    %v3616 = vxor.u32 %v3615, 2147483648
    %v3617 = vmul.f32 %v3616, 1.442695
    %v3618 = vpow.pop %v3617
    %v3619 = vadd.f32 %v3618, 1.0
    %v3620 = vrcp.pop %v3619
    %v3621 = vmul.f32 1.0, %v3620
    %v3622 = vtanh.pop %v3615
    %v3624 = vrot.slane %v3422, 6
    %v3626 = vmul.f32 %v3621, %v3624
    %3628 = vrot.lane.b32.xlu0 %v3622, 64
    %v3629 = vpop.permute.xlu0 %3628
    %v3631 = vmul.f32 %v3621, %v3629
    %3633 = vrot.lane.b32.xlu0 %v3631, 32
    %v3634 = vpop.permute.xlu0 %3633
    %v3636 = vadd.f32 %v3626, %v3634
    %v3637 = vtanh.pop %v3636
    %3639 = vrot.lane.b32.xlu0 %v3637, 64
    %v3640 = vpop.permute.xlu0 %3639
    %v3642 = vmul.f32 %v3621, %v3640
    %v3644 = vrot.slane %v3535, 4
    %3645 = vrot.lane.b32.xlu0 %v3644, 32
    %v3646 = vpop.permute.xlu0 %3645
    %v3647 = vsel %vm123, %v3646, 0
    %3649 = vmatprep.subr.mxu0 0.0
    %3650 = vmatpush1.msra.mxu0 0.0
    %3651 = vmatprep.subr.mxu0 0.0
    %3652 = vmatpush1.msra.mxu0 0.0
    %3653 = vmatprep.subr.mxu0 0.0
    %3654 = vmatpush1.msra.mxu0 0.0
    %3655 = vmatprep.subr.mxu0 0.0
    %3656 = vmatpush1.msra.mxu0 0.0
    %3657 = vmatprep.subr.mxu0 0.0
    %3658 = vmatpush1.msra.mxu0 0.0
    %3659 = vmatprep.subr.mxu0 0.0
    %3660 = vmatpush1.msra.mxu0 0.0
    %3661 = vmatprep.subr.mxu0 0.0
    %3662 = vmatpush1.msra.mxu0 0.0
    %3663 = vmatprep.subr.mxu0 0.0
    %3664 = vmatpush1.msra.mxu0 0.0
    %3665 = vmatprep.subr.mxu0 0.0
    %3666 = vmatpush1.msra.mxu0 0.0
    %3667 = vmatprep.subr.mxu0 0.0
    %3668 = vmatpush1.msra.mxu0 0.0
    %3669 = vmatprep.subr.mxu0 0.0
    %3670 = vmatpush1.msra.mxu0 0.0
    %3671 = vmatprep.subr.mxu0 0.0
    %3672 = vmatpush1.msra.mxu0 0.0
    %3673 = vmatprep.subr.mxu0 0.0
    %3674 = vmatpush1.msra.mxu0 %v2258
    %3675 = vmatprep.subr.mxu0 0.0
    %3676 = vmatpush1.msra.mxu0 %v2257
    %3677 = vmatprep.subr.mxu0 0.0
    %3678 = vmatpush1.msra.mxu0 %v2256
    %3679 = vmatprep.subr.mxu0 0.0
    %3680 = vmatpush1.msra.mxu0 %v2255
    %3681 = vmatprep.subr.mxu0 0.0
    %3682 = vmatpush2.msra.mxu0 0.0
    %3683 = vmatprep.subr.mxu0 0.0
    %3684 = vmatpush2.msra.mxu0 0.0
    %3685 = vmatprep.subr.mxu0 0.0
    %3686 = vmatpush2.msra.mxu0 0.0
    %3687 = vmatprep.subr.mxu0 0.0
    %3688 = vmatpush2.msra.mxu0 0.0
    %3689 = vmatprep.subr.mxu0 0.0
    %3690 = vmatpush2.msra.mxu0 0.0
    %3691 = vmatprep.subr.mxu0 0.0
    %3692 = vmatpush2.msra.mxu0 0.0
    %3693 = vmatprep.subr.mxu0 0.0
    %3694 = vmatpush2.msra.mxu0 0.0
    %3695 = vmatprep.subr.mxu0 0.0
    %3696 = vmatpush2.msra.mxu0 0.0
    %3697 = vmatprep.subr.mxu0 0.0
    %3698 = vmatpush2.msra.mxu0 0.0
    %3699 = vmatprep.subr.mxu0 0.0
    %3700 = vmatpush2.msra.mxu0 0.0
    %3701 = vmatprep.subr.mxu0 0.0
    %3702 = vmatpush2.msra.mxu0 0.0
    %3703 = vmatprep.subr.mxu0 0.0
    %3704 = vmatpush2.msra.mxu0 0.0
    %3705 = vmatprep.subr.mxu0 0.0
    %3706 = vmatpush2.msra.mxu0 0.0
    %3707 = vmatprep.subr.mxu0 0.0
    %3708 = vmatpush2.msra.mxu0 0.0
    %3709 = vmatprep.subr.mxu0 0.0
    %3710 = vmatpush2.msra.mxu0 0.0
    %3711 = vmatprep.subr.mxu0 0.0
    %3712 = vmatpush2.msra.mxu0 0.0
    %3713 = vmatprep.mubr.f32.mxu0 0.0
    %3714 = vmatmul.mubr.f32.gmra.mxu0 %v3647
    %v3715 = vpop.f32.mrf.mxu0
    %v3716 = vadd.f32 0.0, %v3715
    %v3717 = vpop.f32.mrf.mxu0
    %3718 = vdwg.mxu0
    %v3720 = vrot.slane %v3716, 6
    %v3722 = vadd.f32 %v2247, %v3720
    %v3723 = vxor.u32 %v3722, 2147483648
    %v3724 = vmul.f32 %v3723, 1.442695
    %v3725 = vpow.pop %v3724
    %v3726 = vadd.f32 %v3725, 1.0
    %v3727 = vrcp.pop %v3726
    %v3728 = vmul.f32 1.0, %v3727
    %v3729 = vtanh.pop %v3722
    %v3731 = vrot.slane %v3529, 2
    %v3733 = vmul.f32 %v3728, %v3731
    %3735 = vrot.lane.b32.xlu0 %v3729, 64
    %v3736 = vpop.permute.xlu0 %3735
    %v3738 = vmul.f32 %v3728, %v3736
    %3740 = vrot.lane.b32.xlu0 %v3738, 32
    %v3741 = vpop.permute.xlu0 %3740
    %v3743 = vadd.f32 %v3733, %v3741
    %v3744 = vtanh.pop %v3743
    %3746 = vrot.lane.b32.xlu0 %v3744, 64
    %v3747 = vpop.permute.xlu0 %3746
    %v3749 = vmul.f32 %v3728, %v3747
    %v3751 = vrot.slane %v3642, 4
    %3752 = vrot.lane.b32.xlu0 %v3751, 32
    %v3753 = vpop.permute.xlu0 %3752
    %v3754 = vsel %vm123, %v3753, 0
    %3756 = vmatprep.subr.mxu0 0.0
    %3757 = vmatpush1.msra.mxu0 0.0
    %3758 = vmatprep.subr.mxu0 0.0
    %3759 = vmatpush1.msra.mxu0 0.0
    %3760 = vmatprep.subr.mxu0 0.0
    %3761 = vmatpush1.msra.mxu0 0.0
    %3762 = vmatprep.subr.mxu0 0.0
    %3763 = vmatpush1.msra.mxu0 0.0
    %3764 = vmatprep.subr.mxu0 0.0
    %3765 = vmatpush1.msra.mxu0 0.0
    %3766 = vmatprep.subr.mxu0 0.0
    %3767 = vmatpush1.msra.mxu0 0.0
    %3768 = vmatprep.subr.mxu0 0.0
    %3769 = vmatpush1.msra.mxu0 0.0
    %3770 = vmatprep.subr.mxu0 0.0
    %3771 = vmatpush1.msra.mxu0 0.0
    %3772 = vmatprep.subr.mxu0 0.0
    %3773 = vmatpush1.msra.mxu0 0.0
    %3774 = vmatprep.subr.mxu0 0.0
    %3775 = vmatpush1.msra.mxu0 0.0
    %3776 = vmatprep.subr.mxu0 0.0
    %3777 = vmatpush1.msra.mxu0 0.0
    %3778 = vmatprep.subr.mxu0 0.0
    %3779 = vmatpush1.msra.mxu0 0.0
    %3780 = vmatprep.subr.mxu0 0.0
    %3781 = vmatpush1.msra.mxu0 %v2253
    %3782 = vmatprep.subr.mxu0 0.0
    %3783 = vmatpush1.msra.mxu0 %v2252
    %3784 = vmatprep.subr.mxu0 0.0
    %3785 = vmatpush1.msra.mxu0 %v2251
    %3786 = vmatprep.subr.mxu0 0.0
    %3787 = vmatpush1.msra.mxu0 %v2250
    %3788 = vmatprep.subr.mxu0 0.0
    %3789 = vmatpush2.msra.mxu0 0.0
    %3790 = vmatprep.subr.mxu0 0.0
    %3791 = vmatpush2.msra.mxu0 0.0
    %3792 = vmatprep.subr.mxu0 0.0
    %3793 = vmatpush2.msra.mxu0 0.0
    %3794 = vmatprep.subr.mxu0 0.0
    %3795 = vmatpush2.msra.mxu0 0.0
    %3796 = vmatprep.subr.mxu0 0.0
    %3797 = vmatpush2.msra.mxu0 0.0
    %3798 = vmatprep.subr.mxu0 0.0
    %3799 = vmatpush2.msra.mxu0 0.0
    %3800 = vmatprep.subr.mxu0 0.0
    %3801 = vmatpush2.msra.mxu0 0.0
    %3802 = vmatprep.subr.mxu0 0.0
    %3803 = vmatpush2.msra.mxu0 0.0
    %3804 = vmatprep.subr.mxu0 0.0
    %3805 = vmatpush2.msra.mxu0 0.0
    %3806 = vmatprep.subr.mxu0 0.0
    %3807 = vmatpush2.msra.mxu0 0.0
    %3808 = vmatprep.subr.mxu0 0.0
    %3809 = vmatpush2.msra.mxu0 0.0
    %3810 = vmatprep.subr.mxu0 0.0
    %3811 = vmatpush2.msra.mxu0 0.0
    %3812 = vmatprep.subr.mxu0 0.0
    %3813 = vmatpush2.msra.mxu0 0.0
    %3814 = vmatprep.subr.mxu0 0.0
    %3815 = vmatpush2.msra.mxu0 0.0
    %3816 = vmatprep.subr.mxu0 0.0
    %3817 = vmatpush2.msra.mxu0 0.0
    %3818 = vmatprep.subr.mxu0 0.0
    %3819 = vmatpush2.msra.mxu0 0.0
    %3820 = vmatprep.mubr.f32.mxu0 0.0
    %3821 = vmatmul.mubr.f32.gmra.mxu0 %v3754
    %v3822 = vpop.f32.mrf.mxu0
    %v3823 = vadd.f32 0.0, %v3822
    %v3824 = vpop.f32.mrf.mxu0
    %3825 = vdwg.mxu0
    %v3827 = vrot.slane %v3823, 2
    %v3829 = vadd.f32 %v2090, %v3827
    %v3830 = vxor.u32 %v3829, 2147483648
    %v3831 = vmul.f32 %v3830, 1.442695
    %v3832 = vpow.pop %v3831
    %v3833 = vadd.f32 %v3832, 1.0
    %v3834 = vrcp.pop %v3833
    %v3835 = vmul.f32 1.0, %v3834
    %v3836 = vtanh.pop %v3829
    %v3838 = vrot.slane %v3636, 6
    %v3840 = vmul.f32 %v3835, %v3838
    %3842 = vrot.lane.b32.xlu0 %v3836, 64
    %v3843 = vpop.permute.xlu0 %3842
    %v3845 = vmul.f32 %v3835, %v3843
    %3847 = vrot.lane.b32.xlu0 %v3845, 32
    %v3848 = vpop.permute.xlu0 %3847
    %v3850 = vadd.f32 %v3840, %v3848
    %v3851 = vtanh.pop %v3850
    %3853 = vrot.lane.b32.xlu0 %v3851, 64
    %v3854 = vpop.permute.xlu0 %3853
    %v3856 = vmul.f32 %v3835, %v3854
    %v3858 = vrot.slane %v3749, 2
    %3859 = vrot.lane.b32.xlu0 %v3858, 32
    %v3860 = vpop.permute.xlu0 %3859
    %v3861 = vsel %vm123, %v3860, 0
    %3863 = vmatprep.subr.mxu0 0.0
    %3864 = vmatpush1.msra.mxu0 0.0
    %3865 = vmatprep.subr.mxu0 0.0
    %3866 = vmatpush1.msra.mxu0 0.0
    %3867 = vmatprep.subr.mxu0 0.0
    %3868 = vmatpush1.msra.mxu0 0.0
    %3869 = vmatprep.subr.mxu0 0.0
    %3870 = vmatpush1.msra.mxu0 0.0
    %3871 = vmatprep.subr.mxu0 0.0
    %3872 = vmatpush1.msra.mxu0 0.0
    %3873 = vmatprep.subr.mxu0 0.0
    %3874 = vmatpush1.msra.mxu0 0.0
    %3875 = vmatprep.subr.mxu0 0.0
    %3876 = vmatpush1.msra.mxu0 0.0
    %3877 = vmatprep.subr.mxu0 0.0
    %3878 = vmatpush1.msra.mxu0 0.0
    %3879 = vmatprep.subr.mxu0 0.0
    %3880 = vmatpush1.msra.mxu0 0.0
    %3881 = vmatprep.subr.mxu0 0.0
    %3882 = vmatpush1.msra.mxu0 0.0
    %3883 = vmatprep.subr.mxu0 0.0
    %3884 = vmatpush1.msra.mxu0 0.0
    %3885 = vmatprep.subr.mxu0 0.0
    %3886 = vmatpush1.msra.mxu0 0.0
    %3887 = vmatprep.subr.mxu0 0.0
    %3888 = vmatpush1.msra.mxu0 %v2258
    %3889 = vmatprep.subr.mxu0 0.0
    %3890 = vmatpush1.msra.mxu0 %v2257
    %3891 = vmatprep.subr.mxu0 0.0
    %3892 = vmatpush1.msra.mxu0 %v2256
    %3893 = vmatprep.subr.mxu0 0.0
    %3894 = vmatpush1.msra.mxu0 %v2255
    %3895 = vmatprep.subr.mxu0 0.0
    %3896 = vmatpush2.msra.mxu0 0.0
    %3897 = vmatprep.subr.mxu0 0.0
    %3898 = vmatpush2.msra.mxu0 0.0
    %3899 = vmatprep.subr.mxu0 0.0
    %3900 = vmatpush2.msra.mxu0 0.0
    %3901 = vmatprep.subr.mxu0 0.0
    %3902 = vmatpush2.msra.mxu0 0.0
    %3903 = vmatprep.subr.mxu0 0.0
    %3904 = vmatpush2.msra.mxu0 0.0
    %3905 = vmatprep.subr.mxu0 0.0
    %3906 = vmatpush2.msra.mxu0 0.0
    %3907 = vmatprep.subr.mxu0 0.0
    %3908 = vmatpush2.msra.mxu0 0.0
    %3909 = vmatprep.subr.mxu0 0.0
    %3910 = vmatpush2.msra.mxu0 0.0
    %3911 = vmatprep.subr.mxu0 0.0
    %3912 = vmatpush2.msra.mxu0 0.0
    %3913 = vmatprep.subr.mxu0 0.0
    %3914 = vmatpush2.msra.mxu0 0.0
    %3915 = vmatprep.subr.mxu0 0.0
    %3916 = vmatpush2.msra.mxu0 0.0
    %3917 = vmatprep.subr.mxu0 0.0
    %3918 = vmatpush2.msra.mxu0 0.0
    %3919 = vmatprep.subr.mxu0 0.0
    %3920 = vmatpush2.msra.mxu0 0.0
    %3921 = vmatprep.subr.mxu0 0.0
    %3922 = vmatpush2.msra.mxu0 0.0
    %3923 = vmatprep.subr.mxu0 0.0
    %3924 = vmatpush2.msra.mxu0 0.0
    %3925 = vmatprep.subr.mxu0 0.0
    %3926 = vmatpush2.msra.mxu0 0.0
    %3927 = vmatprep.mubr.f32.mxu0 0.0
    %3928 = vmatmul.mubr.f32.gmra.mxu0 %v3861
    %v3929 = vpop.f32.mrf.mxu0
    %v3930 = vadd.f32 0.0, %v3929
    %v3931 = vpop.f32.mrf.mxu0
    %3932 = vdwg.mxu0
    %v3933 = vadd.f32 %v2247, %v3930
    %v3934 = vxor.u32 %v3933, 2147483648
    %v3935 = vmul.f32 %v3934, 1.442695
    %v3936 = vpow.pop %v3935
    %v3937 = vadd.f32 %v3936, 1.0
    %v3938 = vrcp.pop %v3937
    %v3939 = vmul.f32 1.0, %v3938
    %v3940 = vtanh.pop %v3933
    %v3942 = vrot.slane %v3743, 2
    %v3944 = vmul.f32 %v3939, %v3942
    %3946 = vrot.lane.b32.xlu0 %v3940, 64
    %v3947 = vpop.permute.xlu0 %3946
    %v3949 = vmul.f32 %v3939, %v3947
    %3951 = vrot.lane.b32.xlu0 %v3949, 32
    %v3952 = vpop.permute.xlu0 %3951
    %v3954 = vadd.f32 %v3944, %v3952
    %v3955 = vtanh.pop %v3954
    %3957 = vrot.lane.b32.xlu0 %v3955, 64
    %v3958 = vpop.permute.xlu0 %3957
    %v3960 = vmul.f32 %v3939, %v3958
    %3962 = vrot.lane.b32.xlu0 %v3856, 32
    %v3963 = vpop.permute.xlu0 %3962
    %s3965 = scalar_lea.vmem [#allocation9], 4
    %3966 = vst.msk [vmem:[%s3965 - $0x6] sm:$0xc0] %vm342, %v3963
    %3968 = vrot.lane.b32.xlu0 %v3850, 96
    %v3969 = vpop.permute.xlu0 %3968
    %s3971 = scalar_lea.vmem [#allocation10], 4
    %3972 = vst.msk [vmem:[%s3971 - $0x6] sm:$0xc0] %vm342, %v3969
    %3974 = vrot.lane.b32.xlu0 %v3960, 32
    %v3975 = vpop.permute.xlu0 %3974
    %s3977 = scalar_lea.vmem [#allocation9], 6
    %3978 = vst.msk [vmem:[%s3977] sm:$0x3] %vm336, %v3975
    %3980 = vrot.lane.b32.xlu0 %v3954, 96
    %v3981 = vpop.permute.xlu0 %3980
    %s3983 = scalar_lea.vmem [#allocation10], 6
    %3984 = vst.msk [vmem:[%s3983] sm:$0x3] %vm336, %v3981
    // Predicated region
    $region38: #{encoder_forward.1} parent=1 // pred_check
      _
    $region39: #{encoder_forward.1} parent=1 // pred_check_branch
      %3986 = sbr.rel (0) target = $region41
    $region40: #{encoder_forward.1} parent=1 // pred_region
      %s3988 = ssub.s32 128, 128
      %3989 = vsyncadd [#allocation6], %s3988
      %s3990 = sshll.u32 [#allocation9], 4
      %s3991 = int_to_ptr.vmem [resolvable:$true] %s3990
      %3996 = dma.vmem_to_hbm [thread:$0]  %s3991, 128, %s7, [#allocation6], 32, 32, 2
    $region41: #{encoder_forward.1} parent=1 // pred_fallthru
      _
    // Predicated region
    $region42: #{encoder_forward.1} parent=1 // pred_check
      _
    $region43: #{encoder_forward.1} parent=1 // pred_check_branch
      %3998 = sbr.rel (0) target = $region45
    $region44: #{encoder_forward.1} parent=1 // pred_region
      %s4000 = ssub.s32 128, 128
      %4001 = vsyncadd [#allocation11], %s4000
      %s4002 = sshll.u32 [#allocation10], 4
      %s4003 = int_to_ptr.vmem [resolvable:$true] %s4002
      %4008 = dma.vmem_to_hbm [thread:$0]  %s4003, 128, %s8, [#allocation11], 32, 32, 2
    $region45: #{encoder_forward.1} parent=1 // pred_fallthru
      _
    // Predicated region
    $region46: #{encoder_forward.1} parent=1 // pred_check
      _
    $region47: #{encoder_forward.1} parent=1 // pred_check_branch
      %4010 = sbr.rel (0) target = $region49
    $region48: #{encoder_forward.1} parent=1 // pred_region
      %4011 = dma.done [#allocation6], 128
    $region49: #{encoder_forward.1} parent=1 // pred_fallthru
      _
    // Predicated region
    $region50: #{encoder_forward.1} parent=1 // pred_check
      _
    $region51: #{encoder_forward.1} parent=1 // pred_check_branch
      %4013 = sbr.rel (0) target = $region53
    $region52: #{encoder_forward.1} parent=1 // pred_region
      %4014 = dma.done [#allocation11], 128
    $region53: #{encoder_forward.1} parent=1 // pred_fallthru
      _
    %4015 = vsyncpa [#allocation5], 1
    %4016 = vsyncpa [#allocation8], 1
    %4017 = vsyncpa [#allocation6], 1
    %4018 = vsyncpa [#allocation11], 1

</llo_original>
